<compile_context>
chip_gen: v7x
topology: tpu7x:2x2x1
jax: 0.10.0
libtpu: 0.0.40
codegen_flags: <defaults>
</compile_context>

<pallas_src>
import functools

import jax
import jax.numpy as jnp
from jax.experimental import pallas as pl
from jax.experimental.pallas import tpu as pltpu


# ----------------------------- fused Pallas kernel ---------------------------
def _encoder_kernel(ph_ref, w1_ref, w234_ref, b_ref, o_ref, *,
                    w0, rows, out_h, out_w, b_blk, cin):
    """Fused 4-layer conv encoder for one grid step of `b_blk` samples.

    ph_ref   : (b_blk, hp*wp, 4*cin) bf16 — phase-merged raw image
    w1_ref   : (9*cin, 32)           bf16 — fused layer-1 taps (norm folded in)
    w234_ref : (3, 288, 32)          bf16 — fused layer 2..4 taps
    b_ref    : (4, 1, 32)            f32  — biases (b1 includes -0.5*sum(W1))
    o_ref    : (b_blk, out_h, out_w, 32) f32
    w0       : stored flat-row width of every activation (= W // 2)
    rows     : (M1, M2, M3, M4) flat rows computed per layer
    """
    m1, m2, m3, m4 = rows

    for n in range(b_blk):
        # ---- layer 1: 3x3 / stride 2 == ONE matmul with K = 9*cin ----------
        taps = []
        for kh in range(3):
            for kw in range(3):
                p = (kh % 2) * 2 + (kw % 2)         # phase holding this tap
                s = (kh // 2) * w0 + (kw // 2)      # flat-row shift in the phase
                taps.append(ph_ref[n, s:s + m1, p * cin:(p + 1) * cin])
        lhs = jnp.concatenate(taps, axis=1)         # (m1, 9*cin) bf16
        acc = jnp.dot(lhs, w1_ref[...], preferred_element_type=jnp.float32)
        act = jnp.maximum(acc + b_ref[0], 0.0).astype(jnp.bfloat16)   # (m1, 32)

        # ---- layers 2..4: 3x3 / stride 1 == ONE matmul with K = 288 --------
        final = None
        for l, m in enumerate((m2, m3, m4)):
            taps = [act[kh * w0 + kw: kh * w0 + kw + m, :]
                    for kh in range(3) for kw in range(3)]
            lhs = jnp.concatenate(taps, axis=1)     # (m, 288) bf16
            acc = jnp.dot(lhs, w234_ref[l], preferred_element_type=jnp.float32)
            acc = acc + b_ref[l + 1]
            if l < 2:
                act = jnp.maximum(acc, 0.0).astype(jnp.bfloat16)
            else:
                final = jnp.maximum(acc, 0.0)       # (m4, 32) f32

        # ---- extract valid out_h x out_w window (garbage cols dropped) -----
        rows_v = [final[i * w0: i * w0 + out_w, :] for i in range(out_h)]
        o_ref[n] = jnp.stack(rows_v, axis=0)        # single (out_h,out_w,32) store


# ------------------------------ wrapper (JAX) --------------------------------
def _pick_batch_block(n):
    """Largest block in {1,2,4,8} dividing n while keeping >= 2 grid steps."""
    best = 1
    for blk in (2, 4, 8):
        if n % blk == 0 and n // blk >= 2:
            best = blk
    return best


def encoder_forward(obs_nchw, params):
    """Equivalent of Encoder.forward. obs_nchw: (N, C, H, W) float32 in [0, 255]."""
    N, C, H, W = obs_nchw.shape
    assert H % 2 == 0 and W % 2 == 0 and H >= 16 and W >= 16, (H, W)

    hp, wp = H // 2, W // 2
    w0 = wp                                        # stored flat-row width
    ho = [hp - 1 - 2 * l for l in range(4)]        # conv output heights
    wo = [wp - 1 - 2 * l for l in range(4)]        # conv output widths
    rows = tuple((ho[l] - 1) * w0 + wo[l] for l in range(4))
    out_h, out_w = ho[3], wo[3]

    # Static OOB guards: the largest shifted read of every layer must land exactly
    # on the last row of the previous layer (VMEM has no runtime bounds check).
    assert (w0 + 1) + rows[0] == hp * wp, "layer-1 shifted reads out of bounds"
    for l in range(1, 4):
        assert (2 * w0 + 2) + rows[l] == rows[l - 1], f"layer-{l+1} reads OOB"

    b_blk = _pick_batch_block(N)
    assert N % b_blk == 0

    # Fold obs/255 - 0.5 into layer-1 weights/bias (valid conv => exact), and fuse
    # the 9 taps along K (HWIO row-major reshape matches the kernel's concat order).
    w1, b1 = params["w1"], params["b1"]
    w1f = (w1 * (1.0 / 255.0)).reshape(9 * C, 32).astype(jnp.bfloat16)
    b1f = b1 - 0.5 * jnp.sum(w1, axis=(0, 1, 2))

    # NCHW -> NHWC, then merge the even/odd phases into the channel axis:
    # ph[n, hi*wp + wi, (a*2+b)*C + c] = x[n, 2*hi + a, 2*wi + b, c]
    x = jnp.transpose(obs_nchw, (0, 2, 3, 1))
    ph = x.reshape(N, hp, 2, wp, 2, C).transpose(0, 1, 3, 2, 4, 5)
    ph = ph.reshape(N, hp * wp, 4 * C).astype(jnp.bfloat16)

    w234 = jnp.stack([params[f"w{l}"].reshape(9 * 32, 32) for l in (2, 3, 4)])
    w234 = w234.astype(jnp.bfloat16)                                # (3, 288, 32)
    biases = jnp.stack([b1f, params["b2"], params["b3"], params["b4"]])
    biases = biases.reshape(4, 1, 32).astype(jnp.float32)

    kernel = functools.partial(_encoder_kernel, w0=w0, rows=rows,
                               out_h=out_h, out_w=out_w, b_blk=b_blk, cin=C)

    flops = int(2 * N * (rows[0] * 9 * C * 32
                         + sum(rows[l] * 288 * 32 for l in range(1, 4))))
    bytes_accessed = int(ph.size * 2 + w1f.size * 2 + w234.size * 2
                         + biases.size * 4 + N * out_h * out_w * 32 * 4)

    out = pl.pallas_call(
        kernel,
        out_shape=jax.ShapeDtypeStruct((N, out_h, out_w, 32), jnp.float32),
        grid=(N // b_blk,),
        in_specs=[
            pl.BlockSpec((b_blk, hp * wp, 4 * C), lambda n: (n, 0, 0)),
            pl.BlockSpec((9 * C, 32), lambda n: (0, 0)),           # resident
            pl.BlockSpec((3, 9 * 32, 32), lambda n: (0, 0, 0)),    # resident
            pl.BlockSpec((4, 1, 32), lambda n: (0, 0, 0)),         # resident
        ],
        out_specs=pl.BlockSpec((b_blk, out_h, out_w, 32), lambda n: (n, 0, 0, 0)),
        compiler_params=pltpu.CompilerParams(
            dimension_semantics=("parallel",),
            vmem_limit_bytes=32 * 1024 * 1024),
        cost_estimate=pl.CostEstimate(flops=flops, transcendentals=0,
                                      bytes_accessed=bytes_accessed),
    )(ph, w1f, w234, biases)

    # PyTorch flattens NCHW (channel-major): bring channels forward first.
    h = jnp.transpose(out, (0, 3, 1, 2)).reshape(N, -1)
    return h


# ------------------------- pure-JAX reference ---------------------------------
def encoder_reference(obs_nchw, params):
    x = jnp.transpose(obs_nchw, (0, 2, 3, 1)).astype(jnp.float32)
    x = x / 255.0 - 0.5
    strides = (2, 1, 1, 1)
    for li, s in enumerate(strides, start=1):
        w = params[f"w{li}"]
        b = params[f"b{li}"]
        x = jax.lax.conv_general_dilated(
            x, w, window_strides=(s, s), padding="VALID",
            dimension_numbers=("NHWC", "HWIO", "NHWC"))
        x = jnp.maximum(x + b, 0.0)
    return jnp.transpose(x, (0, 3, 1, 2)).reshape(x.shape[0], -1)


# ----------------------------- params / main ----------------------------------
def init_params(key, in_channels):
    ks = jax.random.split(key, 4)

    def conv_w(k, cin, cout):
        return (jax.random.normal(k, (3, 3, cin, cout), jnp.float32)
                * (1.0 / jnp.sqrt(9.0 * cin)))

    return {
        "w1": conv_w(ks[0], in_channels, 32), "b1": jnp.zeros((32,), jnp.float32),
        "w2": conv_w(ks[1], 32, 32),          "b2": jnp.zeros((32,), jnp.float32),
        "w3": conv_w(ks[2], 32, 32),          "b3": jnp.zeros((32,), jnp.float32),
        "w4": conv_w(ks[3], 32, 32),          "b4": jnp.zeros((32,), jnp.float32),
    }


if __name__ == "__main__":
    key = jax.random.PRNGKey(0)
    k_obs, k_par = jax.random.split(key)

    N, C, H, W = 4, 4, 24, 24               # small obs_shape = (4, 24, 24)
    obs = jax.random.uniform(k_obs, (N, C, H, W), jnp.float32, 0.0, 255.0)
    params = init_params(k_par, C)

    fwd = jax.jit(encoder_forward)
    h = fwd(obs, params)
    jax.block_until_ready(h)

    # shape check: 24 -> 11 (stride 2) -> 9 -> 7 -> 5, repr = 32*5*5 = 800
    assert h.shape == (N, 32 * 5 * 5), h.shape

    # Tolerance covers bf16 MXU operand rounding (f32 accumulation) across the
    # four stacked conv layers; an indexing/layout bug would show O(0.1-1) errors.
    h_ref = encoder_reference(obs, params)
    max_err = float(jnp.max(jnp.abs(h - h_ref)))
    assert jnp.allclose(h, h_ref, atol=3e-2, rtol=3e-2), max_err

    print("KERNEL_OK")
</pallas_src>

<mosaic_0001>
module attributes {stable_mosaic.version = 11 : i64} {
  func.func @_encoder_kernel(%arg0: i32, %arg1: memref<2x144x16xbf16, #tpu.memory_space<vmem>>, %arg2: memref<36x32xbf16, #tpu.memory_space<vmem>>, %arg3: memref<3x288x32xbf16, #tpu.memory_space<vmem>>, %arg4: memref<4x1x32xf32, #tpu.memory_space<vmem>>, %arg5: memref<2x5x5x32xf32, #tpu.memory_space<vmem>>) attributes {dimension_semantics = [#tpu.dimension_semantics<parallel>], iteration_bounds = array<i64: 2>, scalar_prefetch = 0 : i64, scratch_operands = 0 : i64, tpu.core_type = #tpu.core_type<tc>, window_params = [{transform_indices = @transform_0, window_bounds = array<i64: 2, 144, 16>}, {pipeline_mode = #tpu.pipeline_mode<synchronous>, transform_indices = @transform_1, window_bounds = array<i64: 36, 32>}, {pipeline_mode = #tpu.pipeline_mode<synchronous>, transform_indices = @transform_2, window_bounds = array<i64: 3, 288, 32>}, {pipeline_mode = #tpu.pipeline_mode<synchronous>, transform_indices = @transform_3, window_bounds = array<i64: 4, 1, 32>}, {transform_indices = @transform_4, window_bounds = array<i64: 2, 5, 5, 32>}]} {
    %c0 = arith.constant 0 : index
    %c0_0 = arith.constant 0 : index
    %c0_1 = arith.constant 0 : index
    %0 = vector.load %arg1[%c0, %c0_0, %c0_1] : memref<2x144x16xbf16, #tpu.memory_space<vmem>>, vector<1x131x4xbf16>
    %1 = vector.shape_cast %0 : vector<1x131x4xbf16> to vector<131x4xbf16>
    %c0_2 = arith.constant 0 : index
    %c0_3 = arith.constant 0 : index
    %c4 = arith.constant 4 : index
    %2 = vector.load %arg1[%c0_2, %c0_3, %c4] : memref<2x144x16xbf16, #tpu.memory_space<vmem>>, vector<1x131x4xbf16>
    %3 = vector.shape_cast %2 : vector<1x131x4xbf16> to vector<131x4xbf16>
    %c0_4 = arith.constant 0 : index
    %c1 = arith.constant 1 : index
    %c0_5 = arith.constant 0 : index
    %4 = vector.load %arg1[%c0_4, %c1, %c0_5] : memref<2x144x16xbf16, #tpu.memory_space<vmem>>, vector<1x131x4xbf16>
    %5 = vector.shape_cast %4 : vector<1x131x4xbf16> to vector<131x4xbf16>
    %c0_6 = arith.constant 0 : index
    %c0_7 = arith.constant 0 : index
    %c8 = arith.constant 8 : index
    %6 = vector.load %arg1[%c0_6, %c0_7, %c8] : memref<2x144x16xbf16, #tpu.memory_space<vmem>>, vector<1x131x4xbf16>
    %7 = vector.shape_cast %6 : vector<1x131x4xbf16> to vector<131x4xbf16>
    %c0_8 = arith.constant 0 : index
    %c0_9 = arith.constant 0 : index
    %c12 = arith.constant 12 : index
    %8 = vector.load %arg1[%c0_8, %c0_9, %c12] : memref<2x144x16xbf16, #tpu.memory_space<vmem>>, vector<1x131x4xbf16>
    %9 = vector.shape_cast %8 : vector<1x131x4xbf16> to vector<131x4xbf16>
    %c0_10 = arith.constant 0 : index
    %c1_11 = arith.constant 1 : index
    %c8_12 = arith.constant 8 : index
    %10 = vector.load %arg1[%c0_10, %c1_11, %c8_12] : memref<2x144x16xbf16, #tpu.memory_space<vmem>>, vector<1x131x4xbf16>
    %11 = vector.shape_cast %10 : vector<1x131x4xbf16> to vector<131x4xbf16>
    %c0_13 = arith.constant 0 : index
    %c12_14 = arith.constant 12 : index
    %c0_15 = arith.constant 0 : index
    %12 = vector.load %arg1[%c0_13, %c12_14, %c0_15] : memref<2x144x16xbf16, #tpu.memory_space<vmem>>, vector<1x131x4xbf16>
    %13 = vector.shape_cast %12 : vector<1x131x4xbf16> to vector<131x4xbf16>
    %c0_16 = arith.constant 0 : index
    %c12_17 = arith.constant 12 : index
    %c4_18 = arith.constant 4 : index
    %14 = vector.load %arg1[%c0_16, %c12_17, %c4_18] : memref<2x144x16xbf16, #tpu.memory_space<vmem>>, vector<1x131x4xbf16>
    %15 = vector.shape_cast %14 : vector<1x131x4xbf16> to vector<131x4xbf16>
    %c0_19 = arith.constant 0 : index
    %c13 = arith.constant 13 : index
    %c0_20 = arith.constant 0 : index
    %16 = vector.load %arg1[%c0_19, %c13, %c0_20] : memref<2x144x16xbf16, #tpu.memory_space<vmem>>, vector<1x131x4xbf16>
    %17 = vector.shape_cast %16 : vector<1x131x4xbf16> to vector<131x4xbf16>
    %18 = tpu.concatenate %1, %3, %5, %7, %9, %11, %13, %15, %17 in 1 : vector<131x4xbf16>, vector<131x4xbf16>, vector<131x4xbf16>, vector<131x4xbf16>, vector<131x4xbf16>, vector<131x4xbf16>, vector<131x4xbf16>, vector<131x4xbf16>, vector<131x4xbf16> -> vector<131x36xbf16>
    %c0_21 = arith.constant 0 : index
    %c0_22 = arith.constant 0 : index
    %19 = vector.load %arg2[%c0_21, %c0_22] : memref<36x32xbf16, #tpu.memory_space<vmem>>, vector<36x32xbf16>
    %cst = arith.constant dense<0.000000e+00> : vector<131x32xf32>
    %20 = tpu.matmul %18, %19, %cst {dimension_numbers = #tpu.dot_dimension_numbers<[1], [0], [0], [1], [0, 0, 1, 1], [], []>} : vector<131x36xbf16>, vector<36x32xbf16>, vector<131x32xf32> -> vector<131x32xf32>
    %c0_23 = arith.constant 0 : index
    %c0_24 = arith.constant 0 : index
    %c0_25 = arith.constant 0 : index
    %21 = vector.load %arg4[%c0_23, %c0_24, %c0_25] : memref<4x1x32xf32, #tpu.memory_space<vmem>>, vector<1x1x32xf32>
    %22 = vector.shape_cast %21 : vector<1x1x32xf32> to vector<1x32xf32>
    %23 = vector.broadcast %22 : vector<1x32xf32> to vector<131x32xf32>
    %24 = arith.addf %20, %23 : vector<131x32xf32>
    %cst_26 = arith.constant 0.000000e+00 : f32
    %25 = vector.broadcast %cst_26 : f32 to vector<131x32xf32>
    %26 = arith.maximumf %24, %25 : vector<131x32xf32>
    %27 = arith.truncf %26 : vector<131x32xf32> to vector<131x32xbf16>
    %28 = vector.extract_strided_slice %27 {offsets = [0, 0], sizes = [105, 32], strides = [1, 1]} : vector<131x32xbf16> to vector<105x32xbf16>
    %29 = vector.extract_strided_slice %27 {offsets = [1, 0], sizes = [105, 32], strides = [1, 1]} : vector<131x32xbf16> to vector<105x32xbf16>
    %30 = vector.extract_strided_slice %27 {offsets = [2, 0], sizes = [105, 32], strides = [1, 1]} : vector<131x32xbf16> to vector<105x32xbf16>
    %31 = vector.extract_strided_slice %27 {offsets = [12, 0], sizes = [105, 32], strides = [1, 1]} : vector<131x32xbf16> to vector<105x32xbf16>
    %32 = vector.extract_strided_slice %27 {offsets = [13, 0], sizes = [105, 32], strides = [1, 1]} : vector<131x32xbf16> to vector<105x32xbf16>
    %33 = vector.extract_strided_slice %27 {offsets = [14, 0], sizes = [105, 32], strides = [1, 1]} : vector<131x32xbf16> to vector<105x32xbf16>
    %34 = vector.extract_strided_slice %27 {offsets = [24, 0], sizes = [105, 32], strides = [1, 1]} : vector<131x32xbf16> to vector<105x32xbf16>
    %35 = vector.extract_strided_slice %27 {offsets = [25, 0], sizes = [105, 32], strides = [1, 1]} : vector<131x32xbf16> to vector<105x32xbf16>
    %36 = vector.extract_strided_slice %27 {offsets = [26, 0], sizes = [105, 32], strides = [1, 1]} : vector<131x32xbf16> to vector<105x32xbf16>
    %37 = tpu.concatenate %28, %29, %30, %31, %32, %33, %34, %35, %36 in 1 : vector<105x32xbf16>, vector<105x32xbf16>, vector<105x32xbf16>, vector<105x32xbf16>, vector<105x32xbf16>, vector<105x32xbf16>, vector<105x32xbf16>, vector<105x32xbf16>, vector<105x32xbf16> -> vector<105x288xbf16>
    %c0_27 = arith.constant 0 : index
    %c0_28 = arith.constant 0 : index
    %c0_29 = arith.constant 0 : index
    %38 = vector.load %arg3[%c0_27, %c0_28, %c0_29] : memref<3x288x32xbf16, #tpu.memory_space<vmem>>, vector<1x288x32xbf16>
    %39 = vector.shape_cast %38 : vector<1x288x32xbf16> to vector<288x32xbf16>
    %cst_30 = arith.constant dense<0.000000e+00> : vector<105x32xf32>
    %40 = tpu.matmul %37, %39, %cst_30 {dimension_numbers = #tpu.dot_dimension_numbers<[1], [0], [0], [1], [0, 0, 1, 1], [], []>} : vector<105x288xbf16>, vector<288x32xbf16>, vector<105x32xf32> -> vector<105x32xf32>
    %c1_31 = arith.constant 1 : index
    %c0_32 = arith.constant 0 : index
    %c0_33 = arith.constant 0 : index
    %41 = vector.load %arg4[%c1_31, %c0_32, %c0_33] : memref<4x1x32xf32, #tpu.memory_space<vmem>>, vector<1x1x32xf32>
    %42 = vector.shape_cast %41 : vector<1x1x32xf32> to vector<1x32xf32>
    %43 = vector.broadcast %42 : vector<1x32xf32> to vector<105x32xf32>
    %44 = arith.addf %40, %43 : vector<105x32xf32>
    %cst_34 = arith.constant 0.000000e+00 : f32
    %45 = vector.broadcast %cst_34 : f32 to vector<105x32xf32>
    %46 = arith.maximumf %44, %45 : vector<105x32xf32>
    %47 = arith.truncf %46 : vector<105x32xf32> to vector<105x32xbf16>
    %48 = vector.extract_strided_slice %47 {offsets = [0, 0], sizes = [79, 32], strides = [1, 1]} : vector<105x32xbf16> to vector<79x32xbf16>
    %49 = vector.extract_strided_slice %47 {offsets = [1, 0], sizes = [79, 32], strides = [1, 1]} : vector<105x32xbf16> to vector<79x32xbf16>
    %50 = vector.extract_strided_slice %47 {offsets = [2, 0], sizes = [79, 32], strides = [1, 1]} : vector<105x32xbf16> to vector<79x32xbf16>
    %51 = vector.extract_strided_slice %47 {offsets = [12, 0], sizes = [79, 32], strides = [1, 1]} : vector<105x32xbf16> to vector<79x32xbf16>
    %52 = vector.extract_strided_slice %47 {offsets = [13, 0], sizes = [79, 32], strides = [1, 1]} : vector<105x32xbf16> to vector<79x32xbf16>
    %53 = vector.extract_strided_slice %47 {offsets = [14, 0], sizes = [79, 32], strides = [1, 1]} : vector<105x32xbf16> to vector<79x32xbf16>
    %54 = vector.extract_strided_slice %47 {offsets = [24, 0], sizes = [79, 32], strides = [1, 1]} : vector<105x32xbf16> to vector<79x32xbf16>
    %55 = vector.extract_strided_slice %47 {offsets = [25, 0], sizes = [79, 32], strides = [1, 1]} : vector<105x32xbf16> to vector<79x32xbf16>
    %56 = vector.extract_strided_slice %47 {offsets = [26, 0], sizes = [79, 32], strides = [1, 1]} : vector<105x32xbf16> to vector<79x32xbf16>
    %57 = tpu.concatenate %48, %49, %50, %51, %52, %53, %54, %55, %56 in 1 : vector<79x32xbf16>, vector<79x32xbf16>, vector<79x32xbf16>, vector<79x32xbf16>, vector<79x32xbf16>, vector<79x32xbf16>, vector<79x32xbf16>, vector<79x32xbf16>, vector<79x32xbf16> -> vector<79x288xbf16>
    %c1_35 = arith.constant 1 : index
    %c0_36 = arith.constant 0 : index
    %c0_37 = arith.constant 0 : index
    %58 = vector.load %arg3[%c1_35, %c0_36, %c0_37] : memref<3x288x32xbf16, #tpu.memory_space<vmem>>, vector<1x288x32xbf16>
    %59 = vector.shape_cast %58 : vector<1x288x32xbf16> to vector<288x32xbf16>
    %cst_38 = arith.constant dense<0.000000e+00> : vector<79x32xf32>
    %60 = tpu.matmul %57, %59, %cst_38 {dimension_numbers = #tpu.dot_dimension_numbers<[1], [0], [0], [1], [0, 0, 1, 1], [], []>} : vector<79x288xbf16>, vector<288x32xbf16>, vector<79x32xf32> -> vector<79x32xf32>
    %c2 = arith.constant 2 : index
    %c0_39 = arith.constant 0 : index
    %c0_40 = arith.constant 0 : index
    %61 = vector.load %arg4[%c2, %c0_39, %c0_40] : memref<4x1x32xf32, #tpu.memory_space<vmem>>, vector<1x1x32xf32>
    %62 = vector.shape_cast %61 : vector<1x1x32xf32> to vector<1x32xf32>
    %63 = vector.broadcast %62 : vector<1x32xf32> to vector<79x32xf32>
    %64 = arith.addf %60, %63 : vector<79x32xf32>
    %cst_41 = arith.constant 0.000000e+00 : f32
    %65 = vector.broadcast %cst_41 : f32 to vector<79x32xf32>
    %66 = arith.maximumf %64, %65 : vector<79x32xf32>
    %67 = arith.truncf %66 : vector<79x32xf32> to vector<79x32xbf16>
    %68 = vector.extract_strided_slice %67 {offsets = [0, 0], sizes = [53, 32], strides = [1, 1]} : vector<79x32xbf16> to vector<53x32xbf16>
    %69 = vector.extract_strided_slice %67 {offsets = [1, 0], sizes = [53, 32], strides = [1, 1]} : vector<79x32xbf16> to vector<53x32xbf16>
    %70 = vector.extract_strided_slice %67 {offsets = [2, 0], sizes = [53, 32], strides = [1, 1]} : vector<79x32xbf16> to vector<53x32xbf16>
    %71 = vector.extract_strided_slice %67 {offsets = [12, 0], sizes = [53, 32], strides = [1, 1]} : vector<79x32xbf16> to vector<53x32xbf16>
    %72 = vector.extract_strided_slice %67 {offsets = [13, 0], sizes = [53, 32], strides = [1, 1]} : vector<79x32xbf16> to vector<53x32xbf16>
    %73 = vector.extract_strided_slice %67 {offsets = [14, 0], sizes = [53, 32], strides = [1, 1]} : vector<79x32xbf16> to vector<53x32xbf16>
    %74 = vector.extract_strided_slice %67 {offsets = [24, 0], sizes = [53, 32], strides = [1, 1]} : vector<79x32xbf16> to vector<53x32xbf16>
    %75 = vector.extract_strided_slice %67 {offsets = [25, 0], sizes = [53, 32], strides = [1, 1]} : vector<79x32xbf16> to vector<53x32xbf16>
    %76 = vector.extract_strided_slice %67 {offsets = [26, 0], sizes = [53, 32], strides = [1, 1]} : vector<79x32xbf16> to vector<53x32xbf16>
    %77 = tpu.concatenate %68, %69, %70, %71, %72, %73, %74, %75, %76 in 1 : vector<53x32xbf16>, vector<53x32xbf16>, vector<53x32xbf16>, vector<53x32xbf16>, vector<53x32xbf16>, vector<53x32xbf16>, vector<53x32xbf16>, vector<53x32xbf16>, vector<53x32xbf16> -> vector<53x288xbf16>
    %c2_42 = arith.constant 2 : index
    %c0_43 = arith.constant 0 : index
    %c0_44 = arith.constant 0 : index
    %78 = vector.load %arg3[%c2_42, %c0_43, %c0_44] : memref<3x288x32xbf16, #tpu.memory_space<vmem>>, vector<1x288x32xbf16>
    %79 = vector.shape_cast %78 : vector<1x288x32xbf16> to vector<288x32xbf16>
    %cst_45 = arith.constant dense<0.000000e+00> : vector<53x32xf32>
    %80 = tpu.matmul %77, %79, %cst_45 {dimension_numbers = #tpu.dot_dimension_numbers<[1], [0], [0], [1], [0, 0, 1, 1], [], []>} : vector<53x288xbf16>, vector<288x32xbf16>, vector<53x32xf32> -> vector<53x32xf32>
    %c3 = arith.constant 3 : index
    %c0_46 = arith.constant 0 : index
    %c0_47 = arith.constant 0 : index
    %81 = vector.load %arg4[%c3, %c0_46, %c0_47] : memref<4x1x32xf32, #tpu.memory_space<vmem>>, vector<1x1x32xf32>
    %82 = vector.shape_cast %81 : vector<1x1x32xf32> to vector<1x32xf32>
    %83 = vector.broadcast %82 : vector<1x32xf32> to vector<53x32xf32>
    %84 = arith.addf %80, %83 : vector<53x32xf32>
    %cst_48 = arith.constant 0.000000e+00 : f32
    %85 = vector.broadcast %cst_48 : f32 to vector<53x32xf32>
    %86 = arith.maximumf %84, %85 : vector<53x32xf32>
    %87 = vector.extract_strided_slice %86 {offsets = [0, 0], sizes = [5, 32], strides = [1, 1]} : vector<53x32xf32> to vector<5x32xf32>
    %88 = vector.extract_strided_slice %86 {offsets = [12, 0], sizes = [5, 32], strides = [1, 1]} : vector<53x32xf32> to vector<5x32xf32>
    %89 = vector.extract_strided_slice %86 {offsets = [24, 0], sizes = [5, 32], strides = [1, 1]} : vector<53x32xf32> to vector<5x32xf32>
    %90 = vector.extract_strided_slice %86 {offsets = [36, 0], sizes = [5, 32], strides = [1, 1]} : vector<53x32xf32> to vector<5x32xf32>
    %91 = vector.extract_strided_slice %86 {offsets = [48, 0], sizes = [5, 32], strides = [1, 1]} : vector<53x32xf32> to vector<5x32xf32>
    %92 = vector.shape_cast %87 : vector<5x32xf32> to vector<1x5x32xf32>
    %93 = vector.shape_cast %88 : vector<5x32xf32> to vector<1x5x32xf32>
    %94 = vector.shape_cast %89 : vector<5x32xf32> to vector<1x5x32xf32>
    %95 = vector.shape_cast %90 : vector<5x32xf32> to vector<1x5x32xf32>
    %96 = vector.shape_cast %91 : vector<5x32xf32> to vector<1x5x32xf32>
    %97 = tpu.concatenate %92, %93, %94, %95, %96 in 0 : vector<1x5x32xf32>, vector<1x5x32xf32>, vector<1x5x32xf32>, vector<1x5x32xf32>, vector<1x5x32xf32> -> vector<5x5x32xf32>
    %c0_49 = arith.constant 0 : index
    %c0_50 = arith.constant 0 : index
    %c0_51 = arith.constant 0 : index
    %c0_52 = arith.constant 0 : index
    %98 = vector.load %arg5[%c0_49, %c0_50, %c0_51, %c0_52] : memref<2x5x5x32xf32, #tpu.memory_space<vmem>>, vector<1x5x5x32xf32>
    %99 = vector.shape_cast %98 : vector<1x5x5x32xf32> to vector<5x5x32xf32>
    %100 = vector.shape_cast %97 : vector<5x5x32xf32> to vector<1x5x5x32xf32>
    tpu.vector_store %arg5[%c0_49, %c0_50, %c0_51, %c0_52], %100 {strides = array<i32>} : memref<2x5x5x32xf32, #tpu.memory_space<vmem>>, vector<1x5x5x32xf32>,
    %c1_53 = arith.constant 1 : index
    %c0_54 = arith.constant 0 : index
    %c0_55 = arith.constant 0 : index
    %101 = vector.load %arg1[%c1_53, %c0_54, %c0_55] : memref<2x144x16xbf16, #tpu.memory_space<vmem>>, vector<1x131x4xbf16>
    %102 = vector.shape_cast %101 : vector<1x131x4xbf16> to vector<131x4xbf16>
    %c1_56 = arith.constant 1 : index
    %c0_57 = arith.constant 0 : index
    %c4_58 = arith.constant 4 : index
    %103 = vector.load %arg1[%c1_56, %c0_57, %c4_58] : memref<2x144x16xbf16, #tpu.memory_space<vmem>>, vector<1x131x4xbf16>
    %104 = vector.shape_cast %103 : vector<1x131x4xbf16> to vector<131x4xbf16>
    %c1_59 = arith.constant 1 : index
    %c1_60 = arith.constant 1 : index
    %c0_61 = arith.constant 0 : index
    %105 = vector.load %arg1[%c1_59, %c1_60, %c0_61] : memref<2x144x16xbf16, #tpu.memory_space<vmem>>, vector<1x131x4xbf16>
    %106 = vector.shape_cast %105 : vector<1x131x4xbf16> to vector<131x4xbf16>
    %c1_62 = arith.constant 1 : index
    %c0_63 = arith.constant 0 : index
    %c8_64 = arith.constant 8 : index
    %107 = vector.load %arg1[%c1_62, %c0_63, %c8_64] : memref<2x144x16xbf16, #tpu.memory_space<vmem>>, vector<1x131x4xbf16>
    %108 = vector.shape_cast %107 : vector<1x131x4xbf16> to vector<131x4xbf16>
    %c1_65 = arith.constant 1 : index
    %c0_66 = arith.constant 0 : index
    %c12_67 = arith.constant 12 : index
    %109 = vector.load %arg1[%c1_65, %c0_66, %c12_67] : memref<2x144x16xbf16, #tpu.memory_space<vmem>>, vector<1x131x4xbf16>
    %110 = vector.shape_cast %109 : vector<1x131x4xbf16> to vector<131x4xbf16>
    %c1_68 = arith.constant 1 : index
    %c1_69 = arith.constant 1 : index
    %c8_70 = arith.constant 8 : index
    %111 = vector.load %arg1[%c1_68, %c1_69, %c8_70] : memref<2x144x16xbf16, #tpu.memory_space<vmem>>, vector<1x131x4xbf16>
    %112 = vector.shape_cast %111 : vector<1x131x4xbf16> to vector<131x4xbf16>
    %c1_71 = arith.constant 1 : index
    %c12_72 = arith.constant 12 : index
    %c0_73 = arith.constant 0 : index
    %113 = vector.load %arg1[%c1_71, %c12_72, %c0_73] : memref<2x144x16xbf16, #tpu.memory_space<vmem>>, vector<1x131x4xbf16>
    %114 = vector.shape_cast %113 : vector<1x131x4xbf16> to vector<131x4xbf16>
    %c1_74 = arith.constant 1 : index
    %c12_75 = arith.constant 12 : index
    %c4_76 = arith.constant 4 : index
    %115 = vector.load %arg1[%c1_74, %c12_75, %c4_76] : memref<2x144x16xbf16, #tpu.memory_space<vmem>>, vector<1x131x4xbf16>
    %116 = vector.shape_cast %115 : vector<1x131x4xbf16> to vector<131x4xbf16>
    %c1_77 = arith.constant 1 : index
    %c13_78 = arith.constant 13 : index
    %c0_79 = arith.constant 0 : index
    %117 = vector.load %arg1[%c1_77, %c13_78, %c0_79] : memref<2x144x16xbf16, #tpu.memory_space<vmem>>, vector<1x131x4xbf16>
    %118 = vector.shape_cast %117 : vector<1x131x4xbf16> to vector<131x4xbf16>
    %119 = tpu.concatenate %102, %104, %106, %108, %110, %112, %114, %116, %118 in 1 : vector<131x4xbf16>, vector<131x4xbf16>, vector<131x4xbf16>, vector<131x4xbf16>, vector<131x4xbf16>, vector<131x4xbf16>, vector<131x4xbf16>, vector<131x4xbf16>, vector<131x4xbf16> -> vector<131x36xbf16>
    %c0_80 = arith.constant 0 : index
    %c0_81 = arith.constant 0 : index
    %120 = vector.load %arg2[%c0_80, %c0_81] : memref<36x32xbf16, #tpu.memory_space<vmem>>, vector<36x32xbf16>
    %cst_82 = arith.constant dense<0.000000e+00> : vector<131x32xf32>
    %121 = tpu.matmul %119, %120, %cst_82 {dimension_numbers = #tpu.dot_dimension_numbers<[1], [0], [0], [1], [0, 0, 1, 1], [], []>} : vector<131x36xbf16>, vector<36x32xbf16>, vector<131x32xf32> -> vector<131x32xf32>
    %c0_83 = arith.constant 0 : index
    %c0_84 = arith.constant 0 : index
    %c0_85 = arith.constant 0 : index
    %122 = vector.load %arg4[%c0_83, %c0_84, %c0_85] : memref<4x1x32xf32, #tpu.memory_space<vmem>>, vector<1x1x32xf32>
    %123 = vector.shape_cast %122 : vector<1x1x32xf32> to vector<1x32xf32>
    %124 = vector.broadcast %123 : vector<1x32xf32> to vector<131x32xf32>
    %125 = arith.addf %121, %124 : vector<131x32xf32>
    %cst_86 = arith.constant 0.000000e+00 : f32
    %126 = vector.broadcast %cst_86 : f32 to vector<131x32xf32>
    %127 = arith.maximumf %125, %126 : vector<131x32xf32>
    %128 = arith.truncf %127 : vector<131x32xf32> to vector<131x32xbf16>
    %129 = vector.extract_strided_slice %128 {offsets = [0, 0], sizes = [105, 32], strides = [1, 1]} : vector<131x32xbf16> to vector<105x32xbf16>
    %130 = vector.extract_strided_slice %128 {offsets = [1, 0], sizes = [105, 32], strides = [1, 1]} : vector<131x32xbf16> to vector<105x32xbf16>
    %131 = vector.extract_strided_slice %128 {offsets = [2, 0], sizes = [105, 32], strides = [1, 1]} : vector<131x32xbf16> to vector<105x32xbf16>
    %132 = vector.extract_strided_slice %128 {offsets = [12, 0], sizes = [105, 32], strides = [1, 1]} : vector<131x32xbf16> to vector<105x32xbf16>
    %133 = vector.extract_strided_slice %128 {offsets = [13, 0], sizes = [105, 32], strides = [1, 1]} : vector<131x32xbf16> to vector<105x32xbf16>
    %134 = vector.extract_strided_slice %128 {offsets = [14, 0], sizes = [105, 32], strides = [1, 1]} : vector<131x32xbf16> to vector<105x32xbf16>
    %135 = vector.extract_strided_slice %128 {offsets = [24, 0], sizes = [105, 32], strides = [1, 1]} : vector<131x32xbf16> to vector<105x32xbf16>
    %136 = vector.extract_strided_slice %128 {offsets = [25, 0], sizes = [105, 32], strides = [1, 1]} : vector<131x32xbf16> to vector<105x32xbf16>
    %137 = vector.extract_strided_slice %128 {offsets = [26, 0], sizes = [105, 32], strides = [1, 1]} : vector<131x32xbf16> to vector<105x32xbf16>
    %138 = tpu.concatenate %129, %130, %131, %132, %133, %134, %135, %136, %137 in 1 : vector<105x32xbf16>, vector<105x32xbf16>, vector<105x32xbf16>, vector<105x32xbf16>, vector<105x32xbf16>, vector<105x32xbf16>, vector<105x32xbf16>, vector<105x32xbf16>, vector<105x32xbf16> -> vector<105x288xbf16>
    %c0_87 = arith.constant 0 : index
    %c0_88 = arith.constant 0 : index
    %c0_89 = arith.constant 0 : index
    %139 = vector.load %arg3[%c0_87, %c0_88, %c0_89] : memref<3x288x32xbf16, #tpu.memory_space<vmem>>, vector<1x288x32xbf16>
    %140 = vector.shape_cast %139 : vector<1x288x32xbf16> to vector<288x32xbf16>
    %cst_90 = arith.constant dense<0.000000e+00> : vector<105x32xf32>
    %141 = tpu.matmul %138, %140, %cst_90 {dimension_numbers = #tpu.dot_dimension_numbers<[1], [0], [0], [1], [0, 0, 1, 1], [], []>} : vector<105x288xbf16>, vector<288x32xbf16>, vector<105x32xf32> -> vector<105x32xf32>
    %c1_91 = arith.constant 1 : index
    %c0_92 = arith.constant 0 : index
    %c0_93 = arith.constant 0 : index
    %142 = vector.load %arg4[%c1_91, %c0_92, %c0_93] : memref<4x1x32xf32, #tpu.memory_space<vmem>>, vector<1x1x32xf32>
    %143 = vector.shape_cast %142 : vector<1x1x32xf32> to vector<1x32xf32>
    %144 = vector.broadcast %143 : vector<1x32xf32> to vector<105x32xf32>
    %145 = arith.addf %141, %144 : vector<105x32xf32>
    %cst_94 = arith.constant 0.000000e+00 : f32
    %146 = vector.broadcast %cst_94 : f32 to vector<105x32xf32>
    %147 = arith.maximumf %145, %146 : vector<105x32xf32>
    %148 = arith.truncf %147 : vector<105x32xf32> to vector<105x32xbf16>
    %149 = vector.extract_strided_slice %148 {offsets = [0, 0], sizes = [79, 32], strides = [1, 1]} : vector<105x32xbf16> to vector<79x32xbf16>
    %150 = vector.extract_strided_slice %148 {offsets = [1, 0], sizes = [79, 32], strides = [1, 1]} : vector<105x32xbf16> to vector<79x32xbf16>
    %151 = vector.extract_strided_slice %148 {offsets = [2, 0], sizes = [79, 32], strides = [1, 1]} : vector<105x32xbf16> to vector<79x32xbf16>
    %152 = vector.extract_strided_slice %148 {offsets = [12, 0], sizes = [79, 32], strides = [1, 1]} : vector<105x32xbf16> to vector<79x32xbf16>
    %153 = vector.extract_strided_slice %148 {offsets = [13, 0], sizes = [79, 32], strides = [1, 1]} : vector<105x32xbf16> to vector<79x32xbf16>
    %154 = vector.extract_strided_slice %148 {offsets = [14, 0], sizes = [79, 32], strides = [1, 1]} : vector<105x32xbf16> to vector<79x32xbf16>
    %155 = vector.extract_strided_slice %148 {offsets = [24, 0], sizes = [79, 32], strides = [1, 1]} : vector<105x32xbf16> to vector<79x32xbf16>
    %156 = vector.extract_strided_slice %148 {offsets = [25, 0], sizes = [79, 32], strides = [1, 1]} : vector<105x32xbf16> to vector<79x32xbf16>
    %157 = vector.extract_strided_slice %148 {offsets = [26, 0], sizes = [79, 32], strides = [1, 1]} : vector<105x32xbf16> to vector<79x32xbf16>
    %158 = tpu.concatenate %149, %150, %151, %152, %153, %154, %155, %156, %157 in 1 : vector<79x32xbf16>, vector<79x32xbf16>, vector<79x32xbf16>, vector<79x32xbf16>, vector<79x32xbf16>, vector<79x32xbf16>, vector<79x32xbf16>, vector<79x32xbf16>, vector<79x32xbf16> -> vector<79x288xbf16>
    %c1_95 = arith.constant 1 : index
    %c0_96 = arith.constant 0 : index
    %c0_97 = arith.constant 0 : index
    %159 = vector.load %arg3[%c1_95, %c0_96, %c0_97] : memref<3x288x32xbf16, #tpu.memory_space<vmem>>, vector<1x288x32xbf16>
    %160 = vector.shape_cast %159 : vector<1x288x32xbf16> to vector<288x32xbf16>
    %cst_98 = arith.constant dense<0.000000e+00> : vector<79x32xf32>
    %161 = tpu.matmul %158, %160, %cst_98 {dimension_numbers = #tpu.dot_dimension_numbers<[1], [0], [0], [1], [0, 0, 1, 1], [], []>} : vector<79x288xbf16>, vector<288x32xbf16>, vector<79x32xf32> -> vector<79x32xf32>
    %c2_99 = arith.constant 2 : index
    %c0_100 = arith.constant 0 : index
    %c0_101 = arith.constant 0 : index
    %162 = vector.load %arg4[%c2_99, %c0_100, %c0_101] : memref<4x1x32xf32, #tpu.memory_space<vmem>>, vector<1x1x32xf32>
    %163 = vector.shape_cast %162 : vector<1x1x32xf32> to vector<1x32xf32>
    %164 = vector.broadcast %163 : vector<1x32xf32> to vector<79x32xf32>
    %165 = arith.addf %161, %164 : vector<79x32xf32>
    %cst_102 = arith.constant 0.000000e+00 : f32
    %166 = vector.broadcast %cst_102 : f32 to vector<79x32xf32>
    %167 = arith.maximumf %165, %166 : vector<79x32xf32>
    %168 = arith.truncf %167 : vector<79x32xf32> to vector<79x32xbf16>
    %169 = vector.extract_strided_slice %168 {offsets = [0, 0], sizes = [53, 32], strides = [1, 1]} : vector<79x32xbf16> to vector<53x32xbf16>
    %170 = vector.extract_strided_slice %168 {offsets = [1, 0], sizes = [53, 32], strides = [1, 1]} : vector<79x32xbf16> to vector<53x32xbf16>
    %171 = vector.extract_strided_slice %168 {offsets = [2, 0], sizes = [53, 32], strides = [1, 1]} : vector<79x32xbf16> to vector<53x32xbf16>
    %172 = vector.extract_strided_slice %168 {offsets = [12, 0], sizes = [53, 32], strides = [1, 1]} : vector<79x32xbf16> to vector<53x32xbf16>
    %173 = vector.extract_strided_slice %168 {offsets = [13, 0], sizes = [53, 32], strides = [1, 1]} : vector<79x32xbf16> to vector<53x32xbf16>
    %174 = vector.extract_strided_slice %168 {offsets = [14, 0], sizes = [53, 32], strides = [1, 1]} : vector<79x32xbf16> to vector<53x32xbf16>
    %175 = vector.extract_strided_slice %168 {offsets = [24, 0], sizes = [53, 32], strides = [1, 1]} : vector<79x32xbf16> to vector<53x32xbf16>
    %176 = vector.extract_strided_slice %168 {offsets = [25, 0], sizes = [53, 32], strides = [1, 1]} : vector<79x32xbf16> to vector<53x32xbf16>
    %177 = vector.extract_strided_slice %168 {offsets = [26, 0], sizes = [53, 32], strides = [1, 1]} : vector<79x32xbf16> to vector<53x32xbf16>
    %178 = tpu.concatenate %169, %170, %171, %172, %173, %174, %175, %176, %177 in 1 : vector<53x32xbf16>, vector<53x32xbf16>, vector<53x32xbf16>, vector<53x32xbf16>, vector<53x32xbf16>, vector<53x32xbf16>, vector<53x32xbf16>, vector<53x32xbf16>, vector<53x32xbf16> -> vector<53x288xbf16>
    %c2_103 = arith.constant 2 : index
    %c0_104 = arith.constant 0 : index
    %c0_105 = arith.constant 0 : index
    %179 = vector.load %arg3[%c2_103, %c0_104, %c0_105] : memref<3x288x32xbf16, #tpu.memory_space<vmem>>, vector<1x288x32xbf16>
    %180 = vector.shape_cast %179 : vector<1x288x32xbf16> to vector<288x32xbf16>
    %cst_106 = arith.constant dense<0.000000e+00> : vector<53x32xf32>
    %181 = tpu.matmul %178, %180, %cst_106 {dimension_numbers = #tpu.dot_dimension_numbers<[1], [0], [0], [1], [0, 0, 1, 1], [], []>} : vector<53x288xbf16>, vector<288x32xbf16>, vector<53x32xf32> -> vector<53x32xf32>
    %c3_107 = arith.constant 3 : index
    %c0_108 = arith.constant 0 : index
    %c0_109 = arith.constant 0 : index
    %182 = vector.load %arg4[%c3_107, %c0_108, %c0_109] : memref<4x1x32xf32, #tpu.memory_space<vmem>>, vector<1x1x32xf32>
    %183 = vector.shape_cast %182 : vector<1x1x32xf32> to vector<1x32xf32>
    %184 = vector.broadcast %183 : vector<1x32xf32> to vector<53x32xf32>
    %185 = arith.addf %181, %184 : vector<53x32xf32>
    %cst_110 = arith.constant 0.000000e+00 : f32
    %186 = vector.broadcast %cst_110 : f32 to vector<53x32xf32>
    %187 = arith.maximumf %185, %186 : vector<53x32xf32>
    %188 = vector.extract_strided_slice %187 {offsets = [0, 0], sizes = [5, 32], strides = [1, 1]} : vector<53x32xf32> to vector<5x32xf32>
    %189 = vector.extract_strided_slice %187 {offsets = [12, 0], sizes = [5, 32], strides = [1, 1]} : vector<53x32xf32> to vector<5x32xf32>
    %190 = vector.extract_strided_slice %187 {offsets = [24, 0], sizes = [5, 32], strides = [1, 1]} : vector<53x32xf32> to vector<5x32xf32>
    %191 = vector.extract_strided_slice %187 {offsets = [36, 0], sizes = [5, 32], strides = [1, 1]} : vector<53x32xf32> to vector<5x32xf32>
    %192 = vector.extract_strided_slice %187 {offsets = [48, 0], sizes = [5, 32], strides = [1, 1]} : vector<53x32xf32> to vector<5x32xf32>
    %193 = vector.shape_cast %188 : vector<5x32xf32> to vector<1x5x32xf32>
    %194 = vector.shape_cast %189 : vector<5x32xf32> to vector<1x5x32xf32>
    %195 = vector.shape_cast %190 : vector<5x32xf32> to vector<1x5x32xf32>
    %196 = vector.shape_cast %191 : vector<5x32xf32> to vector<1x5x32xf32>
    %197 = vector.shape_cast %192 : vector<5x32xf32> to vector<1x5x32xf32>
    %198 = tpu.concatenate %193, %194, %195, %196, %197 in 0 : vector<1x5x32xf32>, vector<1x5x32xf32>, vector<1x5x32xf32>, vector<1x5x32xf32>, vector<1x5x32xf32> -> vector<5x5x32xf32>
    %c1_111 = arith.constant 1 : index
    %c0_112 = arith.constant 0 : index
    %c0_113 = arith.constant 0 : index
    %c0_114 = arith.constant 0 : index
    %199 = vector.load %arg5[%c1_111, %c0_112, %c0_113, %c0_114] : memref<2x5x5x32xf32, #tpu.memory_space<vmem>>, vector<1x5x5x32xf32>
    %200 = vector.shape_cast %199 : vector<1x5x5x32xf32> to vector<5x5x32xf32>
    %201 = vector.shape_cast %198 : vector<5x5x32xf32> to vector<1x5x5x32xf32>
    tpu.vector_store %arg5[%c1_111, %c0_112, %c0_113, %c0_114], %201 {strides = array<i32>} : memref<2x5x5x32xf32, #tpu.memory_space<vmem>>, vector<1x5x5x32xf32>,
    return
  }
  func.func @transform_0(%arg0: i32) -> (i32, i32, i32) {
    %c0_i32 = arith.constant 0 : i32
    %c0_i32_0 = arith.constant 0 : i32
    %c0_i32_1 = arith.constant 0 : i32
    return %arg0, %c0_i32, %c0_i32_0 : i32, i32, i32
  }
  func.func @transform_1(%arg0: i32) -> (i32, i32) {
    %c0_i32 = arith.constant 0 : i32
    %c0_i32_0 = arith.constant 0 : i32
    %c0_i32_1 = arith.constant 0 : i32
    return %c0_i32, %c0_i32_0 : i32, i32
  }
  func.func @transform_2(%arg0: i32) -> (i32, i32, i32) {
    %c0_i32 = arith.constant 0 : i32
    %c0_i32_0 = arith.constant 0 : i32
    %c0_i32_1 = arith.constant 0 : i32
    %c0_i32_2 = arith.constant 0 : i32
    return %c0_i32, %c0_i32_0, %c0_i32_1 : i32, i32, i32
  }
  func.func @transform_3(%arg0: i32) -> (i32, i32, i32) {
    %c0_i32 = arith.constant 0 : i32
    %c0_i32_0 = arith.constant 0 : i32
    %c0_i32_1 = arith.constant 0 : i32
    %c0_i32_2 = arith.constant 0 : i32
    return %c0_i32, %c0_i32_0, %c0_i32_1 : i32, i32, i32
  }
  func.func @transform_4(%arg0: i32) -> (i32, i32, i32, i32) {
    %c0_i32 = arith.constant 0 : i32
    %c0_i32_0 = arith.constant 0 : i32
    %c0_i32_1 = arith.constant 0 : i32
    %c0_i32_2 = arith.constant 0 : i32
    return %arg0, %c0_i32, %c0_i32_0, %c0_i32_1 : i32, i32, i32, i32
  }
}

</mosaic_0001>

<llo_original>
// kernel: encoder_forward.1
$region0: #{encoder_forward.1}
  #allocation0 [shape = 'u32[]', space=smem, size = 0x4, offset = 0x4, fixed_abs, tag = 'smem constant byte address 0x4 - core index']
  #allocation1 [shape = 'u32[144,128]{1,0:T(1,128)}', space=vmem, size = 0x12000, scoped, tag = 'internal scratch']
  %s0 = inlined_call_operand.vmem [shape: bf16[4,144,16], index: 0, kind: input, shape index: {}]
  %s1 = inlined_call_operand.vmem [shape: bf16[36,32], index: 1, kind: input, shape index: {}]
  %s2 = inlined_call_operand.vmem [shape: bf16[3,288,32], index: 2, kind: input, shape index: {}]
  %s3 = inlined_call_operand.vmem [shape: f32[4,1,32], index: 3, kind: input, shape index: {}]
  %s4 = inlined_call_operand.vmem [shape: f32[4,5,5,32], index: 4, kind: output, shape index: {}]
  %s5 = sld [smem:[#allocation0]]
  $region49: #{encoder_forward.1} parent=0
    _
  %s7 = ssub.s32 1, %s5
  %s8 = scalar_select 0, %s7, %s5
  loop: start=0, step=1, limit=4
  $region2: #{encoder_forward.1} parent=0 // loop_pre_header
    _
  $region3: #{encoder_forward.1} parent=0 // loop_header
    %s10 = sphi 0, %s14
    %p11 = scmp.ge.s32.totalorder %s10, 4
    %s20 = sphi 0, %s22
    %s23 = sphi 0, %s20
    %s24 = sphi 0, %s23
    %s40 = sphi 0, %s24
    %s44 = sphi 0, %s44
    %s46 = sphi 0, %s44
    %s47 = sphi 0, %s46
    %s61 = sphi 0, %s47
    %s65 = sphi 0, %s65
    %s67 = sphi 0, %s65
    %s68 = sphi 0, %s67
    %s82 = sphi 0, %s68
    %s86 = sphi 0, %s86
    %s88 = sphi 0, %s86
    %s89 = sphi 0, %s88
    %s103 = sphi 0, %s89
    %s109 = sphi 0, %s111
    %s112 = sphi 0, %s109
    %s113 = sphi 0, %s112
    %s129 = sphi 0, %s113
  $region4: #{encoder_forward.1} parent=0 // loop_header_branch
    %13 = sbr.rel (%p11) target = $region8
  $region5: #{encoder_forward.1} parent=0 // loop_body
    %s15 = ssub.s32 %s10, 1
    %s16 = ssub.s32 %s10, 2
    %s17 = sadd.s32 %s10, 1
    %s18 = ssub.s32 %s10, %s17
    %p19 = scmp.eq.s32.totalorder %s18, 0
    %s21 = sadd.s32 %s20, 1
    %s22 = scalar_select %p19, %s20, %s21
    %p25 = pneg %p19
    %p26 = scmp.eq.s32.totalorder %s10, 1
    %p27 = por %p25, %p26
    %p28 = scmp.ne.s32.totalorder %s20, %s23
    %p29 = scmp.eq.s32.totalorder %s10, 0
    %p30 = por %p28, %p29
    %p31 = scmp.ne.s32.totalorder %s20, %s23
    %p32 = scmp.eq.s32.totalorder %s15, 1
    %p33 = por %p31, %p32
    %p34 = scmp.ne.s32.totalorder %s23, %s24
    %p35 = scmp.eq.s32.totalorder %s15, 0
    %p36 = por %p34, %p35
    %p37 = scmp.ne.s32.totalorder %s23, %s24
    %p38 = scmp.eq.s32.totalorder %s16, 1
    %p39 = por %p37, %p38
    %p41 = scmp.ne.s32.totalorder %s24, %s40
    %p42 = scmp.eq.s32.totalorder %s16, 0
    %p43 = por %p41, %p42
    %s45 = sadd.s32 %s44, 1
    %p48 = scmp.eq.s32.totalorder %s10, 1
    %p49 = scmp.ne.s32.totalorder %s44, %s46
    %p50 = scmp.eq.s32.totalorder %s10, 0
    %p51 = por %p49, %p50
    %p52 = scmp.ne.s32.totalorder %s44, %s46
    %p53 = scmp.eq.s32.totalorder %s15, 1
    %p54 = por %p52, %p53
    %p55 = scmp.ne.s32.totalorder %s46, %s47
    %p56 = scmp.eq.s32.totalorder %s15, 0
    %p57 = por %p55, %p56
    %p58 = scmp.ne.s32.totalorder %s46, %s47
    %p59 = scmp.eq.s32.totalorder %s16, 1
    %p60 = por %p58, %p59
    %p62 = scmp.ne.s32.totalorder %s47, %s61
    %p63 = scmp.eq.s32.totalorder %s16, 0
    %p64 = por %p62, %p63
    %s66 = sadd.s32 %s65, 1
    %p69 = scmp.eq.s32.totalorder %s10, 1
    %p70 = scmp.ne.s32.totalorder %s65, %s67
    %p71 = scmp.eq.s32.totalorder %s10, 0
    %p72 = por %p70, %p71
    %p73 = scmp.ne.s32.totalorder %s65, %s67
    %p74 = scmp.eq.s32.totalorder %s15, 1
    %p75 = por %p73, %p74
    %p76 = scmp.ne.s32.totalorder %s67, %s68
    %p77 = scmp.eq.s32.totalorder %s15, 0
    %p78 = por %p76, %p77
    %p79 = scmp.ne.s32.totalorder %s67, %s68
    %p80 = scmp.eq.s32.totalorder %s16, 1
    %p81 = por %p79, %p80
    %p83 = scmp.ne.s32.totalorder %s68, %s82
    %p84 = scmp.eq.s32.totalorder %s16, 0
    %p85 = por %p83, %p84
    %s87 = sadd.s32 %s86, 1
    %p90 = scmp.eq.s32.totalorder %s10, 1
    %p91 = scmp.ne.s32.totalorder %s86, %s88
    %p92 = scmp.eq.s32.totalorder %s10, 0
    %p93 = por %p91, %p92
    %p94 = scmp.ne.s32.totalorder %s86, %s88
    %p95 = scmp.eq.s32.totalorder %s15, 1
    %p96 = por %p94, %p95
    %p97 = scmp.ne.s32.totalorder %s88, %s89
    %p98 = scmp.eq.s32.totalorder %s15, 0
    %p99 = por %p97, %p98
    %p100 = scmp.ne.s32.totalorder %s88, %s89
    %p101 = scmp.eq.s32.totalorder %s16, 1
    %p102 = por %p100, %p101
    %p104 = scmp.ne.s32.totalorder %s89, %s103
    %p105 = scmp.eq.s32.totalorder %s16, 0
    %p106 = por %p104, %p105
    %s107 = ssub.s32 %s10, %s17
    %p108 = scmp.eq.s32.totalorder %s107, 0
    %s110 = sadd.s32 %s109, 1
    %s111 = scalar_select %p108, %s109, %s110
    %p114 = pneg %p108
    %p115 = scmp.eq.s32.totalorder %s10, 1
    %p116 = por %p114, %p115
    %p117 = scmp.ne.s32.totalorder %s109, %s112
    %p118 = scmp.eq.s32.totalorder %s10, 0
    %p119 = por %p117, %p118
    %p120 = scmp.ne.s32.totalorder %s109, %s112
    %p121 = scmp.eq.s32.totalorder %s15, 1
    %p122 = por %p120, %p121
    %p123 = scmp.ne.s32.totalorder %s112, %s113
    %p124 = scmp.eq.s32.totalorder %s15, 0
    %p125 = por %p123, %p124
    %p126 = scmp.ne.s32.totalorder %s112, %s113
    %p127 = scmp.eq.s32.totalorder %s16, 1
    %p128 = por %p126, %p127
    %p130 = scmp.ne.s32.totalorder %s113, %s129
    %p131 = scmp.eq.s32.totalorder %s16, 0
    %p132 = por %p130, %p131
    %p133 = scmp.le.s32.totalorder 1, %s10
    %p134 = scmp.lt.s32.totalorder %s10, 3
    %p135 = pnand %p133, %p134
    %p136 = pneg %p135
    // Predicated region
    $region9: #{encoder_forward.1} parent=5 // pred_check
      _
    $region10: #{encoder_forward.1} parent=5 // pred_check_branch
      %138 = sbr.rel (%p135) target = $region12
    $region11: #{encoder_forward.1} parent=5 // pred_region
      %s139 = ssub.s32 %s10, 1
      // Predicated region
      $region13: #{encoder_forward.1} parent=11 // pred_check
        %p140 = pneg %p57
      $region14: #{encoder_forward.1} parent=11 // pred_check_branch
        %142 = sbr.rel (%p140) target = $region16
      $region15: #{encoder_forward.1} parent=11 // pred_region
        _
      $region16: #{encoder_forward.1} parent=11 // pred_fallthru
        _
      // Predicated region
      $region17: #{encoder_forward.1} parent=11 // pred_check
        %p143 = pneg %p78
      $region18: #{encoder_forward.1} parent=11 // pred_check_branch
        %145 = sbr.rel (%p143) target = $region20
      $region19: #{encoder_forward.1} parent=11 // pred_region
        _
      $region20: #{encoder_forward.1} parent=11 // pred_fallthru
        _
      // Predicated region
      $region21: #{encoder_forward.1} parent=11 // pred_check
        %p146 = pneg %p99
      $region22: #{encoder_forward.1} parent=11 // pred_check_branch
        %148 = sbr.rel (%p146) target = $region24
      $region23: #{encoder_forward.1} parent=11 // pred_region
        _
      $region24: #{encoder_forward.1} parent=11 // pred_fallthru
        _
    $region12: #{encoder_forward.1} parent=5 // pred_fallthru
      _
    %p149 = scmp.lt.s32.totalorder %s10, 2
    // Predicated region
    $region25: #{encoder_forward.1} parent=5 // pred_check
      %p150 = pneg %p149
    $region26: #{encoder_forward.1} parent=5 // pred_check_branch
      %152 = sbr.rel (%p150) target = $region28
    $region27: #{encoder_forward.1} parent=5 // pred_region
      // Predicated region
      $region29: #{encoder_forward.1} parent=27 // pred_check
        %p153 = pneg %p30
      $region30: #{encoder_forward.1} parent=27 // pred_check_branch
        %155 = sbr.rel (%p153) target = $region32
      $region31: #{encoder_forward.1} parent=27 // pred_region
        %s156 = smul.u32 2, %s10
        %p157 = scmp.lt.s32.totalorder %s156, 3
        %s158 = scalar_select %p157, %s156, 3
        %s159 = smul.addr %s158, 18
        %s160 = smul.addr %s159, 4
        %s161 = scalar_lea.vmem %s0, %s160
        %s162 = smul.u32 2, %s10
      $region32: #{encoder_forward.1} parent=27 // pred_fallthru
        _
    $region28: #{encoder_forward.1} parent=5 // pred_fallthru
      _
    %p163 = scmp.le.s32.totalorder 1, %s10
    %p164 = scmp.lt.s32.totalorder %s10, 3
    %p165 = pnand %p163, %p164
    %p166 = pneg %p165
    // Predicated region
    $region33: #{encoder_forward.1} parent=5 // pred_check
      _
    $region34: #{encoder_forward.1} parent=5 // pred_check_branch
      %168 = sbr.rel (%p165) target = $region36
    $region35: #{encoder_forward.1} parent=5 // pred_region
      %s169 = ssub.s32 %s10, 1
      %s170 = smul.u32 2, %s15
      %p171 = scmp.lt.s32.totalorder %s170, 3
      %s172 = scalar_select %p171, %s170, 3
      %s173 = smul.addr %s172, 18
      %s174 = smul.addr %s173, 4
      %s175 = scalar_lea.vmem %s0, %s174
      %p176 = pneg %p36
      %p177 = pneg %p33
      %p178 = pneg %p57
      %p179 = pneg %p54
      %p180 = pneg %p78
      %p181 = pneg %p75
      %p182 = pneg %p99
      %p183 = pneg %p96
      %p184 = pneg %p125
      %p185 = pneg %p122
      %s186 = smul.u32 2, %s15
      %p187 = scmp.lt.s32.totalorder %s186, 3
      %s188 = scalar_select %p187, %s186, 3
      %s189 = smul.addr %s188, 5
      %s190 = smul.addr %s189, 8
      %s191 = scalar_lea.vmem %s4, %s190
      %s192 = smul.u32 2, %s15
      %p193 = scmp.lt.s32.totalorder %s192, 3
      %s194 = scalar_select %p193, %s192, 3
      %s195 = smul.addr %s194, 18
      %s196 = smul.addr %s195, 4
      %s197 = scalar_lea.vmem %s0, %s196
      %s198 = smul.u32 2, %s15
      %s199 = smul.u32 2, %s15
      %p200 = scmp.lt.s32.totalorder %s199, 3
      %s201 = scalar_select %p200, %s199, 3
      %s202 = smul.addr %s201, 5
      %s203 = smul.addr %s202, 8
      %s204 = scalar_lea.vmem %s4, %s203
      %s205 = smul.u32 2, %s15
      %v207 = vld [vmem:[%s197] sm:$0xf]
      %v208 = vld [vmem:[%s197 + $0x4] sm:$0xf]
      %v209 = vld [vmem:[%s197 + $0x8] sm:$0xf]
      %v210 = vld [vmem:[%s197 + $0xc] sm:$0xf]
      %v211 = vld [vmem:[%s197 + $0x10] sm:$0xf]
      %v212 = vld [vmem:[%s197 + $0x14] sm:$0xf]
      %v213 = vld [vmem:[%s197 + $0x18] sm:$0xf]
      %v214 = vld [vmem:[%s197 + $0x1c] sm:$0xf]
      %v215 = vld [vmem:[%s197 + $0x20] sm:$0xf]
      %v216 = vld [vmem:[%s197 + $0x24] sm:$0xf]
      %v217 = vld [vmem:[%s197 + $0x28] sm:$0xf]
      %v218 = vld [vmem:[%s197 + $0x2c] sm:$0xf]
      %v219 = vld [vmem:[%s197 + $0x30] sm:$0xf]
      %v220 = vld [vmem:[%s197 + $0x34] sm:$0xf]
      %v221 = vld [vmem:[%s197 + $0x38] sm:$0xf]
      %v222 = vld [vmem:[%s197 + $0x3c] sm:$0xf]
      %v223 = vld [vmem:[%s197 + $0x40] sm:$0x3]
      %v224 = vld [vmem:[%s197 + $0x4] sm:$0xc]
      %v225 = vld [vmem:[%s197 + $0x40] sm:$0xf]
      %v226 = vld [vmem:[%s197 + $0x44] sm:$0xf]
      %v244 = vunpack.c.l.b16 %v207
      %v245 = vunpack.c.l.b16 %v208
      %v246 = vunpack.c.l.b16 %v209
      %v247 = vunpack.c.l.b16 %v210
      %v248 = vunpack.c.l.b16 %v211
      %v249 = vunpack.c.l.b16 %v212
      %v250 = vunpack.c.l.b16 %v213
      %v251 = vunpack.c.l.b16 %v214
      %v252 = vunpack.c.l.b16 %v215
      %v253 = vunpack.c.l.b16 %v216
      %v254 = vunpack.c.l.b16 %v217
      %v255 = vunpack.c.l.b16 %v218
      %v256 = vunpack.c.l.b16 %v219
      %v257 = vunpack.c.l.b16 %v220
      %v258 = vunpack.c.l.b16 %v221
      %v259 = vunpack.c.l.b16 %v222
      %v260 = vunpack.c.l.b16 %v223
      %v261 = vpack.c.b16 %v245, %v244
      %v262 = vpack.c.b16 %v247, %v246
      %v263 = vpack.c.b16 %v249, %v248
      %v264 = vpack.c.b16 %v251, %v250
      %v265 = vpack.c.b16 %v253, %v252
      %v266 = vpack.c.b16 %v255, %v254
      %v267 = vpack.c.b16 %v257, %v256
      %v268 = vpack.c.b16 %v259, %v258
      %v269 = vpack.c.b16 %v260, %v260
      %vm270 = vsmask.f32 7424
      %v272 = vshrl.u32 %v261, 16
      %v274 = vshll.u32 %v261, 16
      %v276 = vrot.slane %v274, 1
      %v277 = vor.u32 %v272, %v276
      %v279 = vshll.u32 %v262, 16
      %v281 = vrot.slane %v279, 1
      %v282 = vsel %vm270, %v277, %v281
      %v283 = vshrl.u32 %v262, 16
      %v285 = vor.u32 %v283, %v281
      %v287 = vshll.u32 %v263, 16
      %v289 = vrot.slane %v287, 1
      %v290 = vsel %vm270, %v285, %v289
      %v291 = vshrl.u32 %v263, 16
      %v293 = vor.u32 %v291, %v289
      %v295 = vshll.u32 %v264, 16
      %v297 = vrot.slane %v295, 1
      %v298 = vsel %vm270, %v293, %v297
      %v299 = vshrl.u32 %v264, 16
      %v301 = vor.u32 %v299, %v297
      %v303 = vshll.u32 %v265, 16
      %v305 = vrot.slane %v303, 1
      %v306 = vsel %vm270, %v301, %v305
      %v307 = vshrl.u32 %v265, 16
      %v309 = vor.u32 %v307, %v305
      %v311 = vshll.u32 %v266, 16
      %v313 = vrot.slane %v311, 1
      %v314 = vsel %vm270, %v309, %v313
      %v315 = vshrl.u32 %v266, 16
      %v317 = vor.u32 %v315, %v313
      %v319 = vshll.u32 %v267, 16
      %v321 = vrot.slane %v319, 1
      %v322 = vsel %vm270, %v317, %v321
      %v323 = vshrl.u32 %v267, 16
      %v325 = vor.u32 %v323, %v321
      %v327 = vshll.u32 %v268, 16
      %v329 = vrot.slane %v327, 1
      %v330 = vsel %vm270, %v325, %v329
      %v331 = vshrl.u32 %v268, 16
      %v333 = vor.u32 %v331, %v329
      %v335 = vshll.u32 %v269, 16
      %v337 = vrot.slane %v335, 1
      %v338 = vsel %vm270, %v333, %v337
      %v339 = vshrl.u32 %v269, 16
      %v341 = vor.u32 %v339, %v337
      %342 = vrot.lane.b32.xlu0 %v282, 8
      %v343 = vpop.permute.xlu0 %342
      %344 = vrot.lane.b32.xlu0 %v290, 8
      %v345 = vpop.permute.xlu0 %344
      %346 = vrot.lane.b32.xlu0 %v298, 8
      %v347 = vpop.permute.xlu0 %346
      %348 = vrot.lane.b32.xlu0 %v306, 8
      %v349 = vpop.permute.xlu0 %348
      %350 = vrot.lane.b32.xlu0 %v314, 8
      %v351 = vpop.permute.xlu0 %350
      %352 = vrot.lane.b32.xlu0 %v322, 8
      %v353 = vpop.permute.xlu0 %352
      %354 = vrot.lane.b32.xlu0 %v330, 8
      %v355 = vpop.permute.xlu0 %354
      %356 = vrot.lane.b32.xlu0 %v338, 8
      %v357 = vpop.permute.xlu0 %356
      %358 = vrot.lane.b32.xlu0 %v341, 8
      %v359 = vpop.permute.xlu0 %358
      %360 = vrot.lane.b32.xlu0 %v261, 4
      %v361 = vpop.permute.xlu0 %360
      %362 = vrot.lane.b32.xlu0 %v262, 4
      %v363 = vpop.permute.xlu0 %362
      %364 = vrot.lane.b32.xlu0 %v263, 4
      %v365 = vpop.permute.xlu0 %364
      %366 = vrot.lane.b32.xlu0 %v264, 4
      %v367 = vpop.permute.xlu0 %366
      %368 = vrot.lane.b32.xlu0 %v265, 4
      %v369 = vpop.permute.xlu0 %368
      %370 = vrot.lane.b32.xlu0 %v266, 4
      %v371 = vpop.permute.xlu0 %370
      %372 = vrot.lane.b32.xlu0 %v267, 4
      %v373 = vpop.permute.xlu0 %372
      %374 = vrot.lane.b32.xlu0 %v268, 4
      %v375 = vpop.permute.xlu0 %374
      %376 = vrot.lane.b32.xlu0 %v269, 4
      %v377 = vpop.permute.xlu0 %376
      %378 = vrot.lane.b32.xlu0 %v282, 12
      %v379 = vpop.permute.xlu0 %378
      %380 = vrot.lane.b32.xlu0 %v290, 12
      %v381 = vpop.permute.xlu0 %380
      %382 = vrot.lane.b32.xlu0 %v298, 12
      %v383 = vpop.permute.xlu0 %382
      %384 = vrot.lane.b32.xlu0 %v306, 12
      %v385 = vpop.permute.xlu0 %384
      %386 = vrot.lane.b32.xlu0 %v314, 12
      %v387 = vpop.permute.xlu0 %386
      %388 = vrot.lane.b32.xlu0 %v322, 12
      %v389 = vpop.permute.xlu0 %388
      %390 = vrot.lane.b32.xlu0 %v330, 12
      %v391 = vpop.permute.xlu0 %390
      %392 = vrot.lane.b32.xlu0 %v338, 12
      %v393 = vpop.permute.xlu0 %392
      %394 = vrot.lane.b32.xlu0 %v341, 12
      %v395 = vpop.permute.xlu0 %394
      %v399 = vunpack.c.l.b16 %v224
      %v400 = vunpack.c.l.b16 %v225
      %v401 = vunpack.c.l.b16 %v226
      %v402 = vpack.c.b16 %v246, %v399
      %v403 = vpack.c.b16 %v248, %v247
      %v404 = vpack.c.b16 %v250, %v249
      %v405 = vpack.c.b16 %v252, %v251
      %v406 = vpack.c.b16 %v254, %v253
      %v407 = vpack.c.b16 %v256, %v255
      %v408 = vpack.c.b16 %v258, %v257
      %v409 = vpack.c.b16 %v400, %v259
      %v410 = vpack.c.b16 %v401, %v401
      %vm411 = vcmask 1045504
      %v412 = vrot.slane %v402, 2
      %v413 = vrot.slane %v403, 2
      %v414 = vsel %vm411, %v412, %v413
      %v415 = vrot.slane %v404, 2
      %v416 = vsel %vm411, %v413, %v415
      %v417 = vrot.slane %v405, 2
      %v418 = vsel %vm411, %v415, %v417
      %v419 = vrot.slane %v406, 2
      %v420 = vsel %vm411, %v417, %v419
      %v421 = vrot.slane %v407, 2
      %v422 = vsel %vm411, %v419, %v421
      %v423 = vrot.slane %v408, 2
      %v424 = vsel %vm411, %v421, %v423
      %v425 = vrot.slane %v409, 2
      %v426 = vsel %vm411, %v423, %v425
      %v427 = vrot.slane %v410, 2
      %v428 = vsel %vm411, %v425, %v427
      %429 = vrot.lane.b32.xlu0 %v414, 24
      %v430 = vpop.permute.xlu0 %429
      %431 = vrot.lane.b32.xlu0 %v416, 24
      %v432 = vpop.permute.xlu0 %431
      %433 = vrot.lane.b32.xlu0 %v418, 24
      %v434 = vpop.permute.xlu0 %433
      %435 = vrot.lane.b32.xlu0 %v420, 24
      %v436 = vpop.permute.xlu0 %435
      %437 = vrot.lane.b32.xlu0 %v422, 24
      %v438 = vpop.permute.xlu0 %437
      %439 = vrot.lane.b32.xlu0 %v424, 24
      %v440 = vpop.permute.xlu0 %439
      %441 = vrot.lane.b32.xlu0 %v426, 24
      %v442 = vpop.permute.xlu0 %441
      %443 = vrot.lane.b32.xlu0 %v428, 24
      %v444 = vpop.permute.xlu0 %443
      %445 = vrot.lane.b32.xlu0 %v427, 24
      %v446 = vpop.permute.xlu0 %445
      %vm447 = vsmask.f32 5376
      %v449 = vshrl.u32 %v402, 16
      %v451 = vrot.slane %v449, 2
      %v452 = vshll.u32 %v402, 16
      %v454 = vrot.slane %v452, 3
      %v455 = vor.u32 %v451, %v454
      %v457 = vshrl.u32 %v403, 16
      %v459 = vrot.slane %v457, 2
      %v460 = vshll.u32 %v403, 16
      %v462 = vrot.slane %v460, 3
      %v463 = vor.u32 %v459, %v462
      %v464 = vsel %vm447, %v455, %v463
      %v466 = vshrl.u32 %v404, 16
      %v468 = vrot.slane %v466, 2
      %v469 = vshll.u32 %v404, 16
      %v471 = vrot.slane %v469, 3
      %v472 = vor.u32 %v468, %v471
      %v473 = vsel %vm447, %v463, %v472
      %v475 = vshrl.u32 %v405, 16
      %v477 = vrot.slane %v475, 2
      %v478 = vshll.u32 %v405, 16
      %v480 = vrot.slane %v478, 3
      %v481 = vor.u32 %v477, %v480
      %v482 = vsel %vm447, %v472, %v481
      %v484 = vshrl.u32 %v406, 16
      %v486 = vrot.slane %v484, 2
      %v487 = vshll.u32 %v406, 16
      %v489 = vrot.slane %v487, 3
      %v490 = vor.u32 %v486, %v489
      %v491 = vsel %vm447, %v481, %v490
      %v493 = vshrl.u32 %v407, 16
      %v495 = vrot.slane %v493, 2
      %v496 = vshll.u32 %v407, 16
      %v498 = vrot.slane %v496, 3
      %v499 = vor.u32 %v495, %v498
      %v500 = vsel %vm447, %v490, %v499
      %v502 = vshrl.u32 %v408, 16
      %v504 = vrot.slane %v502, 2
      %v505 = vshll.u32 %v408, 16
      %v507 = vrot.slane %v505, 3
      %v508 = vor.u32 %v504, %v507
      %v509 = vsel %vm447, %v499, %v508
      %v511 = vshrl.u32 %v409, 16
      %v513 = vrot.slane %v511, 2
      %v514 = vshll.u32 %v409, 16
      %v516 = vrot.slane %v514, 3
      %v517 = vor.u32 %v513, %v516
      %v518 = vsel %vm447, %v508, %v517
      %v520 = vshrl.u32 %v410, 16
      %v522 = vrot.slane %v520, 2
      %v523 = vshll.u32 %v410, 16
      %v525 = vrot.slane %v523, 3
      %v526 = vor.u32 %v522, %v525
      %v527 = vsel %vm447, %v517, %v526
      %528 = vrot.lane.b32.xlu0 %v464, 32
      %v529 = vpop.permute.xlu0 %528
      %530 = vrot.lane.b32.xlu0 %v473, 32
      %v531 = vpop.permute.xlu0 %530
      %532 = vrot.lane.b32.xlu0 %v482, 32
      %v533 = vpop.permute.xlu0 %532
      %534 = vrot.lane.b32.xlu0 %v491, 32
      %v535 = vpop.permute.xlu0 %534
      %536 = vrot.lane.b32.xlu0 %v500, 32
      %v537 = vpop.permute.xlu0 %536
      %538 = vrot.lane.b32.xlu0 %v509, 32
      %v539 = vpop.permute.xlu0 %538
      %540 = vrot.lane.b32.xlu0 %v518, 32
      %v541 = vpop.permute.xlu0 %540
      %542 = vrot.lane.b32.xlu0 %v527, 32
      %v543 = vpop.permute.xlu0 %542
      %544 = vrot.lane.b32.xlu0 %v526, 32
      %v545 = vpop.permute.xlu0 %544
      %vm546 = vcmask 64512
      %v548 = vsel %vm546, %v261, %v343
      %v550 = vsel %vm546, %v262, %v345
      %v552 = vsel %vm546, %v263, %v347
      %v554 = vsel %vm546, %v264, %v349
      %v556 = vsel %vm546, %v265, %v351
      %v558 = vsel %vm546, %v266, %v353
      %v560 = vsel %vm546, %v267, %v355
      %v562 = vsel %vm546, %v268, %v357
      %v564 = vsel %vm546, %v269, %v359
      %vm565 = vcmask 97280
      %v567 = vsel %vm565, %v548, %v361
      %v569 = vsel %vm565, %v550, %v363
      %v571 = vsel %vm565, %v552, %v365
      %v573 = vsel %vm565, %v554, %v367
      %v575 = vsel %vm565, %v556, %v369
      %v577 = vsel %vm565, %v558, %v371
      %v579 = vsel %vm565, %v560, %v373
      %v581 = vsel %vm565, %v562, %v375
      %v583 = vsel %vm565, %v564, %v377
      %vm584 = vcmask 130048
      %v585 = vsel %vm584, %v567, %v361
      %v586 = vsel %vm584, %v569, %v363
      %v587 = vsel %vm584, %v571, %v365
      %v588 = vsel %vm584, %v573, %v367
      %v589 = vsel %vm584, %v575, %v369
      %v590 = vsel %vm584, %v577, %v371
      %v591 = vsel %vm584, %v579, %v373
      %v592 = vsel %vm584, %v581, %v375
      %v593 = vsel %vm584, %v583, %v377
      %vm594 = vcmask 162816
      %v596 = vsel %vm594, %v585, %v379
      %v598 = vsel %vm594, %v586, %v381
      %v600 = vsel %vm594, %v587, %v383
      %v602 = vsel %vm594, %v588, %v385
      %v604 = vsel %vm594, %v589, %v387
      %v606 = vsel %vm594, %v590, %v389
      %v608 = vsel %vm594, %v591, %v391
      %v610 = vsel %vm594, %v592, %v393
      %v612 = vsel %vm594, %v593, %v395
      %vm613 = vcmask 195584
      %v615 = vsel %vm613, %v596, %v430
      %v617 = vsel %vm613, %v598, %v432
      %v619 = vsel %vm613, %v600, %v434
      %v621 = vsel %vm613, %v602, %v436
      %v623 = vsel %vm613, %v604, %v438
      %v625 = vsel %vm613, %v606, %v440
      %v627 = vsel %vm613, %v608, %v442
      %v629 = vsel %vm613, %v610, %v444
      %v631 = vsel %vm613, %v612, %v446
      %vm632 = vcmask 228352
      %v633 = vsel %vm632, %v615, %v430
      %v634 = vsel %vm632, %v617, %v432
      %v635 = vsel %vm632, %v619, %v434
      %v636 = vsel %vm632, %v621, %v436
      %v637 = vsel %vm632, %v623, %v438
      %v638 = vsel %vm632, %v625, %v440
      %v639 = vsel %vm632, %v627, %v442
      %v640 = vsel %vm632, %v629, %v444
      %v641 = vsel %vm632, %v631, %v446
      %vm642 = vcmask 261120
      %v644 = vsel %vm642, %v633, %v529
      %v646 = vsel %vm642, %v634, %v531
      %v648 = vsel %vm642, %v635, %v533
      %v650 = vsel %vm642, %v636, %v535
      %v652 = vsel %vm642, %v637, %v537
      %v654 = vsel %vm642, %v638, %v539
      %v656 = vsel %vm642, %v639, %v541
      %v658 = vsel %vm642, %v640, %v543
      %v660 = vsel %vm642, %v641, %v545
      %v661 = vld [vmem:[%s1] sm:$0xf]
      %v662 = vld [vmem:[%s1 + $0x4] sm:$0xf]
      %v663 = vld [vmem:[%s1 + $0x8] sm:$0xf]
      %v664 = vld [vmem:[%s1 + $0xc] sm:$0xf]
      %v665 = vld [vmem:[%s1 + $0x10] sm:$0x3]
      %v666 = vld [vmem:[%s3] sm:$0x1]
      %v668 = vlaneseq
      %v669 = vshrl.u32 %v668, 7
      %v670 = vsub.s32 0, %v669
      %v671 = vrot.slane %v666, %v670
      %v678 = vunpack.c.l.b16 %v661
      %v679 = vunpack.c.l.b16 %v662
      %v680 = vunpack.c.l.b16 %v663
      %v681 = vunpack.c.l.b16 %v664
      %v682 = vunpack.c.l.b16 %v665
      %v683 = vpack.c.b16 %v679, %v678
      %v684 = vpack.c.b16 %v681, %v680
      %v685 = vpack.c.b16 %v682, %v682
      %vm688 = vcmask 293888
      %v689 = vsel %vm688, %v644, 0
      %v691 = vsel %vm688, %v646, 0
      %v693 = vsel %vm688, %v648, 0
      %v695 = vsel %vm688, %v650, 0
      %v697 = vsel %vm688, %v652, 0
      %v699 = vsel %vm688, %v654, 0
      %v701 = vsel %vm688, %v656, 0
      %v703 = vsel %vm688, %v658, 0
      %v705 = vsel %vm688, %v660, 0
      %vm707 = vcmask 1041408
      %v709 = vsel %vm707, %v685, 0
      %711 = vmatprep.subr.bf16.mxu0 0
      %712 = vmatpush1.bf16.msra.mxu0 %v683
      %713 = vmatprep.subr.bf16.mxu0 0
      %714 = vmatpush1.bf16.msra.mxu0 %v684
      %715 = vmatprep.subr.bf16.mxu0 0
      %716 = vmatpush1.bf16.msra.mxu0 %v709
      %717 = vmatprep.subr.bf16.mxu0 0
      %718 = vmatpush1.bf16.msra.mxu0 0
      %719 = vmatprep.subr.bf16.mxu0 0
      %720 = vmatpush1.bf16.msra.mxu0 0
      %721 = vmatprep.subr.bf16.mxu0 0
      %722 = vmatpush1.bf16.msra.mxu0 0
      %723 = vmatprep.subr.bf16.mxu0 0
      %724 = vmatpush1.bf16.msra.mxu0 0
      %725 = vmatprep.subr.bf16.mxu0 0
      %726 = vmatpush1.bf16.msra.mxu0 0
      %727 = vmatprep.subr.bf16.mxu0 0
      %728 = vmatpush1.bf16.msra.mxu0 0
      %729 = vmatprep.subr.bf16.mxu0 0
      %730 = vmatpush1.bf16.msra.mxu0 0
      %731 = vmatprep.subr.bf16.mxu0 0
      %732 = vmatpush1.bf16.msra.mxu0 0
      %733 = vmatprep.subr.bf16.mxu0 0
      %734 = vmatpush1.bf16.msra.mxu0 0
      %735 = vmatprep.subr.bf16.mxu0 0
      %736 = vmatpush1.bf16.msra.mxu0 0
      %737 = vmatprep.subr.bf16.mxu0 0
      %738 = vmatpush1.bf16.msra.mxu0 0
      %739 = vmatprep.subr.bf16.mxu0 0
      %740 = vmatpush1.bf16.msra.mxu0 0
      %741 = vmatprep.subr.bf16.mxu0 0
      %742 = vmatpush1.bf16.msra.mxu0 0
      %743 = vmatprep.mubr.bf16.mxu0 0
      %744 = vmatmul.mubr.bf16.gmra.mrb[0].mxu0 %v689
      %v745 = vpop.f32.mrb[0].mxu0
      %v746 = vadd.f32 %v671, %v745
      %v747 = vpop.f32.mrb[0].mxu0
      %v748 = vpop.f32.mrb[0].mxu0
      %v749 = vadd.f32 %v671, %v748
      %v750 = vpop.f32.mrb[0].mxu0
      %751 = vmatprep.mubr.bf16.mxu0 0
      %752 = vmatmul.mubr.bf16.gmra.mrb[0].mxu0 %v691
      %v753 = vpop.f32.mrb[0].mxu0
      %v754 = vadd.f32 %v671, %v753
      %v755 = vpop.f32.mrb[0].mxu0
      %v756 = vpop.f32.mrb[0].mxu0
      %v757 = vadd.f32 %v671, %v756
      %v758 = vpop.f32.mrb[0].mxu0
      %759 = vmatprep.mubr.bf16.mxu0 0
      %760 = vmatmul.mubr.bf16.gmra.mrb[0].mxu0 %v693
      %v761 = vpop.f32.mrb[0].mxu0
      %v762 = vadd.f32 %v671, %v761
      %v763 = vpop.f32.mrb[0].mxu0
      %v764 = vpop.f32.mrb[0].mxu0
      %v765 = vadd.f32 %v671, %v764
      %v766 = vpop.f32.mrb[0].mxu0
      %767 = vmatprep.mubr.bf16.mxu0 0
      %768 = vmatmul.mubr.bf16.gmra.mrb[0].mxu0 %v695
      %v769 = vpop.f32.mrb[0].mxu0
      %v770 = vadd.f32 %v671, %v769
      %v771 = vpop.f32.mrb[0].mxu0
      %v772 = vpop.f32.mrb[0].mxu0
      %v773 = vadd.f32 %v671, %v772
      %v774 = vpop.f32.mrb[0].mxu0
      %775 = vmatprep.mubr.bf16.mxu0 0
      %776 = vmatmul.mubr.bf16.gmra.mrb[0].mxu0 %v697
      %v777 = vpop.f32.mrb[0].mxu0
      %v778 = vadd.f32 %v671, %v777
      %v779 = vpop.f32.mrb[0].mxu0
      %v780 = vpop.f32.mrb[0].mxu0
      %v781 = vadd.f32 %v671, %v780
      %v782 = vpop.f32.mrb[0].mxu0
      %783 = vmatprep.mubr.bf16.mxu0 0
      %784 = vmatmul.mubr.bf16.gmra.mrb[0].mxu0 %v699
      %v785 = vpop.f32.mrb[0].mxu0
      %v786 = vadd.f32 %v671, %v785
      %v787 = vpop.f32.mrb[0].mxu0
      %v788 = vpop.f32.mrb[0].mxu0
      %v789 = vadd.f32 %v671, %v788
      %v790 = vpop.f32.mrb[0].mxu0
      %791 = vmatprep.mubr.bf16.mxu0 0
      %792 = vmatmul.mubr.bf16.gmra.mrb[0].mxu0 %v701
      %v793 = vpop.f32.mrb[0].mxu0
      %v794 = vadd.f32 %v671, %v793
      %v795 = vpop.f32.mrb[0].mxu0
      %v796 = vpop.f32.mrb[0].mxu0
      %v797 = vadd.f32 %v671, %v796
      %v798 = vpop.f32.mrb[0].mxu0
      %799 = vmatprep.mubr.bf16.mxu0 0
      %800 = vmatmul.mubr.bf16.gmra.mrb[0].mxu0 %v703
      %v801 = vpop.f32.mrb[0].mxu0
      %v802 = vadd.f32 %v671, %v801
      %v803 = vpop.f32.mrb[0].mxu0
      %v804 = vpop.f32.mrb[0].mxu0
      %v805 = vadd.f32 %v671, %v804
      %v806 = vpop.f32.mrb[0].mxu0
      %807 = vmatprep.mubr.bf16.mxu0 0
      %808 = vmatmul.mubr.bf16.gmra.mrb[0].mxu0 %v705
      %v809 = vpop.f32.mrb[0].mxu0
      %v810 = vadd.f32 %v671, %v809
      %v811 = vpop.f32.mrb[0].mxu0
      %v812 = vpop.f32.mrb[0].mxu0
      %v813 = vpop.f32.mrb[0].mxu0
      %814 = vdwg.mxu0
      %v815 = vmax.f32 %v746, 0.0
      %v816 = vmax.f32 %v749, 0.0
      %v817 = vmax.f32 %v754, 0.0
      %v818 = vmax.f32 %v757, 0.0
      %v819 = vmax.f32 %v762, 0.0
      %v820 = vmax.f32 %v765, 0.0
      %v821 = vmax.f32 %v770, 0.0
      %v822 = vmax.f32 %v773, 0.0
      %v823 = vmax.f32 %v778, 0.0
      %v824 = vmax.f32 %v781, 0.0
      %v825 = vmax.f32 %v786, 0.0
      %v826 = vmax.f32 %v789, 0.0
      %v827 = vmax.f32 %v794, 0.0
      %v828 = vmax.f32 %v797, 0.0
      %v829 = vmax.f32 %v802, 0.0
      %v830 = vmax.f32 %v805, 0.0
      %v831 = vmax.f32 %v810, 0.0
      %v832 = vpack.c.bf16 %v816, %v815
      %v833 = vpack.c.bf16 %v818, %v817
      %v834 = vpack.c.bf16 %v820, %v819
      %v835 = vpack.c.bf16 %v822, %v821
      %v836 = vpack.c.bf16 %v824, %v823
      %v837 = vpack.c.bf16 %v826, %v825
      %v838 = vpack.c.bf16 %v828, %v827
      %v839 = vpack.c.bf16 %v830, %v829
      %v840 = vpack.c.bf16 %v831, %v831
      %v842 = vshrl.u32 %v832, 16
      %v844 = vshll.u32 %v832, 16
      %v846 = vrot.slane %v844, 1
      %v847 = vor.u32 %v842, %v846
      %v849 = vshll.u32 %v833, 16
      %v851 = vrot.slane %v849, 1
      %v852 = vsel %vm270, %v847, %v851
      %v853 = vshrl.u32 %v833, 16
      %v855 = vor.u32 %v853, %v851
      %v857 = vshll.u32 %v834, 16
      %v859 = vrot.slane %v857, 1
      %v860 = vsel %vm270, %v855, %v859
      %v861 = vshrl.u32 %v834, 16
      %v863 = vor.u32 %v861, %v859
      %v865 = vshll.u32 %v835, 16
      %v867 = vrot.slane %v865, 1
      %v868 = vsel %vm270, %v863, %v867
      %v869 = vshrl.u32 %v835, 16
      %v871 = vor.u32 %v869, %v867
      %v873 = vshll.u32 %v836, 16
      %v875 = vrot.slane %v873, 1
      %v876 = vsel %vm270, %v871, %v875
      %v877 = vshrl.u32 %v836, 16
      %v879 = vor.u32 %v877, %v875
      %v881 = vshll.u32 %v837, 16
      %v883 = vrot.slane %v881, 1
      %v884 = vsel %vm270, %v879, %v883
      %v885 = vshrl.u32 %v837, 16
      %v887 = vor.u32 %v885, %v883
      %v889 = vshll.u32 %v838, 16
      %v891 = vrot.slane %v889, 1
      %v892 = vsel %vm270, %v887, %v891
      %v893 = vshrl.u32 %v838, 16
      %v895 = vor.u32 %v893, %v891
      %896 = vrot.lane.b32.xlu0 %v852, 32
      %v897 = vpop.permute.xlu0 %896
      %898 = vrot.lane.b32.xlu0 %v860, 32
      %v899 = vpop.permute.xlu0 %898
      %900 = vrot.lane.b32.xlu0 %v868, 32
      %v901 = vpop.permute.xlu0 %900
      %902 = vrot.lane.b32.xlu0 %v876, 32
      %v903 = vpop.permute.xlu0 %902
      %904 = vrot.lane.b32.xlu0 %v884, 32
      %v905 = vpop.permute.xlu0 %904
      %906 = vrot.lane.b32.xlu0 %v892, 32
      %v907 = vpop.permute.xlu0 %906
      %908 = vrot.lane.b32.xlu0 %v895, 32
      %v909 = vpop.permute.xlu0 %908
      %vm917 = vcmask 1046528
      %v918 = vrot.slane %v832, 1
      %v919 = vrot.slane %v833, 1
      %v920 = vsel %vm917, %v918, %v919
      %v921 = vrot.slane %v834, 1
      %v922 = vsel %vm917, %v919, %v921
      %v923 = vrot.slane %v835, 1
      %v924 = vsel %vm917, %v921, %v923
      %v925 = vrot.slane %v836, 1
      %v926 = vsel %vm917, %v923, %v925
      %v927 = vrot.slane %v837, 1
      %v928 = vsel %vm917, %v925, %v927
      %v929 = vrot.slane %v838, 1
      %v930 = vsel %vm917, %v927, %v929
      %931 = vrot.lane.b32.xlu0 %v920, 64
      %v932 = vpop.permute.xlu0 %931
      %933 = vrot.lane.b32.xlu0 %v922, 64
      %v934 = vpop.permute.xlu0 %933
      %935 = vrot.lane.b32.xlu0 %v924, 64
      %v936 = vpop.permute.xlu0 %935
      %937 = vrot.lane.b32.xlu0 %v926, 64
      %v938 = vpop.permute.xlu0 %937
      %939 = vrot.lane.b32.xlu0 %v928, 64
      %v940 = vpop.permute.xlu0 %939
      %941 = vrot.lane.b32.xlu0 %v930, 64
      %v942 = vpop.permute.xlu0 %941
      %943 = vrot.lane.b32.xlu0 %v929, 64
      %v944 = vpop.permute.xlu0 %943
      %vm946 = vcmask 1041408
      %v947 = vrot.slane %v832, 6
      %v948 = vrot.slane %v833, 6
      %v949 = vsel %vm946, %v947, %v948
      %v950 = vrot.slane %v834, 6
      %v951 = vsel %vm946, %v948, %v950
      %v952 = vrot.slane %v835, 6
      %v953 = vsel %vm946, %v950, %v952
      %v954 = vrot.slane %v836, 6
      %v955 = vsel %vm946, %v952, %v954
      %v956 = vrot.slane %v837, 6
      %v957 = vsel %vm946, %v954, %v956
      %v958 = vrot.slane %v838, 6
      %v959 = vsel %vm946, %v956, %v958
      %v960 = vrot.slane %v839, 6
      %v961 = vsel %vm946, %v958, %v960
      %962 = vrot.lane.b32.xlu0 %v949, 96
      %v963 = vpop.permute.xlu0 %962
      %964 = vrot.lane.b32.xlu0 %v951, 96
      %v965 = vpop.permute.xlu0 %964
      %966 = vrot.lane.b32.xlu0 %v953, 96
      %v967 = vpop.permute.xlu0 %966
      %968 = vrot.lane.b32.xlu0 %v955, 96
      %v969 = vpop.permute.xlu0 %968
      %970 = vrot.lane.b32.xlu0 %v957, 96
      %v971 = vpop.permute.xlu0 %970
      %972 = vrot.lane.b32.xlu0 %v959, 96
      %v973 = vpop.permute.xlu0 %972
      %974 = vrot.lane.b32.xlu0 %v961, 96
      %v975 = vpop.permute.xlu0 %974
      %vm976 = vsmask.f32 1280
      %v977 = vrot.slane %v842, 6
      %v978 = vrot.slane %v844, 7
      %v979 = vor.u32 %v977, %v978
      %v980 = vrot.slane %v853, 6
      %v981 = vrot.slane %v849, 7
      %v982 = vor.u32 %v980, %v981
      %v983 = vsel %vm976, %v979, %v982
      %v984 = vrot.slane %v861, 6
      %v985 = vrot.slane %v857, 7
      %v986 = vor.u32 %v984, %v985
      %v987 = vsel %vm976, %v982, %v986
      %v988 = vrot.slane %v869, 6
      %v989 = vrot.slane %v865, 7
      %v990 = vor.u32 %v988, %v989
      %v991 = vsel %vm976, %v986, %v990
      %v992 = vrot.slane %v877, 6
      %v993 = vrot.slane %v873, 7
      %v994 = vor.u32 %v992, %v993
      %v995 = vsel %vm976, %v990, %v994
      %v996 = vrot.slane %v885, 6
      %v997 = vrot.slane %v881, 7
      %v998 = vor.u32 %v996, %v997
      %v999 = vsel %vm976, %v994, %v998
      %v1000 = vrot.slane %v893, 6
      %v1001 = vrot.slane %v889, 7
      %v1002 = vor.u32 %v1000, %v1001
      %v1003 = vsel %vm976, %v998, %v1002
      %v1005 = vshrl.u32 %v839, 16
      %v1007 = vrot.slane %v1005, 6
      %v1008 = vshll.u32 %v839, 16
      %v1010 = vrot.slane %v1008, 7
      %v1011 = vor.u32 %v1007, %v1010
      %v1012 = vsel %vm976, %v1002, %v1011
      %vm1013 = vcmask 1040384
      %v1014 = vrot.slane %v832, 7
      %v1015 = vrot.slane %v833, 7
      %v1016 = vsel %vm1013, %v1014, %v1015
      %v1017 = vrot.slane %v834, 7
      %v1018 = vsel %vm1013, %v1015, %v1017
      %v1019 = vrot.slane %v835, 7
      %v1020 = vsel %vm1013, %v1017, %v1019
      %v1021 = vrot.slane %v836, 7
      %v1022 = vsel %vm1013, %v1019, %v1021
      %v1023 = vrot.slane %v837, 7
      %v1024 = vsel %vm1013, %v1021, %v1023
      %v1025 = vrot.slane %v838, 7
      %v1026 = vsel %vm1013, %v1023, %v1025
      %v1027 = vrot.slane %v839, 7
      %v1028 = vsel %vm1013, %v1025, %v1027
      %1029 = vrot.lane.b32.xlu0 %v1016, 32
      %v1030 = vpop.permute.xlu0 %1029
      %1031 = vrot.lane.b32.xlu0 %v1018, 32
      %v1032 = vpop.permute.xlu0 %1031
      %1033 = vrot.lane.b32.xlu0 %v1020, 32
      %v1034 = vpop.permute.xlu0 %1033
      %1035 = vrot.lane.b32.xlu0 %v1022, 32
      %v1036 = vpop.permute.xlu0 %1035
      %1037 = vrot.lane.b32.xlu0 %v1024, 32
      %v1038 = vpop.permute.xlu0 %1037
      %1039 = vrot.lane.b32.xlu0 %v1026, 32
      %v1040 = vpop.permute.xlu0 %1039
      %1041 = vrot.lane.b32.xlu0 %v1028, 32
      %v1042 = vpop.permute.xlu0 %1041
      %vm1044 = vcmask 1043456
      %v1045 = vrot.slane %v833, 4
      %v1046 = vrot.slane %v834, 4
      %v1047 = vsel %vm1044, %v1045, %v1046
      %v1048 = vrot.slane %v835, 4
      %v1049 = vsel %vm1044, %v1046, %v1048
      %v1050 = vrot.slane %v836, 4
      %v1051 = vsel %vm1044, %v1048, %v1050
      %v1052 = vrot.slane %v837, 4
      %v1053 = vsel %vm1044, %v1050, %v1052
      %v1054 = vrot.slane %v838, 4
      %v1055 = vsel %vm1044, %v1052, %v1054
      %v1056 = vrot.slane %v839, 4
      %v1057 = vsel %vm1044, %v1054, %v1056
      %v1058 = vrot.slane %v840, 4
      %v1059 = vsel %vm1044, %v1056, %v1058
      %1060 = vrot.lane.b32.xlu0 %v1047, 64
      %v1061 = vpop.permute.xlu0 %1060
      %1062 = vrot.lane.b32.xlu0 %v1049, 64
      %v1063 = vpop.permute.xlu0 %1062
      %1064 = vrot.lane.b32.xlu0 %v1051, 64
      %v1065 = vpop.permute.xlu0 %1064
      %1066 = vrot.lane.b32.xlu0 %v1053, 64
      %v1067 = vpop.permute.xlu0 %1066
      %1068 = vrot.lane.b32.xlu0 %v1055, 64
      %v1069 = vpop.permute.xlu0 %1068
      %1070 = vrot.lane.b32.xlu0 %v1057, 64
      %v1071 = vpop.permute.xlu0 %1070
      %1072 = vrot.lane.b32.xlu0 %v1059, 64
      %v1073 = vpop.permute.xlu0 %1072
      %vm1074 = vsmask.f32 3328
      %v1075 = vrot.slane %v853, 4
      %v1076 = vrot.slane %v849, 5
      %v1077 = vor.u32 %v1075, %v1076
      %v1078 = vrot.slane %v861, 4
      %v1079 = vrot.slane %v857, 5
      %v1080 = vor.u32 %v1078, %v1079
      %v1081 = vsel %vm1074, %v1077, %v1080
      %v1082 = vrot.slane %v869, 4
      %v1083 = vrot.slane %v865, 5
      %v1084 = vor.u32 %v1082, %v1083
      %v1085 = vsel %vm1074, %v1080, %v1084
      %v1086 = vrot.slane %v877, 4
      %v1087 = vrot.slane %v873, 5
      %v1088 = vor.u32 %v1086, %v1087
      %v1089 = vsel %vm1074, %v1084, %v1088
      %v1090 = vrot.slane %v885, 4
      %v1091 = vrot.slane %v881, 5
      %v1092 = vor.u32 %v1090, %v1091
      %v1093 = vsel %vm1074, %v1088, %v1092
      %v1094 = vrot.slane %v893, 4
      %v1095 = vrot.slane %v889, 5
      %v1096 = vor.u32 %v1094, %v1095
      %v1097 = vsel %vm1074, %v1092, %v1096
      %v1098 = vrot.slane %v1005, 4
      %v1099 = vrot.slane %v1008, 5
      %v1100 = vor.u32 %v1098, %v1099
      %v1101 = vsel %vm1074, %v1096, %v1100
      %v1103 = vshrl.u32 %v840, 16
      %v1105 = vrot.slane %v1103, 4
      %v1106 = vshll.u32 %v840, 16
      %v1108 = vrot.slane %v1106, 5
      %v1109 = vor.u32 %v1105, %v1108
      %v1110 = vsel %vm1074, %v1100, %v1109
      %1111 = vrot.lane.b32.xlu0 %v1081, 96
      %v1112 = vpop.permute.xlu0 %1111
      %1113 = vrot.lane.b32.xlu0 %v1085, 96
      %v1114 = vpop.permute.xlu0 %1113
      %1115 = vrot.lane.b32.xlu0 %v1089, 96
      %v1116 = vpop.permute.xlu0 %1115
      %1117 = vrot.lane.b32.xlu0 %v1093, 96
      %v1118 = vpop.permute.xlu0 %1117
      %1119 = vrot.lane.b32.xlu0 %v1097, 96
      %v1120 = vpop.permute.xlu0 %1119
      %1121 = vrot.lane.b32.xlu0 %v1101, 96
      %v1122 = vpop.permute.xlu0 %1121
      %1123 = vrot.lane.b32.xlu0 %v1110, 96
      %v1124 = vpop.permute.xlu0 %1123
      %vm1125 = vcmask 1042432
      %v1126 = vrot.slane %v833, 5
      %v1127 = vrot.slane %v834, 5
      %v1128 = vsel %vm1125, %v1126, %v1127
      %v1129 = vrot.slane %v835, 5
      %v1130 = vsel %vm1125, %v1127, %v1129
      %v1131 = vrot.slane %v836, 5
      %v1132 = vsel %vm1125, %v1129, %v1131
      %v1133 = vrot.slane %v837, 5
      %v1134 = vsel %vm1125, %v1131, %v1133
      %v1135 = vrot.slane %v838, 5
      %v1136 = vsel %vm1125, %v1133, %v1135
      %v1137 = vrot.slane %v839, 5
      %v1138 = vsel %vm1125, %v1135, %v1137
      %v1139 = vrot.slane %v840, 5
      %v1140 = vsel %vm1125, %v1137, %v1139
      %v1142 = vsel %vm642, %v832, %v897
      %v1144 = vsel %vm642, %v833, %v899
      %v1146 = vsel %vm642, %v834, %v901
      %v1148 = vsel %vm642, %v835, %v903
      %v1150 = vsel %vm642, %v836, %v905
      %v1152 = vsel %vm642, %v837, %v907
      %v1154 = vsel %vm642, %v838, %v909
      %vm1155 = vcmask 523264
      %v1157 = vsel %vm1155, %v1142, %v932
      %v1159 = vsel %vm1155, %v1144, %v934
      %v1161 = vsel %vm1155, %v1146, %v936
      %v1163 = vsel %vm1155, %v1148, %v938
      %v1165 = vsel %vm1155, %v1150, %v940
      %v1167 = vsel %vm1155, %v1152, %v942
      %v1169 = vsel %vm1155, %v1154, %v944
      %vm1170 = vcmask 785408
      %v1172 = vsel %vm1170, %v1157, %v963
      %v1175 = vsel %vm1170, %v1159, %v965
      %v1178 = vsel %vm1170, %v1161, %v967
      %v1181 = vsel %vm1170, %v1163, %v969
      %v1184 = vsel %vm1170, %v1165, %v971
      %v1187 = vsel %vm1170, %v1167, %v973
      %v1190 = vsel %vm1170, %v1169, %v975
      %v1194 = vsel %vm642, %v983, %v1030
      %v1197 = vsel %vm642, %v987, %v1032
      %v1200 = vsel %vm642, %v991, %v1034
      %v1203 = vsel %vm642, %v995, %v1036
      %v1206 = vsel %vm642, %v999, %v1038
      %v1209 = vsel %vm642, %v1003, %v1040
      %v1212 = vsel %vm642, %v1012, %v1042
      %v1214 = vsel %vm1155, %v1194, %v1061
      %v1216 = vsel %vm1155, %v1197, %v1063
      %v1218 = vsel %vm1155, %v1200, %v1065
      %v1220 = vsel %vm1155, %v1203, %v1067
      %v1222 = vsel %vm1155, %v1206, %v1069
      %v1224 = vsel %vm1155, %v1209, %v1071
      %v1226 = vsel %vm1155, %v1212, %v1073
      %v1228 = vsel %vm1170, %v1214, %v1112
      %v1231 = vsel %vm1170, %v1216, %v1114
      %v1234 = vsel %vm1170, %v1218, %v1116
      %v1237 = vsel %vm1170, %v1220, %v1118
      %v1240 = vsel %vm1170, %v1222, %v1120
      %v1243 = vsel %vm1170, %v1224, %v1122
      %v1246 = vsel %vm1170, %v1226, %v1124
      %v1248 = vld [vmem:[%s2] sm:$0xf]
      %v1249 = vld [vmem:[%s2 + $0x4] sm:$0xf]
      %v1250 = vld [vmem:[%s2 + $0x8] sm:$0xf]
      %v1251 = vld [vmem:[%s2 + $0xc] sm:$0xf]
      %v1252 = vld [vmem:[%s2 + $0x10] sm:$0xf]
      %v1253 = vld [vmem:[%s2 + $0x14] sm:$0xf]
      %v1254 = vld [vmem:[%s2 + $0x18] sm:$0xf]
      %v1255 = vld [vmem:[%s2 + $0x1c] sm:$0xf]
      %v1256 = vld [vmem:[%s2 + $0x20] sm:$0xf]
      %v1257 = vld [vmem:[%s2 + $0x24] sm:$0xf]
      %v1258 = vld [vmem:[%s2 + $0x28] sm:$0xf]
      %v1259 = vld [vmem:[%s2 + $0x2c] sm:$0xf]
      %v1260 = vld [vmem:[%s2 + $0x30] sm:$0xf]
      %v1261 = vld [vmem:[%s2 + $0x34] sm:$0xf]
      %v1262 = vld [vmem:[%s2 + $0x38] sm:$0xf]
      %v1263 = vld [vmem:[%s2 + $0x3c] sm:$0xf]
      %v1264 = vld [vmem:[%s2 + $0x40] sm:$0xf]
      %v1265 = vld [vmem:[%s2 + $0x44] sm:$0xf]
      %v1266 = vld [vmem:[%s2 + $0x48] sm:$0xf]
      %v1267 = vld [vmem:[%s2 + $0x4c] sm:$0xf]
      %v1268 = vld [vmem:[%s2 + $0x50] sm:$0xf]
      %v1269 = vld [vmem:[%s2 + $0x54] sm:$0xf]
      %v1270 = vld [vmem:[%s2 + $0x58] sm:$0xf]
      %v1271 = vld [vmem:[%s2 + $0x5c] sm:$0xf]
      %v1272 = vld [vmem:[%s2 + $0x60] sm:$0xf]
      %v1273 = vld [vmem:[%s2 + $0x64] sm:$0xf]
      %v1274 = vld [vmem:[%s2 + $0x68] sm:$0xf]
      %v1275 = vld [vmem:[%s2 + $0x6c] sm:$0xf]
      %v1276 = vld [vmem:[%s2 + $0x70] sm:$0xf]
      %v1277 = vld [vmem:[%s2 + $0x74] sm:$0xf]
      %v1278 = vld [vmem:[%s2 + $0x78] sm:$0xf]
      %v1279 = vld [vmem:[%s2 + $0x7c] sm:$0xf]
      %v1280 = vld [vmem:[%s2 + $0x80] sm:$0xf]
      %v1281 = vld [vmem:[%s2 + $0x84] sm:$0xf]
      %v1282 = vld [vmem:[%s2 + $0x88] sm:$0xf]
      %v1283 = vld [vmem:[%s2 + $0x8c] sm:$0xf]
      %s1284 = scalar_lea.vmem %s3, 1
      %v1285 = vld [vmem:[%s1284] sm:$0x1]
      %v1287 = vlaneseq
      %v1288 = vshrl.u32 %v1287, 7
      %v1289 = vsub.s32 0, %v1288
      %v1290 = vrot.slane %v1285, %v1289
      %v1328 = vunpack.c.l.b16 %v1248
      %v1329 = vunpack.c.l.b16 %v1249
      %v1330 = vunpack.c.l.b16 %v1250
      %v1331 = vunpack.c.l.b16 %v1251
      %v1332 = vunpack.c.l.b16 %v1252
      %v1333 = vunpack.c.l.b16 %v1253
      %v1334 = vunpack.c.l.b16 %v1254
      %v1335 = vunpack.c.l.b16 %v1255
      %v1336 = vunpack.c.l.b16 %v1256
      %v1337 = vunpack.c.l.b16 %v1257
      %v1338 = vunpack.c.l.b16 %v1258
      %v1339 = vunpack.c.l.b16 %v1259
      %v1340 = vunpack.c.l.b16 %v1260
      %v1341 = vunpack.c.l.b16 %v1261
      %v1342 = vunpack.c.l.b16 %v1262
      %v1343 = vunpack.c.l.b16 %v1263
      %v1344 = vunpack.c.l.b16 %v1264
      %v1345 = vunpack.c.l.b16 %v1265
      %v1346 = vunpack.c.l.b16 %v1266
      %v1347 = vunpack.c.l.b16 %v1267
      %v1348 = vunpack.c.l.b16 %v1268
      %v1349 = vunpack.c.l.b16 %v1269
      %v1350 = vunpack.c.l.b16 %v1270
      %v1351 = vunpack.c.l.b16 %v1271
      %v1352 = vunpack.c.l.b16 %v1272
      %v1353 = vunpack.c.l.b16 %v1273
      %v1354 = vunpack.c.l.b16 %v1274
      %v1355 = vunpack.c.l.b16 %v1275
      %v1356 = vunpack.c.l.b16 %v1276
      %v1357 = vunpack.c.l.b16 %v1277
      %v1358 = vunpack.c.l.b16 %v1278
      %v1359 = vunpack.c.l.b16 %v1279
      %v1360 = vunpack.c.l.b16 %v1280
      %v1361 = vunpack.c.l.b16 %v1281
      %v1362 = vunpack.c.l.b16 %v1282
      %v1363 = vunpack.c.l.b16 %v1283
      %v1364 = vpack.c.b16 %v1329, %v1328
      %v1365 = vpack.c.b16 %v1331, %v1330
      %v1366 = vpack.c.b16 %v1333, %v1332
      %v1367 = vpack.c.b16 %v1335, %v1334
      %v1368 = vpack.c.b16 %v1337, %v1336
      %v1369 = vpack.c.b16 %v1339, %v1338
      %v1370 = vpack.c.b16 %v1341, %v1340
      %v1371 = vpack.c.b16 %v1343, %v1342
      %v1372 = vpack.c.b16 %v1345, %v1344
      %v1373 = vpack.c.b16 %v1347, %v1346
      %v1374 = vpack.c.b16 %v1349, %v1348
      %v1375 = vpack.c.b16 %v1351, %v1350
      %v1376 = vpack.c.b16 %v1353, %v1352
      %v1377 = vpack.c.b16 %v1355, %v1354
      %v1378 = vpack.c.b16 %v1357, %v1356
      %v1379 = vpack.c.b16 %v1359, %v1358
      %v1380 = vpack.c.b16 %v1361, %v1360
      %v1381 = vpack.c.b16 %v1363, %v1362
      %v1401 = vsel %vm642, %v1128, 0
      %v1404 = vsel %vm642, %v1130, 0
      %v1407 = vsel %vm642, %v1132, 0
      %v1410 = vsel %vm642, %v1134, 0
      %v1413 = vsel %vm642, %v1136, 0
      %v1416 = vsel %vm642, %v1138, 0
      %v1419 = vsel %vm642, %v1140, 0
      %1421 = vmatprep.subr.bf16.mxu0 0
      %1422 = vmatpush1.bf16.msra.mxu0 %v1364
      %1423 = vmatprep.subr.bf16.mxu0 0
      %1424 = vmatpush1.bf16.msra.mxu0 %v1365
      %1425 = vmatprep.subr.bf16.mxu0 0
      %1426 = vmatpush1.bf16.msra.mxu0 %v1366
      %1427 = vmatprep.subr.bf16.mxu0 0
      %1428 = vmatpush1.bf16.msra.mxu0 %v1367
      %1429 = vmatprep.subr.bf16.mxu0 0
      %1430 = vmatpush1.bf16.msra.mxu0 %v1368
      %1431 = vmatprep.subr.bf16.mxu0 0
      %1432 = vmatpush1.bf16.msra.mxu0 %v1369
      %1433 = vmatprep.subr.bf16.mxu0 0
      %1434 = vmatpush1.bf16.msra.mxu0 %v1370
      %1435 = vmatprep.subr.bf16.mxu0 0
      %1436 = vmatpush1.bf16.msra.mxu0 %v1371
      %1437 = vmatprep.subr.bf16.mxu0 0
      %1438 = vmatpush1.bf16.msra.mxu0 %v1372
      %1439 = vmatprep.subr.bf16.mxu0 0
      %1440 = vmatpush1.bf16.msra.mxu0 %v1373
      %1441 = vmatprep.subr.bf16.mxu0 0
      %1442 = vmatpush1.bf16.msra.mxu0 %v1374
      %1443 = vmatprep.subr.bf16.mxu0 0
      %1444 = vmatpush1.bf16.msra.mxu0 %v1375
      %1445 = vmatprep.subr.bf16.mxu0 0
      %1446 = vmatpush1.bf16.msra.mxu0 %v1376
      %1447 = vmatprep.subr.bf16.mxu0 0
      %1448 = vmatpush1.bf16.msra.mxu0 %v1377
      %1449 = vmatprep.subr.bf16.mxu0 0
      %1450 = vmatpush1.bf16.msra.mxu0 %v1378
      %1451 = vmatprep.subr.bf16.mxu0 0
      %1452 = vmatpush1.bf16.msra.mxu0 %v1379
      %1453 = vmatprep.mubr.bf16.mxu0 %v1228
      %1454 = vmatmul.mubr.bf16.gmra.mrb[0].mxu0 %v1172
      %v1455 = vpop.f32.mrb[0].mxu0
      %v1456 = vadd.f32 %v1290, %v1455
      %v1457 = vpop.f32.mrb[0].mxu0
      %v1458 = vpop.f32.mrb[0].mxu0
      %v1459 = vadd.f32 %v1290, %v1458
      %v1460 = vpop.f32.mrb[0].mxu0
      %1461 = vmatprep.mubr.bf16.mxu0 %v1231
      %1462 = vmatmul.mubr.bf16.gmra.mrb[0].mxu0 %v1175
      %v1463 = vpop.f32.mrb[0].mxu0
      %v1464 = vadd.f32 %v1290, %v1463
      %v1465 = vpop.f32.mrb[0].mxu0
      %v1466 = vpop.f32.mrb[0].mxu0
      %v1467 = vadd.f32 %v1290, %v1466
      %v1468 = vpop.f32.mrb[0].mxu0
      %1469 = vmatprep.mubr.bf16.mxu0 %v1234
      %1470 = vmatmul.mubr.bf16.gmra.mrb[0].mxu0 %v1178
      %v1471 = vpop.f32.mrb[0].mxu0
      %v1472 = vadd.f32 %v1290, %v1471
      %v1473 = vpop.f32.mrb[0].mxu0
      %v1474 = vpop.f32.mrb[0].mxu0
      %v1475 = vadd.f32 %v1290, %v1474
      %v1476 = vpop.f32.mrb[0].mxu0
      %1477 = vmatprep.mubr.bf16.mxu0 %v1237
      %1478 = vmatmul.mubr.bf16.gmra.mrb[0].mxu0 %v1181
      %v1479 = vpop.f32.mrb[0].mxu0
      %v1480 = vadd.f32 %v1290, %v1479
      %v1481 = vpop.f32.mrb[0].mxu0
      %v1482 = vpop.f32.mrb[0].mxu0
      %v1483 = vadd.f32 %v1290, %v1482
      %v1484 = vpop.f32.mrb[0].mxu0
      %1485 = vmatprep.mubr.bf16.mxu0 %v1240
      %1486 = vmatmul.mubr.bf16.gmra.mrb[0].mxu0 %v1184
      %v1487 = vpop.f32.mrb[0].mxu0
      %v1488 = vadd.f32 %v1290, %v1487
      %v1489 = vpop.f32.mrb[0].mxu0
      %v1490 = vpop.f32.mrb[0].mxu0
      %v1491 = vadd.f32 %v1290, %v1490
      %v1492 = vpop.f32.mrb[0].mxu0
      %1493 = vmatprep.mubr.bf16.mxu0 %v1243
      %1494 = vmatmul.mubr.bf16.gmra.mrb[0].mxu0 %v1187
      %v1495 = vpop.f32.mrb[0].mxu0
      %v1496 = vadd.f32 %v1290, %v1495
      %v1497 = vpop.f32.mrb[0].mxu0
      %v1498 = vpop.f32.mrb[0].mxu0
      %v1499 = vadd.f32 %v1290, %v1498
      %v1500 = vpop.f32.mrb[0].mxu0
      %1501 = vmatprep.mubr.bf16.mxu0 %v1246
      %1502 = vmatmul.mubr.bf16.gmra.mrb[0].mxu0 %v1190
      %v1503 = vpop.f32.mrb[0].mxu0
      %v1504 = vadd.f32 %v1290, %v1503
      %v1505 = vpop.f32.mrb[0].mxu0
      %v1506 = vpop.f32.mrb[0].mxu0
      %v1507 = vadd.f32 %v1290, %v1506
      %v1508 = vpop.f32.mrb[0].mxu0
      %1509 = vdwg.mxu0
      %1510 = vmatprep.subr.bf16.mxu0 0
      %1511 = vmatpush1.bf16.msra.mxu0 %v1380
      %1512 = vmatprep.subr.bf16.mxu0 0
      %1513 = vmatpush1.bf16.msra.mxu0 %v1381
      %1514 = vmatprep.subr.bf16.mxu0 0
      %1515 = vmatpush1.bf16.msra.mxu0 0
      %1516 = vmatprep.subr.bf16.mxu0 0
      %1517 = vmatpush1.bf16.msra.mxu0 0
      %1518 = vmatprep.subr.bf16.mxu0 0
      %1519 = vmatpush1.bf16.msra.mxu0 0
      %1520 = vmatprep.subr.bf16.mxu0 0
      %1521 = vmatpush1.bf16.msra.mxu0 0
      %1522 = vmatprep.subr.bf16.mxu0 0
      %1523 = vmatpush1.bf16.msra.mxu0 0
      %1524 = vmatprep.subr.bf16.mxu0 0
      %1525 = vmatpush1.bf16.msra.mxu0 0
      %1526 = vmatprep.subr.bf16.mxu0 0
      %1527 = vmatpush1.bf16.msra.mxu0 0
      %1528 = vmatprep.subr.bf16.mxu0 0
      %1529 = vmatpush1.bf16.msra.mxu0 0
      %1530 = vmatprep.subr.bf16.mxu0 0
      %1531 = vmatpush1.bf16.msra.mxu0 0
      %1532 = vmatprep.subr.bf16.mxu0 0
      %1533 = vmatpush1.bf16.msra.mxu0 0
      %1534 = vmatprep.subr.bf16.mxu0 0
      %1535 = vmatpush1.bf16.msra.mxu0 0
      %1536 = vmatprep.subr.bf16.mxu0 0
      %1537 = vmatpush1.bf16.msra.mxu0 0
      %1538 = vmatprep.subr.bf16.mxu0 0
      %1539 = vmatpush1.bf16.msra.mxu0 0
      %1540 = vmatprep.subr.bf16.mxu0 0
      %1541 = vmatpush1.bf16.msra.mxu0 0
      %1542 = vmatprep.mubr.bf16.mxu0 0
      %1543 = vmatmul.mubr.bf16.gmra.mrb[0].mxu0 %v1401
      %v1544 = vpop.f32.mrb[0].mxu0
      %v1545 = vadd.f32 %v1456, %v1544
      %v1546 = vpop.f32.mrb[0].mxu0
      %v1547 = vpop.f32.mrb[0].mxu0
      %v1548 = vadd.f32 %v1459, %v1547
      %v1549 = vpop.f32.mrb[0].mxu0
      %1550 = vmatprep.mubr.bf16.mxu0 0
      %1551 = vmatmul.mubr.bf16.gmra.mrb[0].mxu0 %v1404
      %v1552 = vpop.f32.mrb[0].mxu0
      %v1553 = vadd.f32 %v1464, %v1552
      %v1554 = vpop.f32.mrb[0].mxu0
      %v1555 = vpop.f32.mrb[0].mxu0
      %v1556 = vadd.f32 %v1467, %v1555
      %v1557 = vpop.f32.mrb[0].mxu0
      %1558 = vmatprep.mubr.bf16.mxu0 0
      %1559 = vmatmul.mubr.bf16.gmra.mrb[0].mxu0 %v1407
      %v1560 = vpop.f32.mrb[0].mxu0
      %v1561 = vadd.f32 %v1472, %v1560
      %v1562 = vpop.f32.mrb[0].mxu0
      %v1563 = vpop.f32.mrb[0].mxu0
      %v1564 = vadd.f32 %v1475, %v1563
      %v1565 = vpop.f32.mrb[0].mxu0
      %1566 = vmatprep.mubr.bf16.mxu0 0
      %1567 = vmatmul.mubr.bf16.gmra.mrb[0].mxu0 %v1410
      %v1568 = vpop.f32.mrb[0].mxu0
      %v1569 = vadd.f32 %v1480, %v1568
      %v1570 = vpop.f32.mrb[0].mxu0
      %v1571 = vpop.f32.mrb[0].mxu0
      %v1572 = vadd.f32 %v1483, %v1571
      %v1573 = vpop.f32.mrb[0].mxu0
      %1574 = vmatprep.mubr.bf16.mxu0 0
      %1575 = vmatmul.mubr.bf16.gmra.mrb[0].mxu0 %v1413
      %v1576 = vpop.f32.mrb[0].mxu0
      %v1577 = vadd.f32 %v1488, %v1576
      %v1578 = vpop.f32.mrb[0].mxu0
      %v1579 = vpop.f32.mrb[0].mxu0
      %v1580 = vadd.f32 %v1491, %v1579
      %v1581 = vpop.f32.mrb[0].mxu0
      %1582 = vmatprep.mubr.bf16.mxu0 0
      %1583 = vmatmul.mubr.bf16.gmra.mrb[0].mxu0 %v1416
      %v1584 = vpop.f32.mrb[0].mxu0
      %v1585 = vadd.f32 %v1496, %v1584
      %v1586 = vpop.f32.mrb[0].mxu0
      %v1587 = vpop.f32.mrb[0].mxu0
      %v1588 = vadd.f32 %v1499, %v1587
      %v1589 = vpop.f32.mrb[0].mxu0
      %1590 = vmatprep.mubr.bf16.mxu0 0
      %1591 = vmatmul.mubr.bf16.gmra.mrb[0].mxu0 %v1419
      %v1592 = vpop.f32.mrb[0].mxu0
      %v1593 = vadd.f32 %v1504, %v1592
      %v1594 = vpop.f32.mrb[0].mxu0
      %v1595 = vpop.f32.mrb[0].mxu0
      %v1596 = vadd.f32 %v1507, %v1595
      %v1597 = vpop.f32.mrb[0].mxu0
      %1598 = vdwg.mxu0
      %v1599 = vmax.f32 %v1545, 0.0
      %v1600 = vmax.f32 %v1548, 0.0
      %v1601 = vmax.f32 %v1553, 0.0
      %v1602 = vmax.f32 %v1556, 0.0
      %v1603 = vmax.f32 %v1561, 0.0
      %v1604 = vmax.f32 %v1564, 0.0
      %v1605 = vmax.f32 %v1569, 0.0
      %v1606 = vmax.f32 %v1572, 0.0
      %v1607 = vmax.f32 %v1577, 0.0
      %v1608 = vmax.f32 %v1580, 0.0
      %v1609 = vmax.f32 %v1585, 0.0
      %v1610 = vmax.f32 %v1588, 0.0
      %v1611 = vmax.f32 %v1593, 0.0
      %v1612 = vmax.f32 %v1596, 0.0
      %v1613 = vpack.c.bf16 %v1600, %v1599
      %v1614 = vpack.c.bf16 %v1602, %v1601
      %v1615 = vpack.c.bf16 %v1604, %v1603
      %v1616 = vpack.c.bf16 %v1606, %v1605
      %v1617 = vpack.c.bf16 %v1608, %v1607
      %v1618 = vpack.c.bf16 %v1610, %v1609
      %v1619 = vpack.c.bf16 %v1612, %v1611
      %v1621 = vshrl.u32 %v1613, 16
      %v1623 = vshll.u32 %v1613, 16
      %v1625 = vrot.slane %v1623, 1
      %v1626 = vor.u32 %v1621, %v1625
      %v1628 = vshll.u32 %v1614, 16
      %v1630 = vrot.slane %v1628, 1
      %v1631 = vsel %vm270, %v1626, %v1630
      %v1632 = vshrl.u32 %v1614, 16
      %v1634 = vor.u32 %v1632, %v1630
      %v1636 = vshll.u32 %v1615, 16
      %v1638 = vrot.slane %v1636, 1
      %v1639 = vsel %vm270, %v1634, %v1638
      %v1640 = vshrl.u32 %v1615, 16
      %v1642 = vor.u32 %v1640, %v1638
      %v1644 = vshll.u32 %v1616, 16
      %v1646 = vrot.slane %v1644, 1
      %v1647 = vsel %vm270, %v1642, %v1646
      %v1648 = vshrl.u32 %v1616, 16
      %v1650 = vor.u32 %v1648, %v1646
      %v1652 = vshll.u32 %v1617, 16
      %v1654 = vrot.slane %v1652, 1
      %v1655 = vsel %vm270, %v1650, %v1654
      %v1656 = vshrl.u32 %v1617, 16
      %v1658 = vor.u32 %v1656, %v1654
      %1659 = vrot.lane.b32.xlu0 %v1631, 32
      %v1660 = vpop.permute.xlu0 %1659
      %1661 = vrot.lane.b32.xlu0 %v1639, 32
      %v1662 = vpop.permute.xlu0 %1661
      %1663 = vrot.lane.b32.xlu0 %v1647, 32
      %v1664 = vpop.permute.xlu0 %1663
      %1665 = vrot.lane.b32.xlu0 %v1655, 32
      %v1666 = vpop.permute.xlu0 %1665
      %1667 = vrot.lane.b32.xlu0 %v1658, 32
      %v1668 = vpop.permute.xlu0 %1667
      %v1675 = vrot.slane %v1613, 1
      %v1676 = vrot.slane %v1614, 1
      %v1677 = vsel %vm917, %v1675, %v1676
      %v1678 = vrot.slane %v1615, 1
      %v1679 = vsel %vm917, %v1676, %v1678
      %v1680 = vrot.slane %v1616, 1
      %v1681 = vsel %vm917, %v1678, %v1680
      %v1682 = vrot.slane %v1617, 1
      %v1683 = vsel %vm917, %v1680, %v1682
      %v1684 = vrot.slane %v1618, 1
      %v1685 = vsel %vm917, %v1682, %v1684
      %1686 = vrot.lane.b32.xlu0 %v1677, 64
      %v1687 = vpop.permute.xlu0 %1686
      %1688 = vrot.lane.b32.xlu0 %v1679, 64
      %v1689 = vpop.permute.xlu0 %1688
      %1690 = vrot.lane.b32.xlu0 %v1681, 64
      %v1691 = vpop.permute.xlu0 %1690
      %1692 = vrot.lane.b32.xlu0 %v1683, 64
      %v1693 = vpop.permute.xlu0 %1692
      %1694 = vrot.lane.b32.xlu0 %v1685, 64
      %v1695 = vpop.permute.xlu0 %1694
      %v1696 = vrot.slane %v1613, 6
      %v1697 = vrot.slane %v1614, 6
      %v1698 = vsel %vm946, %v1696, %v1697
      %v1699 = vrot.slane %v1615, 6
      %v1700 = vsel %vm946, %v1697, %v1699
      %v1701 = vrot.slane %v1616, 6
      %v1702 = vsel %vm946, %v1699, %v1701
      %v1703 = vrot.slane %v1617, 6
      %v1704 = vsel %vm946, %v1701, %v1703
      %v1705 = vrot.slane %v1618, 6
      %v1706 = vsel %vm946, %v1703, %v1705
      %1707 = vrot.lane.b32.xlu0 %v1698, 96
      %v1708 = vpop.permute.xlu0 %1707
      %1709 = vrot.lane.b32.xlu0 %v1700, 96
      %v1710 = vpop.permute.xlu0 %1709
      %1711 = vrot.lane.b32.xlu0 %v1702, 96
      %v1712 = vpop.permute.xlu0 %1711
      %1713 = vrot.lane.b32.xlu0 %v1704, 96
      %v1714 = vpop.permute.xlu0 %1713
      %1715 = vrot.lane.b32.xlu0 %v1706, 96
      %v1716 = vpop.permute.xlu0 %1715
      %v1717 = vrot.slane %v1621, 6
      %v1718 = vrot.slane %v1623, 7
      %v1719 = vor.u32 %v1717, %v1718
      %v1720 = vrot.slane %v1632, 6
      %v1721 = vrot.slane %v1628, 7
      %v1722 = vor.u32 %v1720, %v1721
      %v1723 = vsel %vm976, %v1719, %v1722
      %v1724 = vrot.slane %v1640, 6
      %v1725 = vrot.slane %v1636, 7
      %v1726 = vor.u32 %v1724, %v1725
      %v1727 = vsel %vm976, %v1722, %v1726
      %v1728 = vrot.slane %v1648, 6
      %v1729 = vrot.slane %v1644, 7
      %v1730 = vor.u32 %v1728, %v1729
      %v1731 = vsel %vm976, %v1726, %v1730
      %v1732 = vrot.slane %v1656, 6
      %v1733 = vrot.slane %v1652, 7
      %v1734 = vor.u32 %v1732, %v1733
      %v1735 = vsel %vm976, %v1730, %v1734
      %v1737 = vshrl.u32 %v1618, 16
      %v1739 = vrot.slane %v1737, 6
      %v1740 = vshll.u32 %v1618, 16
      %v1742 = vrot.slane %v1740, 7
      %v1743 = vor.u32 %v1739, %v1742
      %v1744 = vsel %vm976, %v1734, %v1743
      %v1745 = vrot.slane %v1613, 7
      %v1746 = vrot.slane %v1614, 7
      %v1747 = vsel %vm1013, %v1745, %v1746
      %v1748 = vrot.slane %v1615, 7
      %v1749 = vsel %vm1013, %v1746, %v1748
      %v1750 = vrot.slane %v1616, 7
      %v1751 = vsel %vm1013, %v1748, %v1750
      %v1752 = vrot.slane %v1617, 7
      %v1753 = vsel %vm1013, %v1750, %v1752
      %v1754 = vrot.slane %v1618, 7
      %v1755 = vsel %vm1013, %v1752, %v1754
      %1756 = vrot.lane.b32.xlu0 %v1747, 32
      %v1757 = vpop.permute.xlu0 %1756
      %1758 = vrot.lane.b32.xlu0 %v1749, 32
      %v1759 = vpop.permute.xlu0 %1758
      %1760 = vrot.lane.b32.xlu0 %v1751, 32
      %v1761 = vpop.permute.xlu0 %1760
      %1762 = vrot.lane.b32.xlu0 %v1753, 32
      %v1763 = vpop.permute.xlu0 %1762
      %1764 = vrot.lane.b32.xlu0 %v1755, 32
      %v1765 = vpop.permute.xlu0 %1764
      %v1767 = vrot.slane %v1614, 4
      %v1768 = vrot.slane %v1615, 4
      %v1769 = vsel %vm1044, %v1767, %v1768
      %v1770 = vrot.slane %v1616, 4
      %v1771 = vsel %vm1044, %v1768, %v1770
      %v1772 = vrot.slane %v1617, 4
      %v1773 = vsel %vm1044, %v1770, %v1772
      %v1774 = vrot.slane %v1618, 4
      %v1775 = vsel %vm1044, %v1772, %v1774
      %v1776 = vrot.slane %v1619, 4
      %v1777 = vsel %vm1044, %v1774, %v1776
      %1778 = vrot.lane.b32.xlu0 %v1769, 64
      %v1779 = vpop.permute.xlu0 %1778
      %1780 = vrot.lane.b32.xlu0 %v1771, 64
      %v1781 = vpop.permute.xlu0 %1780
      %1782 = vrot.lane.b32.xlu0 %v1773, 64
      %v1783 = vpop.permute.xlu0 %1782
      %1784 = vrot.lane.b32.xlu0 %v1775, 64
      %v1785 = vpop.permute.xlu0 %1784
      %1786 = vrot.lane.b32.xlu0 %v1777, 64
      %v1787 = vpop.permute.xlu0 %1786
      %v1788 = vrot.slane %v1632, 4
      %v1789 = vrot.slane %v1628, 5
      %v1790 = vor.u32 %v1788, %v1789
      %v1791 = vrot.slane %v1640, 4
      %v1792 = vrot.slane %v1636, 5
      %v1793 = vor.u32 %v1791, %v1792
      %v1794 = vsel %vm1074, %v1790, %v1793
      %v1795 = vrot.slane %v1648, 4
      %v1796 = vrot.slane %v1644, 5
      %v1797 = vor.u32 %v1795, %v1796
      %v1798 = vsel %vm1074, %v1793, %v1797
      %v1799 = vrot.slane %v1656, 4
      %v1800 = vrot.slane %v1652, 5
      %v1801 = vor.u32 %v1799, %v1800
      %v1802 = vsel %vm1074, %v1797, %v1801
      %v1803 = vrot.slane %v1737, 4
      %v1804 = vrot.slane %v1740, 5
      %v1805 = vor.u32 %v1803, %v1804
      %v1806 = vsel %vm1074, %v1801, %v1805
      %v1808 = vshrl.u32 %v1619, 16
      %v1810 = vrot.slane %v1808, 4
      %v1811 = vshll.u32 %v1619, 16
      %v1813 = vrot.slane %v1811, 5
      %v1814 = vor.u32 %v1810, %v1813
      %v1815 = vsel %vm1074, %v1805, %v1814
      %1816 = vrot.lane.b32.xlu0 %v1794, 96
      %v1817 = vpop.permute.xlu0 %1816
      %1818 = vrot.lane.b32.xlu0 %v1798, 96
      %v1819 = vpop.permute.xlu0 %1818
      %1820 = vrot.lane.b32.xlu0 %v1802, 96
      %v1821 = vpop.permute.xlu0 %1820
      %1822 = vrot.lane.b32.xlu0 %v1806, 96
      %v1823 = vpop.permute.xlu0 %1822
      %1824 = vrot.lane.b32.xlu0 %v1815, 96
      %v1825 = vpop.permute.xlu0 %1824
      %v1826 = vrot.slane %v1614, 5
      %v1827 = vrot.slane %v1615, 5
      %v1828 = vsel %vm1125, %v1826, %v1827
      %v1829 = vrot.slane %v1616, 5
      %v1830 = vsel %vm1125, %v1827, %v1829
      %v1831 = vrot.slane %v1617, 5
      %v1832 = vsel %vm1125, %v1829, %v1831
      %v1833 = vrot.slane %v1618, 5
      %v1834 = vsel %vm1125, %v1831, %v1833
      %v1835 = vrot.slane %v1619, 5
      %v1836 = vsel %vm1125, %v1833, %v1835
      %v1838 = vsel %vm642, %v1613, %v1660
      %v1840 = vsel %vm642, %v1614, %v1662
      %v1842 = vsel %vm642, %v1615, %v1664
      %v1844 = vsel %vm642, %v1616, %v1666
      %v1846 = vsel %vm642, %v1617, %v1668
      %v1848 = vsel %vm1155, %v1838, %v1687
      %v1850 = vsel %vm1155, %v1840, %v1689
      %v1852 = vsel %vm1155, %v1842, %v1691
      %v1854 = vsel %vm1155, %v1844, %v1693
      %v1856 = vsel %vm1155, %v1846, %v1695
      %v1858 = vsel %vm1170, %v1848, %v1708
      %v1861 = vsel %vm1170, %v1850, %v1710
      %v1864 = vsel %vm1170, %v1852, %v1712
      %v1867 = vsel %vm1170, %v1854, %v1714
      %v1870 = vsel %vm1170, %v1856, %v1716
      %v1874 = vsel %vm642, %v1723, %v1757
      %v1877 = vsel %vm642, %v1727, %v1759
      %v1880 = vsel %vm642, %v1731, %v1761
      %v1883 = vsel %vm642, %v1735, %v1763
      %v1886 = vsel %vm642, %v1744, %v1765
      %v1888 = vsel %vm1155, %v1874, %v1779
      %v1890 = vsel %vm1155, %v1877, %v1781
      %v1892 = vsel %vm1155, %v1880, %v1783
      %v1894 = vsel %vm1155, %v1883, %v1785
      %v1896 = vsel %vm1155, %v1886, %v1787
      %v1898 = vsel %vm1170, %v1888, %v1817
      %v1901 = vsel %vm1170, %v1890, %v1819
      %v1904 = vsel %vm1170, %v1892, %v1821
      %v1907 = vsel %vm1170, %v1894, %v1823
      %v1910 = vsel %vm1170, %v1896, %v1825
      %s1912 = scalar_lea.vmem %s2, 144
      %v1913 = vld [vmem:[%s1912] sm:$0xf]
      %v1914 = vld [vmem:[%s1912 + $0x4] sm:$0xf]
      %v1915 = vld [vmem:[%s1912 + $0x8] sm:$0xf]
      %v1916 = vld [vmem:[%s1912 + $0xc] sm:$0xf]
      %v1917 = vld [vmem:[%s1912 + $0x10] sm:$0xf]
      %v1918 = vld [vmem:[%s1912 + $0x14] sm:$0xf]
      %v1919 = vld [vmem:[%s1912 + $0x18] sm:$0xf]
      %v1920 = vld [vmem:[%s1912 + $0x1c] sm:$0xf]
      %v1921 = vld [vmem:[%s1912 + $0x20] sm:$0xf]
      %v1922 = vld [vmem:[%s1912 + $0x24] sm:$0xf]
      %v1923 = vld [vmem:[%s1912 + $0x28] sm:$0xf]
      %v1924 = vld [vmem:[%s1912 + $0x2c] sm:$0xf]
      %v1925 = vld [vmem:[%s1912 + $0x30] sm:$0xf]
      %v1926 = vld [vmem:[%s1912 + $0x34] sm:$0xf]
      %v1927 = vld [vmem:[%s1912 + $0x38] sm:$0xf]
      %v1928 = vld [vmem:[%s1912 + $0x3c] sm:$0xf]
      %v1929 = vld [vmem:[%s1912 + $0x40] sm:$0xf]
      %v1930 = vld [vmem:[%s1912 + $0x44] sm:$0xf]
      %v1931 = vld [vmem:[%s1912 + $0x48] sm:$0xf]
      %v1932 = vld [vmem:[%s1912 + $0x4c] sm:$0xf]
      %v1933 = vld [vmem:[%s1912 + $0x50] sm:$0xf]
      %v1934 = vld [vmem:[%s1912 + $0x54] sm:$0xf]
      %v1935 = vld [vmem:[%s1912 + $0x58] sm:$0xf]
      %v1936 = vld [vmem:[%s1912 + $0x5c] sm:$0xf]
      %v1937 = vld [vmem:[%s1912 + $0x60] sm:$0xf]
      %v1938 = vld [vmem:[%s1912 + $0x64] sm:$0xf]
      %v1939 = vld [vmem:[%s1912 + $0x68] sm:$0xf]
      %v1940 = vld [vmem:[%s1912 + $0x6c] sm:$0xf]
      %v1941 = vld [vmem:[%s1912 + $0x70] sm:$0xf]
      %v1942 = vld [vmem:[%s1912 + $0x74] sm:$0xf]
      %v1943 = vld [vmem:[%s1912 + $0x78] sm:$0xf]
      %v1944 = vld [vmem:[%s1912 + $0x7c] sm:$0xf]
      %v1945 = vld [vmem:[%s1912 + $0x80] sm:$0xf]
      %v1946 = vld [vmem:[%s1912 + $0x84] sm:$0xf]
      %v1947 = vld [vmem:[%s1912 + $0x88] sm:$0xf]
      %v1948 = vld [vmem:[%s1912 + $0x8c] sm:$0xf]
      %s1949 = scalar_lea.vmem %s3, 2
      %v1950 = vld [vmem:[%s1949] sm:$0x1]
      %v1952 = vlaneseq
      %v1953 = vshrl.u32 %v1952, 7
      %v1954 = vsub.s32 0, %v1953
      %v1955 = vrot.slane %v1950, %v1954
      %v1993 = vunpack.c.l.b16 %v1913
      %v1994 = vunpack.c.l.b16 %v1914
      %v1995 = vunpack.c.l.b16 %v1915
      %v1996 = vunpack.c.l.b16 %v1916
      %v1997 = vunpack.c.l.b16 %v1917
      %v1998 = vunpack.c.l.b16 %v1918
      %v1999 = vunpack.c.l.b16 %v1919
      %v2000 = vunpack.c.l.b16 %v1920
      %v2001 = vunpack.c.l.b16 %v1921
      %v2002 = vunpack.c.l.b16 %v1922
      %v2003 = vunpack.c.l.b16 %v1923
      %v2004 = vunpack.c.l.b16 %v1924
      %v2005 = vunpack.c.l.b16 %v1925
      %v2006 = vunpack.c.l.b16 %v1926
      %v2007 = vunpack.c.l.b16 %v1927
      %v2008 = vunpack.c.l.b16 %v1928
      %v2009 = vunpack.c.l.b16 %v1929
      %v2010 = vunpack.c.l.b16 %v1930
      %v2011 = vunpack.c.l.b16 %v1931
      %v2012 = vunpack.c.l.b16 %v1932
      %v2013 = vunpack.c.l.b16 %v1933
      %v2014 = vunpack.c.l.b16 %v1934
      %v2015 = vunpack.c.l.b16 %v1935
      %v2016 = vunpack.c.l.b16 %v1936
      %v2017 = vunpack.c.l.b16 %v1937
      %v2018 = vunpack.c.l.b16 %v1938
      %v2019 = vunpack.c.l.b16 %v1939
      %v2020 = vunpack.c.l.b16 %v1940
      %v2021 = vunpack.c.l.b16 %v1941
      %v2022 = vunpack.c.l.b16 %v1942
      %v2023 = vunpack.c.l.b16 %v1943
      %v2024 = vunpack.c.l.b16 %v1944
      %v2025 = vunpack.c.l.b16 %v1945
      %v2026 = vunpack.c.l.b16 %v1946
      %v2027 = vunpack.c.l.b16 %v1947
      %v2028 = vunpack.c.l.b16 %v1948
      %v2029 = vpack.c.b16 %v1994, %v1993
      %v2030 = vpack.c.b16 %v1996, %v1995
      %v2031 = vpack.c.b16 %v1998, %v1997
      %v2032 = vpack.c.b16 %v2000, %v1999
      %v2033 = vpack.c.b16 %v2002, %v2001
      %v2034 = vpack.c.b16 %v2004, %v2003
      %v2035 = vpack.c.b16 %v2006, %v2005
      %v2036 = vpack.c.b16 %v2008, %v2007
      %v2037 = vpack.c.b16 %v2010, %v2009
      %v2038 = vpack.c.b16 %v2012, %v2011
      %v2039 = vpack.c.b16 %v2014, %v2013
      %v2040 = vpack.c.b16 %v2016, %v2015
      %v2041 = vpack.c.b16 %v2018, %v2017
      %v2042 = vpack.c.b16 %v2020, %v2019
      %v2043 = vpack.c.b16 %v2022, %v2021
      %v2044 = vpack.c.b16 %v2024, %v2023
      %v2045 = vpack.c.b16 %v2026, %v2025
      %v2046 = vpack.c.b16 %v2028, %v2027
      %v2066 = vsel %vm642, %v1828, 0
      %v2069 = vsel %vm642, %v1830, 0
      %v2072 = vsel %vm642, %v1832, 0
      %v2075 = vsel %vm642, %v1834, 0
      %v2078 = vsel %vm642, %v1836, 0
      %2080 = vmatprep.subr.bf16.mxu0 0
      %2081 = vmatpush1.bf16.msra.mxu0 %v2029
      %2082 = vmatprep.subr.bf16.mxu0 0
      %2083 = vmatpush1.bf16.msra.mxu0 %v2030
      %2084 = vmatprep.subr.bf16.mxu0 0
      %2085 = vmatpush1.bf16.msra.mxu0 %v2031
      %2086 = vmatprep.subr.bf16.mxu0 0
      %2087 = vmatpush1.bf16.msra.mxu0 %v2032
      %2088 = vmatprep.subr.bf16.mxu0 0
      %2089 = vmatpush1.bf16.msra.mxu0 %v2033
      %2090 = vmatprep.subr.bf16.mxu0 0
      %2091 = vmatpush1.bf16.msra.mxu0 %v2034
      %2092 = vmatprep.subr.bf16.mxu0 0
      %2093 = vmatpush1.bf16.msra.mxu0 %v2035
      %2094 = vmatprep.subr.bf16.mxu0 0
      %2095 = vmatpush1.bf16.msra.mxu0 %v2036
      %2096 = vmatprep.subr.bf16.mxu0 0
      %2097 = vmatpush1.bf16.msra.mxu0 %v2037
      %2098 = vmatprep.subr.bf16.mxu0 0
      %2099 = vmatpush1.bf16.msra.mxu0 %v2038
      %2100 = vmatprep.subr.bf16.mxu0 0
      %2101 = vmatpush1.bf16.msra.mxu0 %v2039
      %2102 = vmatprep.subr.bf16.mxu0 0
      %2103 = vmatpush1.bf16.msra.mxu0 %v2040
      %2104 = vmatprep.subr.bf16.mxu0 0
      %2105 = vmatpush1.bf16.msra.mxu0 %v2041
      %2106 = vmatprep.subr.bf16.mxu0 0
      %2107 = vmatpush1.bf16.msra.mxu0 %v2042
      %2108 = vmatprep.subr.bf16.mxu0 0
      %2109 = vmatpush1.bf16.msra.mxu0 %v2043
      %2110 = vmatprep.subr.bf16.mxu0 0
      %2111 = vmatpush1.bf16.msra.mxu0 %v2044
      %2112 = vmatprep.mubr.bf16.mxu0 %v1898
      %2113 = vmatmul.mubr.bf16.gmra.mrb[0].mxu0 %v1858
      %v2114 = vpop.f32.mrb[0].mxu0
      %v2115 = vadd.f32 %v1955, %v2114
      %v2116 = vpop.f32.mrb[0].mxu0
      %v2117 = vpop.f32.mrb[0].mxu0
      %v2118 = vadd.f32 %v1955, %v2117
      %v2119 = vpop.f32.mrb[0].mxu0
      %2120 = vmatprep.mubr.bf16.mxu0 %v1901
      %2121 = vmatmul.mubr.bf16.gmra.mrb[0].mxu0 %v1861
      %v2122 = vpop.f32.mrb[0].mxu0
      %v2123 = vadd.f32 %v1955, %v2122
      %v2124 = vpop.f32.mrb[0].mxu0
      %v2125 = vpop.f32.mrb[0].mxu0
      %v2126 = vadd.f32 %v1955, %v2125
      %v2127 = vpop.f32.mrb[0].mxu0
      %2128 = vmatprep.mubr.bf16.mxu0 %v1904
      %2129 = vmatmul.mubr.bf16.gmra.mrb[0].mxu0 %v1864
      %v2130 = vpop.f32.mrb[0].mxu0
      %v2131 = vadd.f32 %v1955, %v2130
      %v2132 = vpop.f32.mrb[0].mxu0
      %v2133 = vpop.f32.mrb[0].mxu0
      %v2134 = vadd.f32 %v1955, %v2133
      %v2135 = vpop.f32.mrb[0].mxu0
      %2136 = vmatprep.mubr.bf16.mxu0 %v1907
      %2137 = vmatmul.mubr.bf16.gmra.mrb[0].mxu0 %v1867
      %v2138 = vpop.f32.mrb[0].mxu0
      %v2139 = vadd.f32 %v1955, %v2138
      %v2140 = vpop.f32.mrb[0].mxu0
      %v2141 = vpop.f32.mrb[0].mxu0
      %v2142 = vadd.f32 %v1955, %v2141
      %v2143 = vpop.f32.mrb[0].mxu0
      %2144 = vmatprep.mubr.bf16.mxu0 %v1910
      %2145 = vmatmul.mubr.bf16.gmra.mrb[0].mxu0 %v1870
      %v2146 = vpop.f32.mrb[0].mxu0
      %v2147 = vadd.f32 %v1955, %v2146
      %v2148 = vpop.f32.mrb[0].mxu0
      %v2149 = vpop.f32.mrb[0].mxu0
      %v2150 = vadd.f32 %v1955, %v2149
      %v2151 = vpop.f32.mrb[0].mxu0
      %2152 = vdwg.mxu0
      %2153 = vmatprep.subr.bf16.mxu0 0
      %2154 = vmatpush1.bf16.msra.mxu0 %v2045
      %2155 = vmatprep.subr.bf16.mxu0 0
      %2156 = vmatpush1.bf16.msra.mxu0 %v2046
      %2157 = vmatprep.subr.bf16.mxu0 0
      %2158 = vmatpush1.bf16.msra.mxu0 0
      %2159 = vmatprep.subr.bf16.mxu0 0
      %2160 = vmatpush1.bf16.msra.mxu0 0
      %2161 = vmatprep.subr.bf16.mxu0 0
      %2162 = vmatpush1.bf16.msra.mxu0 0
      %2163 = vmatprep.subr.bf16.mxu0 0
      %2164 = vmatpush1.bf16.msra.mxu0 0
      %2165 = vmatprep.subr.bf16.mxu0 0
      %2166 = vmatpush1.bf16.msra.mxu0 0
      %2167 = vmatprep.subr.bf16.mxu0 0
      %2168 = vmatpush1.bf16.msra.mxu0 0
      %2169 = vmatprep.subr.bf16.mxu0 0
      %2170 = vmatpush1.bf16.msra.mxu0 0
      %2171 = vmatprep.subr.bf16.mxu0 0
      %2172 = vmatpush1.bf16.msra.mxu0 0
      %2173 = vmatprep.subr.bf16.mxu0 0
      %2174 = vmatpush1.bf16.msra.mxu0 0
      %2175 = vmatprep.subr.bf16.mxu0 0
      %2176 = vmatpush1.bf16.msra.mxu0 0
      %2177 = vmatprep.subr.bf16.mxu0 0
      %2178 = vmatpush1.bf16.msra.mxu0 0
      %2179 = vmatprep.subr.bf16.mxu0 0
      %2180 = vmatpush1.bf16.msra.mxu0 0
      %2181 = vmatprep.subr.bf16.mxu0 0
      %2182 = vmatpush1.bf16.msra.mxu0 0
      %2183 = vmatprep.subr.bf16.mxu0 0
      %2184 = vmatpush1.bf16.msra.mxu0 0
      %2185 = vmatprep.mubr.bf16.mxu0 0
      %2186 = vmatmul.mubr.bf16.gmra.mrb[0].mxu0 %v2066
      %v2187 = vpop.f32.mrb[0].mxu0
      %v2188 = vadd.f32 %v2115, %v2187
      %v2189 = vpop.f32.mrb[0].mxu0
      %v2190 = vpop.f32.mrb[0].mxu0
      %v2191 = vadd.f32 %v2118, %v2190
      %v2192 = vpop.f32.mrb[0].mxu0
      %2193 = vmatprep.mubr.bf16.mxu0 0
      %2194 = vmatmul.mubr.bf16.gmra.mrb[0].mxu0 %v2069
      %v2195 = vpop.f32.mrb[0].mxu0
      %v2196 = vadd.f32 %v2123, %v2195
      %v2197 = vpop.f32.mrb[0].mxu0
      %v2198 = vpop.f32.mrb[0].mxu0
      %v2199 = vadd.f32 %v2126, %v2198
      %v2200 = vpop.f32.mrb[0].mxu0
      %2201 = vmatprep.mubr.bf16.mxu0 0
      %2202 = vmatmul.mubr.bf16.gmra.mrb[0].mxu0 %v2072
      %v2203 = vpop.f32.mrb[0].mxu0
      %v2204 = vadd.f32 %v2131, %v2203
      %v2205 = vpop.f32.mrb[0].mxu0
      %v2206 = vpop.f32.mrb[0].mxu0
      %v2207 = vadd.f32 %v2134, %v2206
      %v2208 = vpop.f32.mrb[0].mxu0
      %2209 = vmatprep.mubr.bf16.mxu0 0
      %2210 = vmatmul.mubr.bf16.gmra.mrb[0].mxu0 %v2075
      %v2211 = vpop.f32.mrb[0].mxu0
      %v2212 = vadd.f32 %v2139, %v2211
      %v2213 = vpop.f32.mrb[0].mxu0
      %v2214 = vpop.f32.mrb[0].mxu0
      %v2215 = vadd.f32 %v2142, %v2214
      %v2216 = vpop.f32.mrb[0].mxu0
      %2217 = vmatprep.mubr.bf16.mxu0 0
      %2218 = vmatmul.mubr.bf16.gmra.mrb[0].mxu0 %v2078
      %v2219 = vpop.f32.mrb[0].mxu0
      %v2220 = vadd.f32 %v2147, %v2219
      %v2221 = vpop.f32.mrb[0].mxu0
      %v2222 = vpop.f32.mrb[0].mxu0
      %v2223 = vadd.f32 %v2150, %v2222
      %v2224 = vpop.f32.mrb[0].mxu0
      %2225 = vdwg.mxu0
      %v2226 = vmax.f32 %v2188, 0.0
      %v2227 = vmax.f32 %v2191, 0.0
      %v2228 = vmax.f32 %v2196, 0.0
      %v2229 = vmax.f32 %v2199, 0.0
      %v2230 = vmax.f32 %v2204, 0.0
      %v2231 = vmax.f32 %v2207, 0.0
      %v2232 = vmax.f32 %v2212, 0.0
      %v2233 = vmax.f32 %v2215, 0.0
      %v2234 = vmax.f32 %v2220, 0.0
      %v2235 = vmax.f32 %v2223, 0.0
      %v2236 = vpack.c.bf16 %v2227, %v2226
      %v2237 = vpack.c.bf16 %v2229, %v2228
      %v2238 = vpack.c.bf16 %v2231, %v2230
      %v2239 = vpack.c.bf16 %v2233, %v2232
      %v2240 = vpack.c.bf16 %v2235, %v2234
      %v2242 = vshrl.u32 %v2236, 16
      %v2244 = vshll.u32 %v2236, 16
      %v2246 = vrot.slane %v2244, 1
      %v2247 = vor.u32 %v2242, %v2246
      %v2249 = vshll.u32 %v2237, 16
      %v2251 = vrot.slane %v2249, 1
      %v2252 = vsel %vm270, %v2247, %v2251
      %v2253 = vshrl.u32 %v2237, 16
      %v2255 = vor.u32 %v2253, %v2251
      %v2257 = vshll.u32 %v2238, 16
      %v2259 = vrot.slane %v2257, 1
      %v2260 = vsel %vm270, %v2255, %v2259
      %v2261 = vshrl.u32 %v2238, 16
      %v2263 = vor.u32 %v2261, %v2259
      %v2265 = vshll.u32 %v2239, 16
      %v2267 = vrot.slane %v2265, 1
      %v2268 = vsel %vm270, %v2263, %v2267
      %v2269 = vshrl.u32 %v2239, 16
      %v2271 = vor.u32 %v2269, %v2267
      %2272 = vrot.lane.b32.xlu0 %v2252, 32
      %v2273 = vpop.permute.xlu0 %2272
      %2274 = vrot.lane.b32.xlu0 %v2260, 32
      %v2275 = vpop.permute.xlu0 %2274
      %2276 = vrot.lane.b32.xlu0 %v2268, 32
      %v2277 = vpop.permute.xlu0 %2276
      %2278 = vrot.lane.b32.xlu0 %v2271, 32
      %v2279 = vpop.permute.xlu0 %2278
      %v2284 = vrot.slane %v2236, 1
      %v2285 = vrot.slane %v2237, 1
      %v2286 = vsel %vm917, %v2284, %v2285
      %v2287 = vrot.slane %v2238, 1
      %v2288 = vsel %vm917, %v2285, %v2287
      %v2289 = vrot.slane %v2239, 1
      %v2290 = vsel %vm917, %v2287, %v2289
      %2291 = vrot.lane.b32.xlu0 %v2286, 64
      %v2292 = vpop.permute.xlu0 %2291
      %2293 = vrot.lane.b32.xlu0 %v2288, 64
      %v2294 = vpop.permute.xlu0 %2293
      %2295 = vrot.lane.b32.xlu0 %v2290, 64
      %v2296 = vpop.permute.xlu0 %2295
      %2297 = vrot.lane.b32.xlu0 %v2289, 64
      %v2298 = vpop.permute.xlu0 %2297
      %v2300 = vrot.slane %v2236, 6
      %v2301 = vrot.slane %v2237, 6
      %v2302 = vsel %vm946, %v2300, %v2301
      %v2303 = vrot.slane %v2238, 6
      %v2304 = vsel %vm946, %v2301, %v2303
      %v2305 = vrot.slane %v2239, 6
      %v2306 = vsel %vm946, %v2303, %v2305
      %v2307 = vrot.slane %v2240, 6
      %v2308 = vsel %vm946, %v2305, %v2307
      %2309 = vrot.lane.b32.xlu0 %v2302, 96
      %v2310 = vpop.permute.xlu0 %2309
      %2311 = vrot.lane.b32.xlu0 %v2304, 96
      %v2312 = vpop.permute.xlu0 %2311
      %2313 = vrot.lane.b32.xlu0 %v2306, 96
      %v2314 = vpop.permute.xlu0 %2313
      %2315 = vrot.lane.b32.xlu0 %v2308, 96
      %v2316 = vpop.permute.xlu0 %2315
      %v2317 = vrot.slane %v2242, 6
      %v2318 = vrot.slane %v2244, 7
      %v2319 = vor.u32 %v2317, %v2318
      %v2320 = vrot.slane %v2253, 6
      %v2321 = vrot.slane %v2249, 7
      %v2322 = vor.u32 %v2320, %v2321
      %v2323 = vsel %vm976, %v2319, %v2322
      %v2324 = vrot.slane %v2261, 6
      %v2325 = vrot.slane %v2257, 7
      %v2326 = vor.u32 %v2324, %v2325
      %v2327 = vsel %vm976, %v2322, %v2326
      %v2328 = vrot.slane %v2269, 6
      %v2329 = vrot.slane %v2265, 7
      %v2330 = vor.u32 %v2328, %v2329
      %v2331 = vsel %vm976, %v2326, %v2330
      %v2333 = vshrl.u32 %v2240, 16
      %v2335 = vrot.slane %v2333, 6
      %v2336 = vshll.u32 %v2240, 16
      %v2338 = vrot.slane %v2336, 7
      %v2339 = vor.u32 %v2335, %v2338
      %v2340 = vsel %vm976, %v2330, %v2339
      %v2341 = vrot.slane %v2236, 7
      %v2342 = vrot.slane %v2237, 7
      %v2343 = vsel %vm1013, %v2341, %v2342
      %v2344 = vrot.slane %v2238, 7
      %v2345 = vsel %vm1013, %v2342, %v2344
      %v2346 = vrot.slane %v2239, 7
      %v2347 = vsel %vm1013, %v2344, %v2346
      %v2348 = vrot.slane %v2240, 7
      %v2349 = vsel %vm1013, %v2346, %v2348
      %2350 = vrot.lane.b32.xlu0 %v2343, 32
      %v2351 = vpop.permute.xlu0 %2350
      %2352 = vrot.lane.b32.xlu0 %v2345, 32
      %v2353 = vpop.permute.xlu0 %2352
      %2354 = vrot.lane.b32.xlu0 %v2347, 32
      %v2355 = vpop.permute.xlu0 %2354
      %2356 = vrot.lane.b32.xlu0 %v2349, 32
      %v2357 = vpop.permute.xlu0 %2356
      %v2358 = vrot.slane %v2237, 4
      %v2359 = vrot.slane %v2238, 4
      %v2360 = vsel %vm1044, %v2358, %v2359
      %v2361 = vrot.slane %v2239, 4
      %v2362 = vsel %vm1044, %v2359, %v2361
      %v2363 = vrot.slane %v2240, 4
      %v2364 = vsel %vm1044, %v2361, %v2363
      %2365 = vrot.lane.b32.xlu0 %v2360, 64
      %v2366 = vpop.permute.xlu0 %2365
      %2367 = vrot.lane.b32.xlu0 %v2362, 64
      %v2368 = vpop.permute.xlu0 %2367
      %2369 = vrot.lane.b32.xlu0 %v2364, 64
      %v2370 = vpop.permute.xlu0 %2369
      %2371 = vrot.lane.b32.xlu0 %v2363, 64
      %v2372 = vpop.permute.xlu0 %2371
      %v2373 = vrot.slane %v2253, 4
      %v2374 = vrot.slane %v2249, 5
      %v2375 = vor.u32 %v2373, %v2374
      %v2376 = vrot.slane %v2261, 4
      %v2377 = vrot.slane %v2257, 5
      %v2378 = vor.u32 %v2376, %v2377
      %v2379 = vsel %vm1074, %v2375, %v2378
      %v2380 = vrot.slane %v2269, 4
      %v2381 = vrot.slane %v2265, 5
      %v2382 = vor.u32 %v2380, %v2381
      %v2383 = vsel %vm1074, %v2378, %v2382
      %v2384 = vrot.slane %v2333, 4
      %v2385 = vrot.slane %v2336, 5
      %v2386 = vor.u32 %v2384, %v2385
      %v2387 = vsel %vm1074, %v2382, %v2386
      %2388 = vrot.lane.b32.xlu0 %v2379, 96
      %v2389 = vpop.permute.xlu0 %2388
      %2390 = vrot.lane.b32.xlu0 %v2383, 96
      %v2391 = vpop.permute.xlu0 %2390
      %2392 = vrot.lane.b32.xlu0 %v2387, 96
      %v2393 = vpop.permute.xlu0 %2392
      %2394 = vrot.lane.b32.xlu0 %v2386, 96
      %v2395 = vpop.permute.xlu0 %2394
      %v2396 = vrot.slane %v2237, 5
      %v2397 = vrot.slane %v2238, 5
      %v2398 = vsel %vm1125, %v2396, %v2397
      %v2399 = vrot.slane %v2239, 5
      %v2400 = vsel %vm1125, %v2397, %v2399
      %v2401 = vrot.slane %v2240, 5
      %v2402 = vsel %vm1125, %v2399, %v2401
      %v2404 = vsel %vm642, %v2236, %v2273
      %v2406 = vsel %vm642, %v2237, %v2275
      %v2408 = vsel %vm642, %v2238, %v2277
      %v2410 = vsel %vm642, %v2239, %v2279
      %v2412 = vsel %vm1155, %v2404, %v2292
      %v2414 = vsel %vm1155, %v2406, %v2294
      %v2416 = vsel %vm1155, %v2408, %v2296
      %v2418 = vsel %vm1155, %v2410, %v2298
      %v2420 = vsel %vm1170, %v2412, %v2310
      %v2423 = vsel %vm1170, %v2414, %v2312
      %v2426 = vsel %vm1170, %v2416, %v2314
      %v2429 = vsel %vm1170, %v2418, %v2316
      %v2433 = vsel %vm642, %v2323, %v2351
      %v2436 = vsel %vm642, %v2327, %v2353
      %v2439 = vsel %vm642, %v2331, %v2355
      %v2442 = vsel %vm642, %v2340, %v2357
      %v2444 = vsel %vm1155, %v2433, %v2366
      %v2446 = vsel %vm1155, %v2436, %v2368
      %v2448 = vsel %vm1155, %v2439, %v2370
      %v2450 = vsel %vm1155, %v2442, %v2372
      %v2452 = vsel %vm1170, %v2444, %v2389
      %v2455 = vsel %vm1170, %v2446, %v2391
      %v2458 = vsel %vm1170, %v2448, %v2393
      %v2461 = vsel %vm1170, %v2450, %v2395
      %s2463 = scalar_lea.vmem %s2, 288
      %v2464 = vld [vmem:[%s2463] sm:$0xf]
      %v2465 = vld [vmem:[%s2463 + $0x4] sm:$0xf]
      %v2466 = vld [vmem:[%s2463 + $0x8] sm:$0xf]
      %v2467 = vld [vmem:[%s2463 + $0xc] sm:$0xf]
      %v2468 = vld [vmem:[%s2463 + $0x10] sm:$0xf]
      %v2469 = vld [vmem:[%s2463 + $0x14] sm:$0xf]
      %v2470 = vld [vmem:[%s2463 + $0x18] sm:$0xf]
      %v2471 = vld [vmem:[%s2463 + $0x1c] sm:$0xf]
      %v2472 = vld [vmem:[%s2463 + $0x20] sm:$0xf]
      %v2473 = vld [vmem:[%s2463 + $0x24] sm:$0xf]
      %v2474 = vld [vmem:[%s2463 + $0x28] sm:$0xf]
      %v2475 = vld [vmem:[%s2463 + $0x2c] sm:$0xf]
      %v2476 = vld [vmem:[%s2463 + $0x30] sm:$0xf]
      %v2477 = vld [vmem:[%s2463 + $0x34] sm:$0xf]
      %v2478 = vld [vmem:[%s2463 + $0x38] sm:$0xf]
      %v2479 = vld [vmem:[%s2463 + $0x3c] sm:$0xf]
      %v2480 = vld [vmem:[%s2463 + $0x40] sm:$0xf]
      %v2481 = vld [vmem:[%s2463 + $0x44] sm:$0xf]
      %v2482 = vld [vmem:[%s2463 + $0x48] sm:$0xf]
      %v2483 = vld [vmem:[%s2463 + $0x4c] sm:$0xf]
      %v2484 = vld [vmem:[%s2463 + $0x50] sm:$0xf]
      %v2485 = vld [vmem:[%s2463 + $0x54] sm:$0xf]
      %v2486 = vld [vmem:[%s2463 + $0x58] sm:$0xf]
      %v2487 = vld [vmem:[%s2463 + $0x5c] sm:$0xf]
      %v2488 = vld [vmem:[%s2463 + $0x60] sm:$0xf]
      %v2489 = vld [vmem:[%s2463 + $0x64] sm:$0xf]
      %v2490 = vld [vmem:[%s2463 + $0x68] sm:$0xf]
      %v2491 = vld [vmem:[%s2463 + $0x6c] sm:$0xf]
      %v2492 = vld [vmem:[%s2463 + $0x70] sm:$0xf]
      %v2493 = vld [vmem:[%s2463 + $0x74] sm:$0xf]
      %v2494 = vld [vmem:[%s2463 + $0x78] sm:$0xf]
      %v2495 = vld [vmem:[%s2463 + $0x7c] sm:$0xf]
      %v2496 = vld [vmem:[%s2463 + $0x80] sm:$0xf]
      %v2497 = vld [vmem:[%s2463 + $0x84] sm:$0xf]
      %v2498 = vld [vmem:[%s2463 + $0x88] sm:$0xf]
      %v2499 = vld [vmem:[%s2463 + $0x8c] sm:$0xf]
      %s2500 = scalar_lea.vmem %s3, 3
      %v2501 = vld [vmem:[%s2500] sm:$0x1]
      %v2503 = vlaneseq
      %v2504 = vshrl.u32 %v2503, 7
      %v2505 = vsub.s32 0, %v2504
      %v2506 = vrot.slane %v2501, %v2505
      %v2544 = vunpack.c.l.b16 %v2464
      %v2545 = vunpack.c.l.b16 %v2465
      %v2546 = vunpack.c.l.b16 %v2466
      %v2547 = vunpack.c.l.b16 %v2467
      %v2548 = vunpack.c.l.b16 %v2468
      %v2549 = vunpack.c.l.b16 %v2469
      %v2550 = vunpack.c.l.b16 %v2470
      %v2551 = vunpack.c.l.b16 %v2471
      %v2552 = vunpack.c.l.b16 %v2472
      %v2553 = vunpack.c.l.b16 %v2473
      %v2554 = vunpack.c.l.b16 %v2474
      %v2555 = vunpack.c.l.b16 %v2475
      %v2556 = vunpack.c.l.b16 %v2476
      %v2557 = vunpack.c.l.b16 %v2477
      %v2558 = vunpack.c.l.b16 %v2478
      %v2559 = vunpack.c.l.b16 %v2479
      %v2560 = vunpack.c.l.b16 %v2480
      %v2561 = vunpack.c.l.b16 %v2481
      %v2562 = vunpack.c.l.b16 %v2482
      %v2563 = vunpack.c.l.b16 %v2483
      %v2564 = vunpack.c.l.b16 %v2484
      %v2565 = vunpack.c.l.b16 %v2485
      %v2566 = vunpack.c.l.b16 %v2486
      %v2567 = vunpack.c.l.b16 %v2487
      %v2568 = vunpack.c.l.b16 %v2488
      %v2569 = vunpack.c.l.b16 %v2489
      %v2570 = vunpack.c.l.b16 %v2490
      %v2571 = vunpack.c.l.b16 %v2491
      %v2572 = vunpack.c.l.b16 %v2492
      %v2573 = vunpack.c.l.b16 %v2493
      %v2574 = vunpack.c.l.b16 %v2494
      %v2575 = vunpack.c.l.b16 %v2495
      %v2576 = vunpack.c.l.b16 %v2496
      %v2577 = vunpack.c.l.b16 %v2497
      %v2578 = vunpack.c.l.b16 %v2498
      %v2579 = vunpack.c.l.b16 %v2499
      %v2580 = vpack.c.b16 %v2545, %v2544
      %v2581 = vpack.c.b16 %v2547, %v2546
      %v2582 = vpack.c.b16 %v2549, %v2548
      %v2583 = vpack.c.b16 %v2551, %v2550
      %v2584 = vpack.c.b16 %v2553, %v2552
      %v2585 = vpack.c.b16 %v2555, %v2554
      %v2586 = vpack.c.b16 %v2557, %v2556
      %v2587 = vpack.c.b16 %v2559, %v2558
      %v2588 = vpack.c.b16 %v2561, %v2560
      %v2589 = vpack.c.b16 %v2563, %v2562
      %v2590 = vpack.c.b16 %v2565, %v2564
      %v2591 = vpack.c.b16 %v2567, %v2566
      %v2592 = vpack.c.b16 %v2569, %v2568
      %v2593 = vpack.c.b16 %v2571, %v2570
      %v2594 = vpack.c.b16 %v2573, %v2572
      %v2595 = vpack.c.b16 %v2575, %v2574
      %v2596 = vpack.c.b16 %v2577, %v2576
      %v2597 = vpack.c.b16 %v2579, %v2578
      %v2617 = vsel %vm642, %v2398, 0
      %v2620 = vsel %vm642, %v2400, 0
      %v2623 = vsel %vm642, %v2402, 0
      %v2626 = vsel %vm642, %v2401, 0
      %2628 = vmatprep.subr.bf16.mxu0 0
      %2629 = vmatpush1.bf16.msra.mxu0 %v2580
      %2630 = vmatprep.subr.bf16.mxu0 0
      %2631 = vmatpush1.bf16.msra.mxu0 %v2581
      %2632 = vmatprep.subr.bf16.mxu0 0
      %2633 = vmatpush1.bf16.msra.mxu0 %v2582
      %2634 = vmatprep.subr.bf16.mxu0 0
      %2635 = vmatpush1.bf16.msra.mxu0 %v2583
      %2636 = vmatprep.subr.bf16.mxu0 0
      %2637 = vmatpush1.bf16.msra.mxu0 %v2584
      %2638 = vmatprep.subr.bf16.mxu0 0
      %2639 = vmatpush1.bf16.msra.mxu0 %v2585
      %2640 = vmatprep.subr.bf16.mxu0 0
      %2641 = vmatpush1.bf16.msra.mxu0 %v2586
      %2642 = vmatprep.subr.bf16.mxu0 0
      %2643 = vmatpush1.bf16.msra.mxu0 %v2587
      %2644 = vmatprep.subr.bf16.mxu0 0
      %2645 = vmatpush1.bf16.msra.mxu0 %v2588
      %2646 = vmatprep.subr.bf16.mxu0 0
      %2647 = vmatpush1.bf16.msra.mxu0 %v2589
      %2648 = vmatprep.subr.bf16.mxu0 0
      %2649 = vmatpush1.bf16.msra.mxu0 %v2590
      %2650 = vmatprep.subr.bf16.mxu0 0
      %2651 = vmatpush1.bf16.msra.mxu0 %v2591
      %2652 = vmatprep.subr.bf16.mxu0 0
      %2653 = vmatpush1.bf16.msra.mxu0 %v2592
      %2654 = vmatprep.subr.bf16.mxu0 0
      %2655 = vmatpush1.bf16.msra.mxu0 %v2593
      %2656 = vmatprep.subr.bf16.mxu0 0
      %2657 = vmatpush1.bf16.msra.mxu0 %v2594
      %2658 = vmatprep.subr.bf16.mxu0 0
      %2659 = vmatpush1.bf16.msra.mxu0 %v2595
      %2660 = vmatprep.mubr.bf16.mxu0 %v2452
      %2661 = vmatmul.mubr.bf16.gmra.mrb[0].mxu0 %v2420
      %v2662 = vpop.f32.mrb[0].mxu0
      %v2663 = vadd.f32 %v2506, %v2662
      %v2664 = vpop.f32.mrb[0].mxu0
      %v2665 = vpop.f32.mrb[0].mxu0
      %v2666 = vadd.f32 %v2506, %v2665
      %v2667 = vpop.f32.mrb[0].mxu0
      %2668 = vmatprep.mubr.bf16.mxu0 %v2455
      %2669 = vmatmul.mubr.bf16.gmra.mrb[0].mxu0 %v2423
      %v2670 = vpop.f32.mrb[0].mxu0
      %v2671 = vadd.f32 %v2506, %v2670
      %v2672 = vpop.f32.mrb[0].mxu0
      %v2673 = vpop.f32.mrb[0].mxu0
      %v2674 = vadd.f32 %v2506, %v2673
      %v2675 = vpop.f32.mrb[0].mxu0
      %2676 = vmatprep.mubr.bf16.mxu0 %v2458
      %2677 = vmatmul.mubr.bf16.gmra.mrb[0].mxu0 %v2426
      %v2678 = vpop.f32.mrb[0].mxu0
      %v2679 = vadd.f32 %v2506, %v2678
      %v2680 = vpop.f32.mrb[0].mxu0
      %v2681 = vpop.f32.mrb[0].mxu0
      %v2682 = vadd.f32 %v2506, %v2681
      %v2683 = vpop.f32.mrb[0].mxu0
      %2684 = vmatprep.mubr.bf16.mxu0 %v2461
      %2685 = vmatmul.mubr.bf16.gmra.mrb[0].mxu0 %v2429
      %v2686 = vpop.f32.mrb[0].mxu0
      %v2687 = vadd.f32 %v2506, %v2686
      %v2688 = vpop.f32.mrb[0].mxu0
      %v2689 = vpop.f32.mrb[0].mxu0
      %v2690 = vpop.f32.mrb[0].mxu0
      %2691 = vdwg.mxu0
      %2692 = vmatprep.subr.bf16.mxu0 0
      %2693 = vmatpush1.bf16.msra.mxu0 %v2596
      %2694 = vmatprep.subr.bf16.mxu0 0
      %2695 = vmatpush1.bf16.msra.mxu0 %v2597
      %2696 = vmatprep.subr.bf16.mxu0 0
      %2697 = vmatpush1.bf16.msra.mxu0 0
      %2698 = vmatprep.subr.bf16.mxu0 0
      %2699 = vmatpush1.bf16.msra.mxu0 0
      %2700 = vmatprep.subr.bf16.mxu0 0
      %2701 = vmatpush1.bf16.msra.mxu0 0
      %2702 = vmatprep.subr.bf16.mxu0 0
      %2703 = vmatpush1.bf16.msra.mxu0 0
      %2704 = vmatprep.subr.bf16.mxu0 0
      %2705 = vmatpush1.bf16.msra.mxu0 0
      %2706 = vmatprep.subr.bf16.mxu0 0
      %2707 = vmatpush1.bf16.msra.mxu0 0
      %2708 = vmatprep.subr.bf16.mxu0 0
      %2709 = vmatpush1.bf16.msra.mxu0 0
      %2710 = vmatprep.subr.bf16.mxu0 0
      %2711 = vmatpush1.bf16.msra.mxu0 0
      %2712 = vmatprep.subr.bf16.mxu0 0
      %2713 = vmatpush1.bf16.msra.mxu0 0
      %2714 = vmatprep.subr.bf16.mxu0 0
      %2715 = vmatpush1.bf16.msra.mxu0 0
      %2716 = vmatprep.subr.bf16.mxu0 0
      %2717 = vmatpush1.bf16.msra.mxu0 0
      %2718 = vmatprep.subr.bf16.mxu0 0
      %2719 = vmatpush1.bf16.msra.mxu0 0
      %2720 = vmatprep.subr.bf16.mxu0 0
      %2721 = vmatpush1.bf16.msra.mxu0 0
      %2722 = vmatprep.subr.bf16.mxu0 0
      %2723 = vmatpush1.bf16.msra.mxu0 0
      %2724 = vmatprep.mubr.bf16.mxu0 0
      %2725 = vmatmul.mubr.bf16.gmra.mrb[0].mxu0 %v2617
      %v2726 = vpop.f32.mrb[0].mxu0
      %v2727 = vadd.f32 %v2663, %v2726
      %v2728 = vpop.f32.mrb[0].mxu0
      %v2729 = vpop.f32.mrb[0].mxu0
      %v2730 = vadd.f32 %v2666, %v2729
      %v2731 = vpop.f32.mrb[0].mxu0
      %2732 = vmatprep.mubr.bf16.mxu0 0
      %2733 = vmatmul.mubr.bf16.gmra.mrb[0].mxu0 %v2620
      %v2734 = vpop.f32.mrb[0].mxu0
      %v2735 = vadd.f32 %v2671, %v2734
      %v2736 = vpop.f32.mrb[0].mxu0
      %v2737 = vpop.f32.mrb[0].mxu0
      %v2738 = vadd.f32 %v2674, %v2737
      %v2739 = vpop.f32.mrb[0].mxu0
      %2740 = vmatprep.mubr.bf16.mxu0 0
      %2741 = vmatmul.mubr.bf16.gmra.mrb[0].mxu0 %v2623
      %v2742 = vpop.f32.mrb[0].mxu0
      %v2743 = vadd.f32 %v2679, %v2742
      %v2744 = vpop.f32.mrb[0].mxu0
      %v2745 = vpop.f32.mrb[0].mxu0
      %v2746 = vadd.f32 %v2682, %v2745
      %v2747 = vpop.f32.mrb[0].mxu0
      %2748 = vmatprep.mubr.bf16.mxu0 0
      %2749 = vmatmul.mubr.bf16.gmra.mrb[0].mxu0 %v2626
      %v2750 = vpop.f32.mrb[0].mxu0
      %v2751 = vadd.f32 %v2687, %v2750
      %v2752 = vpop.f32.mrb[0].mxu0
      %v2753 = vpop.f32.mrb[0].mxu0
      %v2754 = vpop.f32.mrb[0].mxu0
      %2755 = vdwg.mxu0
      %v2756 = vmax.f32 %v2727, 0.0
      %v2757 = vmax.f32 %v2730, 0.0
      %v2758 = vmax.f32 %v2735, 0.0
      %v2759 = vmax.f32 %v2738, 0.0
      %v2760 = vmax.f32 %v2743, 0.0
      %v2761 = vmax.f32 %v2746, 0.0
      %v2762 = vmax.f32 %v2751, 0.0
      %vm2765 = vcmask 1043456
      %v2766 = vrot.slane %v2757, 4
      %v2767 = vrot.slane %v2758, 4
      %v2768 = vsel %vm2765, %v2766, %v2767
      %v2772 = vrot.slane %v2760, 4
      %v2773 = vrot.slane %v2761, 4
      %v2774 = vsel %vm2765, %v2772, %v2773
      %vm2776 = vcmask 258048
      %2777 = vst.msk [vmem:[%s204] sm:$0x1f] %vm2776, %v2756
      %2778 = vst.msk [vmem:[%s204 + $0x8] sm:$0x1f] %vm2776, %v2768
      %2779 = vst.msk [vmem:[%s204 + $0x10] sm:$0x1f] %vm2776, %v2759
      %2780 = vst.msk [vmem:[%s204 + $0x18] sm:$0x1f] %vm2776, %v2774
      %2781 = vst.msk [vmem:[%s204 + $0x20] sm:$0x1f] %vm2776, %v2762
      %s2782 = scalar_lea.vmem %s197, 72
      %v2783 = vld [vmem:[%s2782] sm:$0xf]
      %v2784 = vld [vmem:[%s2782 + $0x4] sm:$0xf]
      %v2785 = vld [vmem:[%s2782 + $0x8] sm:$0xf]
      %v2786 = vld [vmem:[%s2782 + $0xc] sm:$0xf]
      %v2787 = vld [vmem:[%s2782 + $0x10] sm:$0xf]
      %v2788 = vld [vmem:[%s2782 + $0x14] sm:$0xf]
      %v2789 = vld [vmem:[%s2782 + $0x18] sm:$0xf]
      %v2790 = vld [vmem:[%s2782 + $0x1c] sm:$0xf]
      %v2791 = vld [vmem:[%s2782 + $0x20] sm:$0xf]
      %v2792 = vld [vmem:[%s2782 + $0x24] sm:$0xf]
      %v2793 = vld [vmem:[%s2782 + $0x28] sm:$0xf]
      %v2794 = vld [vmem:[%s2782 + $0x2c] sm:$0xf]
      %v2795 = vld [vmem:[%s2782 + $0x30] sm:$0xf]
      %v2796 = vld [vmem:[%s2782 + $0x34] sm:$0xf]
      %v2797 = vld [vmem:[%s2782 + $0x38] sm:$0xf]
      %v2798 = vld [vmem:[%s2782 + $0x3c] sm:$0xf]
      %v2799 = vld [vmem:[%s2782 + $0x40] sm:$0x3]
      %v2800 = vld [vmem:[%s2782 + $0x4] sm:$0xc]
      %v2801 = vld [vmem:[%s2782 + $0x40] sm:$0xf]
      %v2802 = vld [vmem:[%s2782 + $0x44] sm:$0xf]
      %v2820 = vunpack.c.l.b16 %v2783
      %v2821 = vunpack.c.l.b16 %v2784
      %v2822 = vunpack.c.l.b16 %v2785
      %v2823 = vunpack.c.l.b16 %v2786
      %v2824 = vunpack.c.l.b16 %v2787
      %v2825 = vunpack.c.l.b16 %v2788
      %v2826 = vunpack.c.l.b16 %v2789
      %v2827 = vunpack.c.l.b16 %v2790
      %v2828 = vunpack.c.l.b16 %v2791
      %v2829 = vunpack.c.l.b16 %v2792
      %v2830 = vunpack.c.l.b16 %v2793
      %v2831 = vunpack.c.l.b16 %v2794
      %v2832 = vunpack.c.l.b16 %v2795
      %v2833 = vunpack.c.l.b16 %v2796
      %v2834 = vunpack.c.l.b16 %v2797
      %v2835 = vunpack.c.l.b16 %v2798
      %v2836 = vunpack.c.l.b16 %v2799
      %v2837 = vpack.c.b16 %v2821, %v2820
      %v2838 = vpack.c.b16 %v2823, %v2822
      %v2839 = vpack.c.b16 %v2825, %v2824
      %v2840 = vpack.c.b16 %v2827, %v2826
      %v2841 = vpack.c.b16 %v2829, %v2828
      %v2842 = vpack.c.b16 %v2831, %v2830
      %v2843 = vpack.c.b16 %v2833, %v2832
      %v2844 = vpack.c.b16 %v2835, %v2834
      %v2845 = vpack.c.b16 %v2836, %v2836
      %v2847 = vshrl.u32 %v2837, 16
      %v2849 = vshll.u32 %v2837, 16
      %v2851 = vrot.slane %v2849, 1
      %v2852 = vor.u32 %v2847, %v2851
      %v2854 = vshll.u32 %v2838, 16
      %v2856 = vrot.slane %v2854, 1
      %v2857 = vsel %vm270, %v2852, %v2856
      %v2858 = vshrl.u32 %v2838, 16
      %v2860 = vor.u32 %v2858, %v2856
      %v2862 = vshll.u32 %v2839, 16
      %v2864 = vrot.slane %v2862, 1
      %v2865 = vsel %vm270, %v2860, %v2864
      %v2866 = vshrl.u32 %v2839, 16
      %v2868 = vor.u32 %v2866, %v2864
      %v2870 = vshll.u32 %v2840, 16
      %v2872 = vrot.slane %v2870, 1
      %v2873 = vsel %vm270, %v2868, %v2872
      %v2874 = vshrl.u32 %v2840, 16
      %v2876 = vor.u32 %v2874, %v2872
      %v2878 = vshll.u32 %v2841, 16
      %v2880 = vrot.slane %v2878, 1
      %v2881 = vsel %vm270, %v2876, %v2880
      %v2882 = vshrl.u32 %v2841, 16
      %v2884 = vor.u32 %v2882, %v2880
      %v2886 = vshll.u32 %v2842, 16
      %v2888 = vrot.slane %v2886, 1
      %v2889 = vsel %vm270, %v2884, %v2888
      %v2890 = vshrl.u32 %v2842, 16
      %v2892 = vor.u32 %v2890, %v2888
      %v2894 = vshll.u32 %v2843, 16
      %v2896 = vrot.slane %v2894, 1
      %v2897 = vsel %vm270, %v2892, %v2896
      %v2898 = vshrl.u32 %v2843, 16
      %v2900 = vor.u32 %v2898, %v2896
      %v2902 = vshll.u32 %v2844, 16
      %v2904 = vrot.slane %v2902, 1
      %v2905 = vsel %vm270, %v2900, %v2904
      %v2906 = vshrl.u32 %v2844, 16
      %v2908 = vor.u32 %v2906, %v2904
      %v2910 = vshll.u32 %v2845, 16
      %v2912 = vrot.slane %v2910, 1
      %v2913 = vsel %vm270, %v2908, %v2912
      %v2914 = vshrl.u32 %v2845, 16
      %v2916 = vor.u32 %v2914, %v2912
      %2917 = vrot.lane.b32.xlu0 %v2857, 8
      %v2918 = vpop.permute.xlu0 %2917
      %2919 = vrot.lane.b32.xlu0 %v2865, 8
      %v2920 = vpop.permute.xlu0 %2919
      %2921 = vrot.lane.b32.xlu0 %v2873, 8
      %v2922 = vpop.permute.xlu0 %2921
      %2923 = vrot.lane.b32.xlu0 %v2881, 8
      %v2924 = vpop.permute.xlu0 %2923
      %2925 = vrot.lane.b32.xlu0 %v2889, 8
      %v2926 = vpop.permute.xlu0 %2925
      %2927 = vrot.lane.b32.xlu0 %v2897, 8
      %v2928 = vpop.permute.xlu0 %2927
      %2929 = vrot.lane.b32.xlu0 %v2905, 8
      %v2930 = vpop.permute.xlu0 %2929
      %2931 = vrot.lane.b32.xlu0 %v2913, 8
      %v2932 = vpop.permute.xlu0 %2931
      %2933 = vrot.lane.b32.xlu0 %v2916, 8
      %v2934 = vpop.permute.xlu0 %2933
      %2935 = vrot.lane.b32.xlu0 %v2837, 4
      %v2936 = vpop.permute.xlu0 %2935
      %2937 = vrot.lane.b32.xlu0 %v2838, 4
      %v2938 = vpop.permute.xlu0 %2937
      %2939 = vrot.lane.b32.xlu0 %v2839, 4
      %v2940 = vpop.permute.xlu0 %2939
      %2941 = vrot.lane.b32.xlu0 %v2840, 4
      %v2942 = vpop.permute.xlu0 %2941
      %2943 = vrot.lane.b32.xlu0 %v2841, 4
      %v2944 = vpop.permute.xlu0 %2943
      %2945 = vrot.lane.b32.xlu0 %v2842, 4
      %v2946 = vpop.permute.xlu0 %2945
      %2947 = vrot.lane.b32.xlu0 %v2843, 4
      %v2948 = vpop.permute.xlu0 %2947
      %2949 = vrot.lane.b32.xlu0 %v2844, 4
      %v2950 = vpop.permute.xlu0 %2949
      %2951 = vrot.lane.b32.xlu0 %v2845, 4
      %v2952 = vpop.permute.xlu0 %2951
      %2953 = vrot.lane.b32.xlu0 %v2857, 12
      %v2954 = vpop.permute.xlu0 %2953
      %2955 = vrot.lane.b32.xlu0 %v2865, 12
      %v2956 = vpop.permute.xlu0 %2955
      %2957 = vrot.lane.b32.xlu0 %v2873, 12
      %v2958 = vpop.permute.xlu0 %2957
      %2959 = vrot.lane.b32.xlu0 %v2881, 12
      %v2960 = vpop.permute.xlu0 %2959
      %2961 = vrot.lane.b32.xlu0 %v2889, 12
      %v2962 = vpop.permute.xlu0 %2961
      %2963 = vrot.lane.b32.xlu0 %v2897, 12
      %v2964 = vpop.permute.xlu0 %2963
      %2965 = vrot.lane.b32.xlu0 %v2905, 12
      %v2966 = vpop.permute.xlu0 %2965
      %2967 = vrot.lane.b32.xlu0 %v2913, 12
      %v2968 = vpop.permute.xlu0 %2967
      %2969 = vrot.lane.b32.xlu0 %v2916, 12
      %v2970 = vpop.permute.xlu0 %2969
      %v2974 = vunpack.c.l.b16 %v2800
      %v2975 = vunpack.c.l.b16 %v2801
      %v2976 = vunpack.c.l.b16 %v2802
      %v2977 = vpack.c.b16 %v2822, %v2974
      %v2978 = vpack.c.b16 %v2824, %v2823
      %v2979 = vpack.c.b16 %v2826, %v2825
      %v2980 = vpack.c.b16 %v2828, %v2827
      %v2981 = vpack.c.b16 %v2830, %v2829
      %v2982 = vpack.c.b16 %v2832, %v2831
      %v2983 = vpack.c.b16 %v2834, %v2833
      %v2984 = vpack.c.b16 %v2975, %v2835
      %v2985 = vpack.c.b16 %v2976, %v2976
      %v2986 = vrot.slane %v2977, 2
      %v2987 = vrot.slane %v2978, 2
      %v2988 = vsel %vm411, %v2986, %v2987
      %v2989 = vrot.slane %v2979, 2
      %v2990 = vsel %vm411, %v2987, %v2989
      %v2991 = vrot.slane %v2980, 2
      %v2992 = vsel %vm411, %v2989, %v2991
      %v2993 = vrot.slane %v2981, 2
      %v2994 = vsel %vm411, %v2991, %v2993
      %v2995 = vrot.slane %v2982, 2
      %v2996 = vsel %vm411, %v2993, %v2995
      %v2997 = vrot.slane %v2983, 2
      %v2998 = vsel %vm411, %v2995, %v2997
      %v2999 = vrot.slane %v2984, 2
      %v3000 = vsel %vm411, %v2997, %v2999
      %v3001 = vrot.slane %v2985, 2
      %v3002 = vsel %vm411, %v2999, %v3001
      %3003 = vrot.lane.b32.xlu0 %v2988, 24
      %v3004 = vpop.permute.xlu0 %3003
      %3005 = vrot.lane.b32.xlu0 %v2990, 24
      %v3006 = vpop.permute.xlu0 %3005
      %3007 = vrot.lane.b32.xlu0 %v2992, 24
      %v3008 = vpop.permute.xlu0 %3007
      %3009 = vrot.lane.b32.xlu0 %v2994, 24
      %v3010 = vpop.permute.xlu0 %3009
      %3011 = vrot.lane.b32.xlu0 %v2996, 24
      %v3012 = vpop.permute.xlu0 %3011
      %3013 = vrot.lane.b32.xlu0 %v2998, 24
      %v3014 = vpop.permute.xlu0 %3013
      %3015 = vrot.lane.b32.xlu0 %v3000, 24
      %v3016 = vpop.permute.xlu0 %3015
      %3017 = vrot.lane.b32.xlu0 %v3002, 24
      %v3018 = vpop.permute.xlu0 %3017
      %3019 = vrot.lane.b32.xlu0 %v3001, 24
      %v3020 = vpop.permute.xlu0 %3019
      %v3022 = vshrl.u32 %v2977, 16
      %v3024 = vrot.slane %v3022, 2
      %v3025 = vshll.u32 %v2977, 16
      %v3027 = vrot.slane %v3025, 3
      %v3028 = vor.u32 %v3024, %v3027
      %v3030 = vshrl.u32 %v2978, 16
      %v3032 = vrot.slane %v3030, 2
      %v3033 = vshll.u32 %v2978, 16
      %v3035 = vrot.slane %v3033, 3
      %v3036 = vor.u32 %v3032, %v3035
      %v3037 = vsel %vm447, %v3028, %v3036
      %v3039 = vshrl.u32 %v2979, 16
      %v3041 = vrot.slane %v3039, 2
      %v3042 = vshll.u32 %v2979, 16
      %v3044 = vrot.slane %v3042, 3
      %v3045 = vor.u32 %v3041, %v3044
      %v3046 = vsel %vm447, %v3036, %v3045
      %v3048 = vshrl.u32 %v2980, 16
      %v3050 = vrot.slane %v3048, 2
      %v3051 = vshll.u32 %v2980, 16
      %v3053 = vrot.slane %v3051, 3
      %v3054 = vor.u32 %v3050, %v3053
      %v3055 = vsel %vm447, %v3045, %v3054
      %v3057 = vshrl.u32 %v2981, 16
      %v3059 = vrot.slane %v3057, 2
      %v3060 = vshll.u32 %v2981, 16
      %v3062 = vrot.slane %v3060, 3
      %v3063 = vor.u32 %v3059, %v3062
      %v3064 = vsel %vm447, %v3054, %v3063
      %v3066 = vshrl.u32 %v2982, 16
      %v3068 = vrot.slane %v3066, 2
      %v3069 = vshll.u32 %v2982, 16
      %v3071 = vrot.slane %v3069, 3
      %v3072 = vor.u32 %v3068, %v3071
      %v3073 = vsel %vm447, %v3063, %v3072
      %v3075 = vshrl.u32 %v2983, 16
      %v3077 = vrot.slane %v3075, 2
      %v3078 = vshll.u32 %v2983, 16
      %v3080 = vrot.slane %v3078, 3
      %v3081 = vor.u32 %v3077, %v3080
      %v3082 = vsel %vm447, %v3072, %v3081
      %v3084 = vshrl.u32 %v2984, 16
      %v3086 = vrot.slane %v3084, 2
      %v3087 = vshll.u32 %v2984, 16
      %v3089 = vrot.slane %v3087, 3
      %v3090 = vor.u32 %v3086, %v3089
      %v3091 = vsel %vm447, %v3081, %v3090
      %v3093 = vshrl.u32 %v2985, 16
      %v3095 = vrot.slane %v3093, 2
      %v3096 = vshll.u32 %v2985, 16
      %v3098 = vrot.slane %v3096, 3
      %v3099 = vor.u32 %v3095, %v3098
      %v3100 = vsel %vm447, %v3090, %v3099
      %3101 = vrot.lane.b32.xlu0 %v3037, 32
      %v3102 = vpop.permute.xlu0 %3101
      %3103 = vrot.lane.b32.xlu0 %v3046, 32
      %v3104 = vpop.permute.xlu0 %3103
      %3105 = vrot.lane.b32.xlu0 %v3055, 32
      %v3106 = vpop.permute.xlu0 %3105
      %3107 = vrot.lane.b32.xlu0 %v3064, 32
      %v3108 = vpop.permute.xlu0 %3107
      %3109 = vrot.lane.b32.xlu0 %v3073, 32
      %v3110 = vpop.permute.xlu0 %3109
      %3111 = vrot.lane.b32.xlu0 %v3082, 32
      %v3112 = vpop.permute.xlu0 %3111
      %3113 = vrot.lane.b32.xlu0 %v3091, 32
      %v3114 = vpop.permute.xlu0 %3113
      %3115 = vrot.lane.b32.xlu0 %v3100, 32
      %v3116 = vpop.permute.xlu0 %3115
      %3117 = vrot.lane.b32.xlu0 %v3099, 32
      %v3118 = vpop.permute.xlu0 %3117
      %v3120 = vsel %vm546, %v2837, %v2918
      %v3122 = vsel %vm546, %v2838, %v2920
      %v3124 = vsel %vm546, %v2839, %v2922
      %v3126 = vsel %vm546, %v2840, %v2924
      %v3128 = vsel %vm546, %v2841, %v2926
      %v3130 = vsel %vm546, %v2842, %v2928
      %v3132 = vsel %vm546, %v2843, %v2930
      %v3134 = vsel %vm546, %v2844, %v2932
      %v3136 = vsel %vm546, %v2845, %v2934
      %v3138 = vsel %vm565, %v3120, %v2936
      %v3140 = vsel %vm565, %v3122, %v2938
      %v3142 = vsel %vm565, %v3124, %v2940
      %v3144 = vsel %vm565, %v3126, %v2942
      %v3146 = vsel %vm565, %v3128, %v2944
      %v3148 = vsel %vm565, %v3130, %v2946
      %v3150 = vsel %vm565, %v3132, %v2948
      %v3152 = vsel %vm565, %v3134, %v2950
      %v3154 = vsel %vm565, %v3136, %v2952
      %v3155 = vsel %vm584, %v3138, %v2936
      %v3156 = vsel %vm584, %v3140, %v2938
      %v3157 = vsel %vm584, %v3142, %v2940
      %v3158 = vsel %vm584, %v3144, %v2942
      %v3159 = vsel %vm584, %v3146, %v2944
      %v3160 = vsel %vm584, %v3148, %v2946
      %v3161 = vsel %vm584, %v3150, %v2948
      %v3162 = vsel %vm584, %v3152, %v2950
      %v3163 = vsel %vm584, %v3154, %v2952
      %v3165 = vsel %vm594, %v3155, %v2954
      %v3167 = vsel %vm594, %v3156, %v2956
      %v3169 = vsel %vm594, %v3157, %v2958
      %v3171 = vsel %vm594, %v3158, %v2960
      %v3173 = vsel %vm594, %v3159, %v2962
      %v3175 = vsel %vm594, %v3160, %v2964
      %v3177 = vsel %vm594, %v3161, %v2966
      %v3179 = vsel %vm594, %v3162, %v2968
      %v3181 = vsel %vm594, %v3163, %v2970
      %v3183 = vsel %vm613, %v3165, %v3004
      %v3185 = vsel %vm613, %v3167, %v3006
      %v3187 = vsel %vm613, %v3169, %v3008
      %v3189 = vsel %vm613, %v3171, %v3010
      %v3191 = vsel %vm613, %v3173, %v3012
      %v3193 = vsel %vm613, %v3175, %v3014
      %v3195 = vsel %vm613, %v3177, %v3016
      %v3197 = vsel %vm613, %v3179, %v3018
      %v3199 = vsel %vm613, %v3181, %v3020
      %v3200 = vsel %vm632, %v3183, %v3004
      %v3201 = vsel %vm632, %v3185, %v3006
      %v3202 = vsel %vm632, %v3187, %v3008
      %v3203 = vsel %vm632, %v3189, %v3010
      %v3204 = vsel %vm632, %v3191, %v3012
      %v3205 = vsel %vm632, %v3193, %v3014
      %v3206 = vsel %vm632, %v3195, %v3016
      %v3207 = vsel %vm632, %v3197, %v3018
      %v3208 = vsel %vm632, %v3199, %v3020
      %v3210 = vsel %vm642, %v3200, %v3102
      %v3212 = vsel %vm642, %v3201, %v3104
      %v3214 = vsel %vm642, %v3202, %v3106
      %v3216 = vsel %vm642, %v3203, %v3108
      %v3218 = vsel %vm642, %v3204, %v3110
      %v3220 = vsel %vm642, %v3205, %v3112
      %v3222 = vsel %vm642, %v3206, %v3114
      %v3224 = vsel %vm642, %v3207, %v3116
      %v3226 = vsel %vm642, %v3208, %v3118
      %v3227 = vld [vmem:[%s1] sm:$0xf]
      %v3228 = vld [vmem:[%s1 + $0x4] sm:$0xf]
      %v3229 = vld [vmem:[%s1 + $0x8] sm:$0xf]
      %v3230 = vld [vmem:[%s1 + $0xc] sm:$0xf]
      %v3231 = vld [vmem:[%s1 + $0x10] sm:$0x3]
      %v3232 = vld [vmem:[%s3] sm:$0x1]
      %v3234 = vlaneseq
      %v3235 = vshrl.u32 %v3234, 7
      %v3236 = vsub.s32 0, %v3235
      %v3237 = vrot.slane %v3232, %v3236
      %v3244 = vunpack.c.l.b16 %v3227
      %v3245 = vunpack.c.l.b16 %v3228
      %v3246 = vunpack.c.l.b16 %v3229
      %v3247 = vunpack.c.l.b16 %v3230
      %v3248 = vunpack.c.l.b16 %v3231
      %v3249 = vpack.c.b16 %v3245, %v3244
      %v3250 = vpack.c.b16 %v3247, %v3246
      %v3251 = vpack.c.b16 %v3248, %v3248
      %v3254 = vsel %vm688, %v3210, 0
      %v3256 = vsel %vm688, %v3212, 0
      %v3258 = vsel %vm688, %v3214, 0
      %v3260 = vsel %vm688, %v3216, 0
      %v3262 = vsel %vm688, %v3218, 0
      %v3264 = vsel %vm688, %v3220, 0
      %v3266 = vsel %vm688, %v3222, 0
      %v3268 = vsel %vm688, %v3224, 0
      %v3270 = vsel %vm688, %v3226, 0
      %v3273 = vsel %vm707, %v3251, 0
      %3275 = vmatprep.subr.bf16.mxu0 0
      %3276 = vmatpush1.bf16.msra.mxu0 %v3249
      %3277 = vmatprep.subr.bf16.mxu0 0
      %3278 = vmatpush1.bf16.msra.mxu0 %v3250
      %3279 = vmatprep.subr.bf16.mxu0 0
      %3280 = vmatpush1.bf16.msra.mxu0 %v3273
      %3281 = vmatprep.subr.bf16.mxu0 0
      %3282 = vmatpush1.bf16.msra.mxu0 0
      %3283 = vmatprep.subr.bf16.mxu0 0
      %3284 = vmatpush1.bf16.msra.mxu0 0
      %3285 = vmatprep.subr.bf16.mxu0 0
      %3286 = vmatpush1.bf16.msra.mxu0 0
      %3287 = vmatprep.subr.bf16.mxu0 0
      %3288 = vmatpush1.bf16.msra.mxu0 0
      %3289 = vmatprep.subr.bf16.mxu0 0
      %3290 = vmatpush1.bf16.msra.mxu0 0
      %3291 = vmatprep.subr.bf16.mxu0 0
      %3292 = vmatpush1.bf16.msra.mxu0 0
      %3293 = vmatprep.subr.bf16.mxu0 0
      %3294 = vmatpush1.bf16.msra.mxu0 0
      %3295 = vmatprep.subr.bf16.mxu0 0
      %3296 = vmatpush1.bf16.msra.mxu0 0
      %3297 = vmatprep.subr.bf16.mxu0 0
      %3298 = vmatpush1.bf16.msra.mxu0 0
      %3299 = vmatprep.subr.bf16.mxu0 0
      %3300 = vmatpush1.bf16.msra.mxu0 0
      %3301 = vmatprep.subr.bf16.mxu0 0
      %3302 = vmatpush1.bf16.msra.mxu0 0
      %3303 = vmatprep.subr.bf16.mxu0 0
      %3304 = vmatpush1.bf16.msra.mxu0 0
      %3305 = vmatprep.subr.bf16.mxu0 0
      %3306 = vmatpush1.bf16.msra.mxu0 0
      %3307 = vmatprep.mubr.bf16.mxu0 0
      %3308 = vmatmul.mubr.bf16.gmra.mrb[0].mxu0 %v3254
      %v3309 = vpop.f32.mrb[0].mxu0
      %v3310 = vadd.f32 %v3237, %v3309
      %v3311 = vpop.f32.mrb[0].mxu0
      %v3312 = vpop.f32.mrb[0].mxu0
      %v3313 = vadd.f32 %v3237, %v3312
      %v3314 = vpop.f32.mrb[0].mxu0
      %3315 = vmatprep.mubr.bf16.mxu0 0
      %3316 = vmatmul.mubr.bf16.gmra.mrb[0].mxu0 %v3256
      %v3317 = vpop.f32.mrb[0].mxu0
      %v3318 = vadd.f32 %v3237, %v3317
      %v3319 = vpop.f32.mrb[0].mxu0
      %v3320 = vpop.f32.mrb[0].mxu0
      %v3321 = vadd.f32 %v3237, %v3320
      %v3322 = vpop.f32.mrb[0].mxu0
      %3323 = vmatprep.mubr.bf16.mxu0 0
      %3324 = vmatmul.mubr.bf16.gmra.mrb[0].mxu0 %v3258
      %v3325 = vpop.f32.mrb[0].mxu0
      %v3326 = vadd.f32 %v3237, %v3325
      %v3327 = vpop.f32.mrb[0].mxu0
      %v3328 = vpop.f32.mrb[0].mxu0
      %v3329 = vadd.f32 %v3237, %v3328
      %v3330 = vpop.f32.mrb[0].mxu0
      %3331 = vmatprep.mubr.bf16.mxu0 0
      %3332 = vmatmul.mubr.bf16.gmra.mrb[0].mxu0 %v3260
      %v3333 = vpop.f32.mrb[0].mxu0
      %v3334 = vadd.f32 %v3237, %v3333
      %v3335 = vpop.f32.mrb[0].mxu0
      %v3336 = vpop.f32.mrb[0].mxu0
      %v3337 = vadd.f32 %v3237, %v3336
      %v3338 = vpop.f32.mrb[0].mxu0
      %3339 = vmatprep.mubr.bf16.mxu0 0
      %3340 = vmatmul.mubr.bf16.gmra.mrb[0].mxu0 %v3262
      %v3341 = vpop.f32.mrb[0].mxu0
      %v3342 = vadd.f32 %v3237, %v3341
      %v3343 = vpop.f32.mrb[0].mxu0
      %v3344 = vpop.f32.mrb[0].mxu0
      %v3345 = vadd.f32 %v3237, %v3344
      %v3346 = vpop.f32.mrb[0].mxu0
      %3347 = vmatprep.mubr.bf16.mxu0 0
      %3348 = vmatmul.mubr.bf16.gmra.mrb[0].mxu0 %v3264
      %v3349 = vpop.f32.mrb[0].mxu0
      %v3350 = vadd.f32 %v3237, %v3349
      %v3351 = vpop.f32.mrb[0].mxu0
      %v3352 = vpop.f32.mrb[0].mxu0
      %v3353 = vadd.f32 %v3237, %v3352
      %v3354 = vpop.f32.mrb[0].mxu0
      %3355 = vmatprep.mubr.bf16.mxu0 0
      %3356 = vmatmul.mubr.bf16.gmra.mrb[0].mxu0 %v3266
      %v3357 = vpop.f32.mrb[0].mxu0
      %v3358 = vadd.f32 %v3237, %v3357
      %v3359 = vpop.f32.mrb[0].mxu0
      %v3360 = vpop.f32.mrb[0].mxu0
      %v3361 = vadd.f32 %v3237, %v3360
      %v3362 = vpop.f32.mrb[0].mxu0
      %3363 = vmatprep.mubr.bf16.mxu0 0
      %3364 = vmatmul.mubr.bf16.gmra.mrb[0].mxu0 %v3268
      %v3365 = vpop.f32.mrb[0].mxu0
      %v3366 = vadd.f32 %v3237, %v3365
      %v3367 = vpop.f32.mrb[0].mxu0
      %v3368 = vpop.f32.mrb[0].mxu0
      %v3369 = vadd.f32 %v3237, %v3368
      %v3370 = vpop.f32.mrb[0].mxu0
      %3371 = vmatprep.mubr.bf16.mxu0 0
      %3372 = vmatmul.mubr.bf16.gmra.mrb[0].mxu0 %v3270
      %v3373 = vpop.f32.mrb[0].mxu0
      %v3374 = vadd.f32 %v3237, %v3373
      %v3375 = vpop.f32.mrb[0].mxu0
      %v3376 = vpop.f32.mrb[0].mxu0
      %v3377 = vpop.f32.mrb[0].mxu0
      %3378 = vdwg.mxu0
      %v3379 = vmax.f32 %v3310, 0.0
      %v3380 = vmax.f32 %v3313, 0.0
      %v3381 = vmax.f32 %v3318, 0.0
      %v3382 = vmax.f32 %v3321, 0.0
      %v3383 = vmax.f32 %v3326, 0.0
      %v3384 = vmax.f32 %v3329, 0.0
      %v3385 = vmax.f32 %v3334, 0.0
      %v3386 = vmax.f32 %v3337, 0.0
      %v3387 = vmax.f32 %v3342, 0.0
      %v3388 = vmax.f32 %v3345, 0.0
      %v3389 = vmax.f32 %v3350, 0.0
      %v3390 = vmax.f32 %v3353, 0.0
      %v3391 = vmax.f32 %v3358, 0.0
      %v3392 = vmax.f32 %v3361, 0.0
      %v3393 = vmax.f32 %v3366, 0.0
      %v3394 = vmax.f32 %v3369, 0.0
      %v3395 = vmax.f32 %v3374, 0.0
      %v3396 = vpack.c.bf16 %v3380, %v3379
      %v3397 = vpack.c.bf16 %v3382, %v3381
      %v3398 = vpack.c.bf16 %v3384, %v3383
      %v3399 = vpack.c.bf16 %v3386, %v3385
      %v3400 = vpack.c.bf16 %v3388, %v3387
      %v3401 = vpack.c.bf16 %v3390, %v3389
      %v3402 = vpack.c.bf16 %v3392, %v3391
      %v3403 = vpack.c.bf16 %v3394, %v3393
      %v3404 = vpack.c.bf16 %v3395, %v3395
      %v3406 = vshrl.u32 %v3396, 16
      %v3408 = vshll.u32 %v3396, 16
      %v3410 = vrot.slane %v3408, 1
      %v3411 = vor.u32 %v3406, %v3410
      %v3413 = vshll.u32 %v3397, 16
      %v3415 = vrot.slane %v3413, 1
      %v3416 = vsel %vm270, %v3411, %v3415
      %v3417 = vshrl.u32 %v3397, 16
      %v3419 = vor.u32 %v3417, %v3415
      %v3421 = vshll.u32 %v3398, 16
      %v3423 = vrot.slane %v3421, 1
      %v3424 = vsel %vm270, %v3419, %v3423
      %v3425 = vshrl.u32 %v3398, 16
      %v3427 = vor.u32 %v3425, %v3423
      %v3429 = vshll.u32 %v3399, 16
      %v3431 = vrot.slane %v3429, 1
      %v3432 = vsel %vm270, %v3427, %v3431
      %v3433 = vshrl.u32 %v3399, 16
      %v3435 = vor.u32 %v3433, %v3431
      %v3437 = vshll.u32 %v3400, 16
      %v3439 = vrot.slane %v3437, 1
      %v3440 = vsel %vm270, %v3435, %v3439
      %v3441 = vshrl.u32 %v3400, 16
      %v3443 = vor.u32 %v3441, %v3439
      %v3445 = vshll.u32 %v3401, 16
      %v3447 = vrot.slane %v3445, 1
      %v3448 = vsel %vm270, %v3443, %v3447
      %v3449 = vshrl.u32 %v3401, 16
      %v3451 = vor.u32 %v3449, %v3447
      %v3453 = vshll.u32 %v3402, 16
      %v3455 = vrot.slane %v3453, 1
      %v3456 = vsel %vm270, %v3451, %v3455
      %v3457 = vshrl.u32 %v3402, 16
      %v3459 = vor.u32 %v3457, %v3455
      %3460 = vrot.lane.b32.xlu0 %v3416, 32
      %v3461 = vpop.permute.xlu0 %3460
      %3462 = vrot.lane.b32.xlu0 %v3424, 32
      %v3463 = vpop.permute.xlu0 %3462
      %3464 = vrot.lane.b32.xlu0 %v3432, 32
      %v3465 = vpop.permute.xlu0 %3464
      %3466 = vrot.lane.b32.xlu0 %v3440, 32
      %v3467 = vpop.permute.xlu0 %3466
      %3468 = vrot.lane.b32.xlu0 %v3448, 32
      %v3469 = vpop.permute.xlu0 %3468
      %3470 = vrot.lane.b32.xlu0 %v3456, 32
      %v3471 = vpop.permute.xlu0 %3470
      %3472 = vrot.lane.b32.xlu0 %v3459, 32
      %v3473 = vpop.permute.xlu0 %3472
      %v3481 = vrot.slane %v3396, 1
      %v3482 = vrot.slane %v3397, 1
      %v3483 = vsel %vm917, %v3481, %v3482
      %v3484 = vrot.slane %v3398, 1
      %v3485 = vsel %vm917, %v3482, %v3484
      %v3486 = vrot.slane %v3399, 1
      %v3487 = vsel %vm917, %v3484, %v3486
      %v3488 = vrot.slane %v3400, 1
      %v3489 = vsel %vm917, %v3486, %v3488
      %v3490 = vrot.slane %v3401, 1
      %v3491 = vsel %vm917, %v3488, %v3490
      %v3492 = vrot.slane %v3402, 1
      %v3493 = vsel %vm917, %v3490, %v3492
      %3494 = vrot.lane.b32.xlu0 %v3483, 64
      %v3495 = vpop.permute.xlu0 %3494
      %3496 = vrot.lane.b32.xlu0 %v3485, 64
      %v3497 = vpop.permute.xlu0 %3496
      %3498 = vrot.lane.b32.xlu0 %v3487, 64
      %v3499 = vpop.permute.xlu0 %3498
      %3500 = vrot.lane.b32.xlu0 %v3489, 64
      %v3501 = vpop.permute.xlu0 %3500
      %3502 = vrot.lane.b32.xlu0 %v3491, 64
      %v3503 = vpop.permute.xlu0 %3502
      %3504 = vrot.lane.b32.xlu0 %v3493, 64
      %v3505 = vpop.permute.xlu0 %3504
      %3506 = vrot.lane.b32.xlu0 %v3492, 64
      %v3507 = vpop.permute.xlu0 %3506
      %v3509 = vrot.slane %v3396, 6
      %v3510 = vrot.slane %v3397, 6
      %v3511 = vsel %vm946, %v3509, %v3510
      %v3512 = vrot.slane %v3398, 6
      %v3513 = vsel %vm946, %v3510, %v3512
      %v3514 = vrot.slane %v3399, 6
      %v3515 = vsel %vm946, %v3512, %v3514
      %v3516 = vrot.slane %v3400, 6
      %v3517 = vsel %vm946, %v3514, %v3516
      %v3518 = vrot.slane %v3401, 6
      %v3519 = vsel %vm946, %v3516, %v3518
      %v3520 = vrot.slane %v3402, 6
      %v3521 = vsel %vm946, %v3518, %v3520
      %v3522 = vrot.slane %v3403, 6
      %v3523 = vsel %vm946, %v3520, %v3522
      %3524 = vrot.lane.b32.xlu0 %v3511, 96
      %v3525 = vpop.permute.xlu0 %3524
      %3526 = vrot.lane.b32.xlu0 %v3513, 96
      %v3527 = vpop.permute.xlu0 %3526
      %3528 = vrot.lane.b32.xlu0 %v3515, 96
      %v3529 = vpop.permute.xlu0 %3528
      %3530 = vrot.lane.b32.xlu0 %v3517, 96
      %v3531 = vpop.permute.xlu0 %3530
      %3532 = vrot.lane.b32.xlu0 %v3519, 96
      %v3533 = vpop.permute.xlu0 %3532
      %3534 = vrot.lane.b32.xlu0 %v3521, 96
      %v3535 = vpop.permute.xlu0 %3534
      %3536 = vrot.lane.b32.xlu0 %v3523, 96
      %v3537 = vpop.permute.xlu0 %3536
      %v3538 = vrot.slane %v3406, 6
      %v3539 = vrot.slane %v3408, 7
      %v3540 = vor.u32 %v3538, %v3539
      %v3541 = vrot.slane %v3417, 6
      %v3542 = vrot.slane %v3413, 7
      %v3543 = vor.u32 %v3541, %v3542
      %v3544 = vsel %vm976, %v3540, %v3543
      %v3545 = vrot.slane %v3425, 6
      %v3546 = vrot.slane %v3421, 7
      %v3547 = vor.u32 %v3545, %v3546
      %v3548 = vsel %vm976, %v3543, %v3547
      %v3549 = vrot.slane %v3433, 6
      %v3550 = vrot.slane %v3429, 7
      %v3551 = vor.u32 %v3549, %v3550
      %v3552 = vsel %vm976, %v3547, %v3551
      %v3553 = vrot.slane %v3441, 6
      %v3554 = vrot.slane %v3437, 7
      %v3555 = vor.u32 %v3553, %v3554
      %v3556 = vsel %vm976, %v3551, %v3555
      %v3557 = vrot.slane %v3449, 6
      %v3558 = vrot.slane %v3445, 7
      %v3559 = vor.u32 %v3557, %v3558
      %v3560 = vsel %vm976, %v3555, %v3559
      %v3561 = vrot.slane %v3457, 6
      %v3562 = vrot.slane %v3453, 7
      %v3563 = vor.u32 %v3561, %v3562
      %v3564 = vsel %vm976, %v3559, %v3563
      %v3566 = vshrl.u32 %v3403, 16
      %v3568 = vrot.slane %v3566, 6
      %v3569 = vshll.u32 %v3403, 16
      %v3571 = vrot.slane %v3569, 7
      %v3572 = vor.u32 %v3568, %v3571
      %v3573 = vsel %vm976, %v3563, %v3572
      %v3574 = vrot.slane %v3396, 7
      %v3575 = vrot.slane %v3397, 7
      %v3576 = vsel %vm1013, %v3574, %v3575
      %v3577 = vrot.slane %v3398, 7
      %v3578 = vsel %vm1013, %v3575, %v3577
      %v3579 = vrot.slane %v3399, 7
      %v3580 = vsel %vm1013, %v3577, %v3579
      %v3581 = vrot.slane %v3400, 7
      %v3582 = vsel %vm1013, %v3579, %v3581
      %v3583 = vrot.slane %v3401, 7
      %v3584 = vsel %vm1013, %v3581, %v3583
      %v3585 = vrot.slane %v3402, 7
      %v3586 = vsel %vm1013, %v3583, %v3585
      %v3587 = vrot.slane %v3403, 7
      %v3588 = vsel %vm1013, %v3585, %v3587
      %3589 = vrot.lane.b32.xlu0 %v3576, 32
      %v3590 = vpop.permute.xlu0 %3589
      %3591 = vrot.lane.b32.xlu0 %v3578, 32
      %v3592 = vpop.permute.xlu0 %3591
      %3593 = vrot.lane.b32.xlu0 %v3580, 32
      %v3594 = vpop.permute.xlu0 %3593
      %3595 = vrot.lane.b32.xlu0 %v3582, 32
      %v3596 = vpop.permute.xlu0 %3595
      %3597 = vrot.lane.b32.xlu0 %v3584, 32
      %v3598 = vpop.permute.xlu0 %3597
      %3599 = vrot.lane.b32.xlu0 %v3586, 32
      %v3600 = vpop.permute.xlu0 %3599
      %3601 = vrot.lane.b32.xlu0 %v3588, 32
      %v3602 = vpop.permute.xlu0 %3601
      %v3604 = vrot.slane %v3397, 4
      %v3605 = vrot.slane %v3398, 4
      %v3606 = vsel %vm1044, %v3604, %v3605
      %v3607 = vrot.slane %v3399, 4
      %v3608 = vsel %vm1044, %v3605, %v3607
      %v3609 = vrot.slane %v3400, 4
      %v3610 = vsel %vm1044, %v3607, %v3609
      %v3611 = vrot.slane %v3401, 4
      %v3612 = vsel %vm1044, %v3609, %v3611
      %v3613 = vrot.slane %v3402, 4
      %v3614 = vsel %vm1044, %v3611, %v3613
      %v3615 = vrot.slane %v3403, 4
      %v3616 = vsel %vm1044, %v3613, %v3615
      %v3617 = vrot.slane %v3404, 4
      %v3618 = vsel %vm1044, %v3615, %v3617
      %3619 = vrot.lane.b32.xlu0 %v3606, 64
      %v3620 = vpop.permute.xlu0 %3619
      %3621 = vrot.lane.b32.xlu0 %v3608, 64
      %v3622 = vpop.permute.xlu0 %3621
      %3623 = vrot.lane.b32.xlu0 %v3610, 64
      %v3624 = vpop.permute.xlu0 %3623
      %3625 = vrot.lane.b32.xlu0 %v3612, 64
      %v3626 = vpop.permute.xlu0 %3625
      %3627 = vrot.lane.b32.xlu0 %v3614, 64
      %v3628 = vpop.permute.xlu0 %3627
      %3629 = vrot.lane.b32.xlu0 %v3616, 64
      %v3630 = vpop.permute.xlu0 %3629
      %3631 = vrot.lane.b32.xlu0 %v3618, 64
      %v3632 = vpop.permute.xlu0 %3631
      %v3633 = vrot.slane %v3417, 4
      %v3634 = vrot.slane %v3413, 5
      %v3635 = vor.u32 %v3633, %v3634
      %v3636 = vrot.slane %v3425, 4
      %v3637 = vrot.slane %v3421, 5
      %v3638 = vor.u32 %v3636, %v3637
      %v3639 = vsel %vm1074, %v3635, %v3638
      %v3640 = vrot.slane %v3433, 4
      %v3641 = vrot.slane %v3429, 5
      %v3642 = vor.u32 %v3640, %v3641
      %v3643 = vsel %vm1074, %v3638, %v3642
      %v3644 = vrot.slane %v3441, 4
      %v3645 = vrot.slane %v3437, 5
      %v3646 = vor.u32 %v3644, %v3645
      %v3647 = vsel %vm1074, %v3642, %v3646
      %v3648 = vrot.slane %v3449, 4
      %v3649 = vrot.slane %v3445, 5
      %v3650 = vor.u32 %v3648, %v3649
      %v3651 = vsel %vm1074, %v3646, %v3650
      %v3652 = vrot.slane %v3457, 4
      %v3653 = vrot.slane %v3453, 5
      %v3654 = vor.u32 %v3652, %v3653
      %v3655 = vsel %vm1074, %v3650, %v3654
      %v3656 = vrot.slane %v3566, 4
      %v3657 = vrot.slane %v3569, 5
      %v3658 = vor.u32 %v3656, %v3657
      %v3659 = vsel %vm1074, %v3654, %v3658
      %v3661 = vshrl.u32 %v3404, 16
      %v3663 = vrot.slane %v3661, 4
      %v3664 = vshll.u32 %v3404, 16
      %v3666 = vrot.slane %v3664, 5
      %v3667 = vor.u32 %v3663, %v3666
      %v3668 = vsel %vm1074, %v3658, %v3667
      %3669 = vrot.lane.b32.xlu0 %v3639, 96
      %v3670 = vpop.permute.xlu0 %3669
      %3671 = vrot.lane.b32.xlu0 %v3643, 96
      %v3672 = vpop.permute.xlu0 %3671
      %3673 = vrot.lane.b32.xlu0 %v3647, 96
      %v3674 = vpop.permute.xlu0 %3673
      %3675 = vrot.lane.b32.xlu0 %v3651, 96
      %v3676 = vpop.permute.xlu0 %3675
      %3677 = vrot.lane.b32.xlu0 %v3655, 96
      %v3678 = vpop.permute.xlu0 %3677
      %3679 = vrot.lane.b32.xlu0 %v3659, 96
      %v3680 = vpop.permute.xlu0 %3679
      %3681 = vrot.lane.b32.xlu0 %v3668, 96
      %v3682 = vpop.permute.xlu0 %3681
      %v3683 = vrot.slane %v3397, 5
      %v3684 = vrot.slane %v3398, 5
      %v3685 = vsel %vm1125, %v3683, %v3684
      %v3686 = vrot.slane %v3399, 5
      %v3687 = vsel %vm1125, %v3684, %v3686
      %v3688 = vrot.slane %v3400, 5
      %v3689 = vsel %vm1125, %v3686, %v3688
      %v3690 = vrot.slane %v3401, 5
      %v3691 = vsel %vm1125, %v3688, %v3690
      %v3692 = vrot.slane %v3402, 5
      %v3693 = vsel %vm1125, %v3690, %v3692
      %v3694 = vrot.slane %v3403, 5
      %v3695 = vsel %vm1125, %v3692, %v3694
      %v3696 = vrot.slane %v3404, 5
      %v3697 = vsel %vm1125, %v3694, %v3696
      %v3699 = vsel %vm642, %v3396, %v3461
      %v3701 = vsel %vm642, %v3397, %v3463
      %v3703 = vsel %vm642, %v3398, %v3465
      %v3705 = vsel %vm642, %v3399, %v3467
      %v3707 = vsel %vm642, %v3400, %v3469
      %v3709 = vsel %vm642, %v3401, %v3471
      %v3711 = vsel %vm642, %v3402, %v3473
      %v3713 = vsel %vm1155, %v3699, %v3495
      %v3715 = vsel %vm1155, %v3701, %v3497
      %v3717 = vsel %vm1155, %v3703, %v3499
      %v3719 = vsel %vm1155, %v3705, %v3501
      %v3721 = vsel %vm1155, %v3707, %v3503
      %v3723 = vsel %vm1155, %v3709, %v3505
      %v3725 = vsel %vm1155, %v3711, %v3507
      %v3727 = vsel %vm1170, %v3713, %v3525
      %v3730 = vsel %vm1170, %v3715, %v3527
      %v3733 = vsel %vm1170, %v3717, %v3529
      %v3736 = vsel %vm1170, %v3719, %v3531
      %v3739 = vsel %vm1170, %v3721, %v3533
      %v3742 = vsel %vm1170, %v3723, %v3535
      %v3745 = vsel %vm1170, %v3725, %v3537
      %v3749 = vsel %vm642, %v3544, %v3590
      %v3752 = vsel %vm642, %v3548, %v3592
      %v3755 = vsel %vm642, %v3552, %v3594
      %v3758 = vsel %vm642, %v3556, %v3596
      %v3761 = vsel %vm642, %v3560, %v3598
      %v3764 = vsel %vm642, %v3564, %v3600
      %v3767 = vsel %vm642, %v3573, %v3602
      %v3769 = vsel %vm1155, %v3749, %v3620
      %v3771 = vsel %vm1155, %v3752, %v3622
      %v3773 = vsel %vm1155, %v3755, %v3624
      %v3775 = vsel %vm1155, %v3758, %v3626
      %v3777 = vsel %vm1155, %v3761, %v3628
      %v3779 = vsel %vm1155, %v3764, %v3630
      %v3781 = vsel %vm1155, %v3767, %v3632
      %v3783 = vsel %vm1170, %v3769, %v3670
      %v3786 = vsel %vm1170, %v3771, %v3672
      %v3789 = vsel %vm1170, %v3773, %v3674
      %v3792 = vsel %vm1170, %v3775, %v3676
      %v3795 = vsel %vm1170, %v3777, %v3678
      %v3798 = vsel %vm1170, %v3779, %v3680
      %v3801 = vsel %vm1170, %v3781, %v3682
      %v3803 = vld [vmem:[%s2] sm:$0xf]
      %v3804 = vld [vmem:[%s2 + $0x4] sm:$0xf]
      %v3805 = vld [vmem:[%s2 + $0x8] sm:$0xf]
      %v3806 = vld [vmem:[%s2 + $0xc] sm:$0xf]
      %v3807 = vld [vmem:[%s2 + $0x10] sm:$0xf]
      %v3808 = vld [vmem:[%s2 + $0x14] sm:$0xf]
      %v3809 = vld [vmem:[%s2 + $0x18] sm:$0xf]
      %v3810 = vld [vmem:[%s2 + $0x1c] sm:$0xf]
      %v3811 = vld [vmem:[%s2 + $0x20] sm:$0xf]
      %v3812 = vld [vmem:[%s2 + $0x24] sm:$0xf]
      %v3813 = vld [vmem:[%s2 + $0x28] sm:$0xf]
      %v3814 = vld [vmem:[%s2 + $0x2c] sm:$0xf]
      %v3815 = vld [vmem:[%s2 + $0x30] sm:$0xf]
      %v3816 = vld [vmem:[%s2 + $0x34] sm:$0xf]
      %v3817 = vld [vmem:[%s2 + $0x38] sm:$0xf]
      %v3818 = vld [vmem:[%s2 + $0x3c] sm:$0xf]
      %v3819 = vld [vmem:[%s2 + $0x40] sm:$0xf]
      %v3820 = vld [vmem:[%s2 + $0x44] sm:$0xf]
      %v3821 = vld [vmem:[%s2 + $0x48] sm:$0xf]
      %v3822 = vld [vmem:[%s2 + $0x4c] sm:$0xf]
      %v3823 = vld [vmem:[%s2 + $0x50] sm:$0xf]
      %v3824 = vld [vmem:[%s2 + $0x54] sm:$0xf]
      %v3825 = vld [vmem:[%s2 + $0x58] sm:$0xf]
      %v3826 = vld [vmem:[%s2 + $0x5c] sm:$0xf]
      %v3827 = vld [vmem:[%s2 + $0x60] sm:$0xf]
      %v3828 = vld [vmem:[%s2 + $0x64] sm:$0xf]
      %v3829 = vld [vmem:[%s2 + $0x68] sm:$0xf]
      %v3830 = vld [vmem:[%s2 + $0x6c] sm:$0xf]
      %v3831 = vld [vmem:[%s2 + $0x70] sm:$0xf]
      %v3832 = vld [vmem:[%s2 + $0x74] sm:$0xf]
      %v3833 = vld [vmem:[%s2 + $0x78] sm:$0xf]
      %v3834 = vld [vmem:[%s2 + $0x7c] sm:$0xf]
      %v3835 = vld [vmem:[%s2 + $0x80] sm:$0xf]
      %v3836 = vld [vmem:[%s2 + $0x84] sm:$0xf]
      %v3837 = vld [vmem:[%s2 + $0x88] sm:$0xf]
      %v3838 = vld [vmem:[%s2 + $0x8c] sm:$0xf]
      %v3839 = vld [vmem:[%s1284] sm:$0x1]
      %v3841 = vlaneseq
      %v3842 = vshrl.u32 %v3841, 7
      %v3843 = vsub.s32 0, %v3842
      %v3844 = vrot.slane %v3839, %v3843
      %v3882 = vunpack.c.l.b16 %v3803
      %v3883 = vunpack.c.l.b16 %v3804
      %v3884 = vunpack.c.l.b16 %v3805
      %v3885 = vunpack.c.l.b16 %v3806
      %v3886 = vunpack.c.l.b16 %v3807
      %v3887 = vunpack.c.l.b16 %v3808
      %v3888 = vunpack.c.l.b16 %v3809
      %v3889 = vunpack.c.l.b16 %v3810
      %v3890 = vunpack.c.l.b16 %v3811
      %v3891 = vunpack.c.l.b16 %v3812
      %v3892 = vunpack.c.l.b16 %v3813
      %v3893 = vunpack.c.l.b16 %v3814
      %v3894 = vunpack.c.l.b16 %v3815
      %v3895 = vunpack.c.l.b16 %v3816
      %v3896 = vunpack.c.l.b16 %v3817
      %v3897 = vunpack.c.l.b16 %v3818
      %v3898 = vunpack.c.l.b16 %v3819
      %v3899 = vunpack.c.l.b16 %v3820
      %v3900 = vunpack.c.l.b16 %v3821
      %v3901 = vunpack.c.l.b16 %v3822
      %v3902 = vunpack.c.l.b16 %v3823
      %v3903 = vunpack.c.l.b16 %v3824
      %v3904 = vunpack.c.l.b16 %v3825
      %v3905 = vunpack.c.l.b16 %v3826
      %v3906 = vunpack.c.l.b16 %v3827
      %v3907 = vunpack.c.l.b16 %v3828
      %v3908 = vunpack.c.l.b16 %v3829
      %v3909 = vunpack.c.l.b16 %v3830
      %v3910 = vunpack.c.l.b16 %v3831
      %v3911 = vunpack.c.l.b16 %v3832
      %v3912 = vunpack.c.l.b16 %v3833
      %v3913 = vunpack.c.l.b16 %v3834
      %v3914 = vunpack.c.l.b16 %v3835
      %v3915 = vunpack.c.l.b16 %v3836
      %v3916 = vunpack.c.l.b16 %v3837
      %v3917 = vunpack.c.l.b16 %v3838
      %v3918 = vpack.c.b16 %v3883, %v3882
      %v3919 = vpack.c.b16 %v3885, %v3884
      %v3920 = vpack.c.b16 %v3887, %v3886
      %v3921 = vpack.c.b16 %v3889, %v3888
      %v3922 = vpack.c.b16 %v3891, %v3890
      %v3923 = vpack.c.b16 %v3893, %v3892
      %v3924 = vpack.c.b16 %v3895, %v3894
      %v3925 = vpack.c.b16 %v3897, %v3896
      %v3926 = vpack.c.b16 %v3899, %v3898
      %v3927 = vpack.c.b16 %v3901, %v3900
      %v3928 = vpack.c.b16 %v3903, %v3902
      %v3929 = vpack.c.b16 %v3905, %v3904
      %v3930 = vpack.c.b16 %v3907, %v3906
      %v3931 = vpack.c.b16 %v3909, %v3908
      %v3932 = vpack.c.b16 %v3911, %v3910
      %v3933 = vpack.c.b16 %v3913, %v3912
      %v3934 = vpack.c.b16 %v3915, %v3914
      %v3935 = vpack.c.b16 %v3917, %v3916
      %v3955 = vsel %vm642, %v3685, 0
      %v3958 = vsel %vm642, %v3687, 0
      %v3961 = vsel %vm642, %v3689, 0
      %v3964 = vsel %vm642, %v3691, 0
      %v3967 = vsel %vm642, %v3693, 0
      %v3970 = vsel %vm642, %v3695, 0
      %v3973 = vsel %vm642, %v3697, 0
      %3975 = vmatprep.subr.bf16.mxu0 0
      %3976 = vmatpush1.bf16.msra.mxu0 %v3918
      %3977 = vmatprep.subr.bf16.mxu0 0
      %3978 = vmatpush1.bf16.msra.mxu0 %v3919
      %3979 = vmatprep.subr.bf16.mxu0 0
      %3980 = vmatpush1.bf16.msra.mxu0 %v3920
      %3981 = vmatprep.subr.bf16.mxu0 0
      %3982 = vmatpush1.bf16.msra.mxu0 %v3921
      %3983 = vmatprep.subr.bf16.mxu0 0
      %3984 = vmatpush1.bf16.msra.mxu0 %v3922
      %3985 = vmatprep.subr.bf16.mxu0 0
      %3986 = vmatpush1.bf16.msra.mxu0 %v3923
      %3987 = vmatprep.subr.bf16.mxu0 0
      %3988 = vmatpush1.bf16.msra.mxu0 %v3924
      %3989 = vmatprep.subr.bf16.mxu0 0
      %3990 = vmatpush1.bf16.msra.mxu0 %v3925
      %3991 = vmatprep.subr.bf16.mxu0 0
      %3992 = vmatpush1.bf16.msra.mxu0 %v3926
      %3993 = vmatprep.subr.bf16.mxu0 0
      %3994 = vmatpush1.bf16.msra.mxu0 %v3927
      %3995 = vmatprep.subr.bf16.mxu0 0
      %3996 = vmatpush1.bf16.msra.mxu0 %v3928
      %3997 = vmatprep.subr.bf16.mxu0 0
      %3998 = vmatpush1.bf16.msra.mxu0 %v3929
      %3999 = vmatprep.subr.bf16.mxu0 0
      %4000 = vmatpush1.bf16.msra.mxu0 %v3930
      %4001 = vmatprep.subr.bf16.mxu0 0
      %4002 = vmatpush1.bf16.msra.mxu0 %v3931
      %4003 = vmatprep.subr.bf16.mxu0 0
      %4004 = vmatpush1.bf16.msra.mxu0 %v3932
      %4005 = vmatprep.subr.bf16.mxu0 0
      %4006 = vmatpush1.bf16.msra.mxu0 %v3933
      %4007 = vmatprep.mubr.bf16.mxu0 %v3783
      %4008 = vmatmul.mubr.bf16.gmra.mrb[0].mxu0 %v3727
      %v4009 = vpop.f32.mrb[0].mxu0
      %v4010 = vadd.f32 %v3844, %v4009
      %v4011 = vpop.f32.mrb[0].mxu0
      %v4012 = vpop.f32.mrb[0].mxu0
      %v4013 = vadd.f32 %v3844, %v4012
      %v4014 = vpop.f32.mrb[0].mxu0
      %4015 = vmatprep.mubr.bf16.mxu0 %v3786
      %4016 = vmatmul.mubr.bf16.gmra.mrb[0].mxu0 %v3730
      %v4017 = vpop.f32.mrb[0].mxu0
      %v4018 = vadd.f32 %v3844, %v4017
      %v4019 = vpop.f32.mrb[0].mxu0
      %v4020 = vpop.f32.mrb[0].mxu0
      %v4021 = vadd.f32 %v3844, %v4020
      %v4022 = vpop.f32.mrb[0].mxu0
      %4023 = vmatprep.mubr.bf16.mxu0 %v3789
      %4024 = vmatmul.mubr.bf16.gmra.mrb[0].mxu0 %v3733
      %v4025 = vpop.f32.mrb[0].mxu0
      %v4026 = vadd.f32 %v3844, %v4025
      %v4027 = vpop.f32.mrb[0].mxu0
      %v4028 = vpop.f32.mrb[0].mxu0
      %v4029 = vadd.f32 %v3844, %v4028
      %v4030 = vpop.f32.mrb[0].mxu0
      %4031 = vmatprep.mubr.bf16.mxu0 %v3792
      %4032 = vmatmul.mubr.bf16.gmra.mrb[0].mxu0 %v3736
      %v4033 = vpop.f32.mrb[0].mxu0
      %v4034 = vadd.f32 %v3844, %v4033
      %v4035 = vpop.f32.mrb[0].mxu0
      %v4036 = vpop.f32.mrb[0].mxu0
      %v4037 = vadd.f32 %v3844, %v4036
      %v4038 = vpop.f32.mrb[0].mxu0
      %4039 = vmatprep.mubr.bf16.mxu0 %v3795
      %4040 = vmatmul.mubr.bf16.gmra.mrb[0].mxu0 %v3739
      %v4041 = vpop.f32.mrb[0].mxu0
      %v4042 = vadd.f32 %v3844, %v4041
      %v4043 = vpop.f32.mrb[0].mxu0
      %v4044 = vpop.f32.mrb[0].mxu0
      %v4045 = vadd.f32 %v3844, %v4044
      %v4046 = vpop.f32.mrb[0].mxu0
      %4047 = vmatprep.mubr.bf16.mxu0 %v3798
      %4048 = vmatmul.mubr.bf16.gmra.mrb[0].mxu0 %v3742
      %v4049 = vpop.f32.mrb[0].mxu0
      %v4050 = vadd.f32 %v3844, %v4049
      %v4051 = vpop.f32.mrb[0].mxu0
      %v4052 = vpop.f32.mrb[0].mxu0
      %v4053 = vadd.f32 %v3844, %v4052
      %v4054 = vpop.f32.mrb[0].mxu0
      %4055 = vmatprep.mubr.bf16.mxu0 %v3801
      %4056 = vmatmul.mubr.bf16.gmra.mrb[0].mxu0 %v3745
      %v4057 = vpop.f32.mrb[0].mxu0
      %v4058 = vadd.f32 %v3844, %v4057
      %v4059 = vpop.f32.mrb[0].mxu0
      %v4060 = vpop.f32.mrb[0].mxu0
      %v4061 = vadd.f32 %v3844, %v4060
      %v4062 = vpop.f32.mrb[0].mxu0
      %4063 = vdwg.mxu0
      %4064 = vmatprep.subr.bf16.mxu0 0
      %4065 = vmatpush1.bf16.msra.mxu0 %v3934
      %4066 = vmatprep.subr.bf16.mxu0 0
      %4067 = vmatpush1.bf16.msra.mxu0 %v3935
      %4068 = vmatprep.subr.bf16.mxu0 0
      %4069 = vmatpush1.bf16.msra.mxu0 0
      %4070 = vmatprep.subr.bf16.mxu0 0
      %4071 = vmatpush1.bf16.msra.mxu0 0
      %4072 = vmatprep.subr.bf16.mxu0 0
      %4073 = vmatpush1.bf16.msra.mxu0 0
      %4074 = vmatprep.subr.bf16.mxu0 0
      %4075 = vmatpush1.bf16.msra.mxu0 0
      %4076 = vmatprep.subr.bf16.mxu0 0
      %4077 = vmatpush1.bf16.msra.mxu0 0
      %4078 = vmatprep.subr.bf16.mxu0 0
      %4079 = vmatpush1.bf16.msra.mxu0 0
      %4080 = vmatprep.subr.bf16.mxu0 0
      %4081 = vmatpush1.bf16.msra.mxu0 0
      %4082 = vmatprep.subr.bf16.mxu0 0
      %4083 = vmatpush1.bf16.msra.mxu0 0
      %4084 = vmatprep.subr.bf16.mxu0 0
      %4085 = vmatpush1.bf16.msra.mxu0 0
      %4086 = vmatprep.subr.bf16.mxu0 0
      %4087 = vmatpush1.bf16.msra.mxu0 0
      %4088 = vmatprep.subr.bf16.mxu0 0
      %4089 = vmatpush1.bf16.msra.mxu0 0
      %4090 = vmatprep.subr.bf16.mxu0 0
      %4091 = vmatpush1.bf16.msra.mxu0 0
      %4092 = vmatprep.subr.bf16.mxu0 0
      %4093 = vmatpush1.bf16.msra.mxu0 0
      %4094 = vmatprep.subr.bf16.mxu0 0
      %4095 = vmatpush1.bf16.msra.mxu0 0
      %4096 = vmatprep.mubr.bf16.mxu0 0
      %4097 = vmatmul.mubr.bf16.gmra.mrb[0].mxu0 %v3955
      %v4098 = vpop.f32.mrb[0].mxu0
      %v4099 = vadd.f32 %v4010, %v4098
      %v4100 = vpop.f32.mrb[0].mxu0
      %v4101 = vpop.f32.mrb[0].mxu0
      %v4102 = vadd.f32 %v4013, %v4101
      %v4103 = vpop.f32.mrb[0].mxu0
      %4104 = vmatprep.mubr.bf16.mxu0 0
      %4105 = vmatmul.mubr.bf16.gmra.mrb[0].mxu0 %v3958
      %v4106 = vpop.f32.mrb[0].mxu0
      %v4107 = vadd.f32 %v4018, %v4106
      %v4108 = vpop.f32.mrb[0].mxu0
      %v4109 = vpop.f32.mrb[0].mxu0
      %v4110 = vadd.f32 %v4021, %v4109
      %v4111 = vpop.f32.mrb[0].mxu0
      %4112 = vmatprep.mubr.bf16.mxu0 0
      %4113 = vmatmul.mubr.bf16.gmra.mrb[0].mxu0 %v3961
      %v4114 = vpop.f32.mrb[0].mxu0
      %v4115 = vadd.f32 %v4026, %v4114
      %v4116 = vpop.f32.mrb[0].mxu0
      %v4117 = vpop.f32.mrb[0].mxu0
      %v4118 = vadd.f32 %v4029, %v4117
      %v4119 = vpop.f32.mrb[0].mxu0
      %4120 = vmatprep.mubr.bf16.mxu0 0
      %4121 = vmatmul.mubr.bf16.gmra.mrb[0].mxu0 %v3964
      %v4122 = vpop.f32.mrb[0].mxu0
      %v4123 = vadd.f32 %v4034, %v4122
      %v4124 = vpop.f32.mrb[0].mxu0
      %v4125 = vpop.f32.mrb[0].mxu0
      %v4126 = vadd.f32 %v4037, %v4125
      %v4127 = vpop.f32.mrb[0].mxu0
      %4128 = vmatprep.mubr.bf16.mxu0 0
      %4129 = vmatmul.mubr.bf16.gmra.mrb[0].mxu0 %v3967
      %v4130 = vpop.f32.mrb[0].mxu0
      %v4131 = vadd.f32 %v4042, %v4130
      %v4132 = vpop.f32.mrb[0].mxu0
      %v4133 = vpop.f32.mrb[0].mxu0
      %v4134 = vadd.f32 %v4045, %v4133
      %v4135 = vpop.f32.mrb[0].mxu0
      %4136 = vmatprep.mubr.bf16.mxu0 0
      %4137 = vmatmul.mubr.bf16.gmra.mrb[0].mxu0 %v3970
      %v4138 = vpop.f32.mrb[0].mxu0
      %v4139 = vadd.f32 %v4050, %v4138
      %v4140 = vpop.f32.mrb[0].mxu0
      %v4141 = vpop.f32.mrb[0].mxu0
      %v4142 = vadd.f32 %v4053, %v4141
      %v4143 = vpop.f32.mrb[0].mxu0
      %4144 = vmatprep.mubr.bf16.mxu0 0
      %4145 = vmatmul.mubr.bf16.gmra.mrb[0].mxu0 %v3973
      %v4146 = vpop.f32.mrb[0].mxu0
      %v4147 = vadd.f32 %v4058, %v4146
      %v4148 = vpop.f32.mrb[0].mxu0
      %v4149 = vpop.f32.mrb[0].mxu0
      %v4150 = vadd.f32 %v4061, %v4149
      %v4151 = vpop.f32.mrb[0].mxu0
      %4152 = vdwg.mxu0
      %v4153 = vmax.f32 %v4099, 0.0
      %v4154 = vmax.f32 %v4102, 0.0
      %v4155 = vmax.f32 %v4107, 0.0
      %v4156 = vmax.f32 %v4110, 0.0
      %v4157 = vmax.f32 %v4115, 0.0
      %v4158 = vmax.f32 %v4118, 0.0
      %v4159 = vmax.f32 %v4123, 0.0
      %v4160 = vmax.f32 %v4126, 0.0
      %v4161 = vmax.f32 %v4131, 0.0
      %v4162 = vmax.f32 %v4134, 0.0
      %v4163 = vmax.f32 %v4139, 0.0
      %v4164 = vmax.f32 %v4142, 0.0
      %v4165 = vmax.f32 %v4147, 0.0
      %v4166 = vmax.f32 %v4150, 0.0
      %v4167 = vpack.c.bf16 %v4154, %v4153
      %v4168 = vpack.c.bf16 %v4156, %v4155
      %v4169 = vpack.c.bf16 %v4158, %v4157
      %v4170 = vpack.c.bf16 %v4160, %v4159
      %v4171 = vpack.c.bf16 %v4162, %v4161
      %v4172 = vpack.c.bf16 %v4164, %v4163
      %v4173 = vpack.c.bf16 %v4166, %v4165
      %v4175 = vshrl.u32 %v4167, 16
      %v4177 = vshll.u32 %v4167, 16
      %v4179 = vrot.slane %v4177, 1
      %v4180 = vor.u32 %v4175, %v4179
      %v4182 = vshll.u32 %v4168, 16
      %v4184 = vrot.slane %v4182, 1
      %v4185 = vsel %vm270, %v4180, %v4184
      %v4186 = vshrl.u32 %v4168, 16
      %v4188 = vor.u32 %v4186, %v4184
      %v4190 = vshll.u32 %v4169, 16
      %v4192 = vrot.slane %v4190, 1
      %v4193 = vsel %vm270, %v4188, %v4192
      %v4194 = vshrl.u32 %v4169, 16
      %v4196 = vor.u32 %v4194, %v4192
      %v4198 = vshll.u32 %v4170, 16
      %v4200 = vrot.slane %v4198, 1
      %v4201 = vsel %vm270, %v4196, %v4200
      %v4202 = vshrl.u32 %v4170, 16
      %v4204 = vor.u32 %v4202, %v4200
      %v4206 = vshll.u32 %v4171, 16
      %v4208 = vrot.slane %v4206, 1
      %v4209 = vsel %vm270, %v4204, %v4208
      %v4210 = vshrl.u32 %v4171, 16
      %v4212 = vor.u32 %v4210, %v4208
      %4213 = vrot.lane.b32.xlu0 %v4185, 32
      %v4214 = vpop.permute.xlu0 %4213
      %4215 = vrot.lane.b32.xlu0 %v4193, 32
      %v4216 = vpop.permute.xlu0 %4215
      %4217 = vrot.lane.b32.xlu0 %v4201, 32
      %v4218 = vpop.permute.xlu0 %4217
      %4219 = vrot.lane.b32.xlu0 %v4209, 32
      %v4220 = vpop.permute.xlu0 %4219
      %4221 = vrot.lane.b32.xlu0 %v4212, 32
      %v4222 = vpop.permute.xlu0 %4221
      %v4229 = vrot.slane %v4167, 1
      %v4230 = vrot.slane %v4168, 1
      %v4231 = vsel %vm917, %v4229, %v4230
      %v4232 = vrot.slane %v4169, 1
      %v4233 = vsel %vm917, %v4230, %v4232
      %v4234 = vrot.slane %v4170, 1
      %v4235 = vsel %vm917, %v4232, %v4234
      %v4236 = vrot.slane %v4171, 1
      %v4237 = vsel %vm917, %v4234, %v4236
      %v4238 = vrot.slane %v4172, 1
      %v4239 = vsel %vm917, %v4236, %v4238
      %4240 = vrot.lane.b32.xlu0 %v4231, 64
      %v4241 = vpop.permute.xlu0 %4240
      %4242 = vrot.lane.b32.xlu0 %v4233, 64
      %v4243 = vpop.permute.xlu0 %4242
      %4244 = vrot.lane.b32.xlu0 %v4235, 64
      %v4245 = vpop.permute.xlu0 %4244
      %4246 = vrot.lane.b32.xlu0 %v4237, 64
      %v4247 = vpop.permute.xlu0 %4246
      %4248 = vrot.lane.b32.xlu0 %v4239, 64
      %v4249 = vpop.permute.xlu0 %4248
      %v4250 = vrot.slane %v4167, 6
      %v4251 = vrot.slane %v4168, 6
      %v4252 = vsel %vm946, %v4250, %v4251
      %v4253 = vrot.slane %v4169, 6
      %v4254 = vsel %vm946, %v4251, %v4253
      %v4255 = vrot.slane %v4170, 6
      %v4256 = vsel %vm946, %v4253, %v4255
      %v4257 = vrot.slane %v4171, 6
      %v4258 = vsel %vm946, %v4255, %v4257
      %v4259 = vrot.slane %v4172, 6
      %v4260 = vsel %vm946, %v4257, %v4259
      %4261 = vrot.lane.b32.xlu0 %v4252, 96
      %v4262 = vpop.permute.xlu0 %4261
      %4263 = vrot.lane.b32.xlu0 %v4254, 96
      %v4264 = vpop.permute.xlu0 %4263
      %4265 = vrot.lane.b32.xlu0 %v4256, 96
      %v4266 = vpop.permute.xlu0 %4265
      %4267 = vrot.lane.b32.xlu0 %v4258, 96
      %v4268 = vpop.permute.xlu0 %4267
      %4269 = vrot.lane.b32.xlu0 %v4260, 96
      %v4270 = vpop.permute.xlu0 %4269
      %v4271 = vrot.slane %v4175, 6
      %v4272 = vrot.slane %v4177, 7
      %v4273 = vor.u32 %v4271, %v4272
      %v4274 = vrot.slane %v4186, 6
      %v4275 = vrot.slane %v4182, 7
      %v4276 = vor.u32 %v4274, %v4275
      %v4277 = vsel %vm976, %v4273, %v4276
      %v4278 = vrot.slane %v4194, 6
      %v4279 = vrot.slane %v4190, 7
      %v4280 = vor.u32 %v4278, %v4279
      %v4281 = vsel %vm976, %v4276, %v4280
      %v4282 = vrot.slane %v4202, 6
      %v4283 = vrot.slane %v4198, 7
      %v4284 = vor.u32 %v4282, %v4283
      %v4285 = vsel %vm976, %v4280, %v4284
      %v4286 = vrot.slane %v4210, 6
      %v4287 = vrot.slane %v4206, 7
      %v4288 = vor.u32 %v4286, %v4287
      %v4289 = vsel %vm976, %v4284, %v4288
      %v4291 = vshrl.u32 %v4172, 16
      %v4293 = vrot.slane %v4291, 6
      %v4294 = vshll.u32 %v4172, 16
      %v4296 = vrot.slane %v4294, 7
      %v4297 = vor.u32 %v4293, %v4296
      %v4298 = vsel %vm976, %v4288, %v4297
      %v4299 = vrot.slane %v4167, 7
      %v4300 = vrot.slane %v4168, 7
      %v4301 = vsel %vm1013, %v4299, %v4300
      %v4302 = vrot.slane %v4169, 7
      %v4303 = vsel %vm1013, %v4300, %v4302
      %v4304 = vrot.slane %v4170, 7
      %v4305 = vsel %vm1013, %v4302, %v4304
      %v4306 = vrot.slane %v4171, 7
      %v4307 = vsel %vm1013, %v4304, %v4306
      %v4308 = vrot.slane %v4172, 7
      %v4309 = vsel %vm1013, %v4306, %v4308
      %4310 = vrot.lane.b32.xlu0 %v4301, 32
      %v4311 = vpop.permute.xlu0 %4310
      %4312 = vrot.lane.b32.xlu0 %v4303, 32
      %v4313 = vpop.permute.xlu0 %4312
      %4314 = vrot.lane.b32.xlu0 %v4305, 32
      %v4315 = vpop.permute.xlu0 %4314
      %4316 = vrot.lane.b32.xlu0 %v4307, 32
      %v4317 = vpop.permute.xlu0 %4316
      %4318 = vrot.lane.b32.xlu0 %v4309, 32
      %v4319 = vpop.permute.xlu0 %4318
      %v4321 = vrot.slane %v4168, 4
      %v4322 = vrot.slane %v4169, 4
      %v4323 = vsel %vm1044, %v4321, %v4322
      %v4324 = vrot.slane %v4170, 4
      %v4325 = vsel %vm1044, %v4322, %v4324
      %v4326 = vrot.slane %v4171, 4
      %v4327 = vsel %vm1044, %v4324, %v4326
      %v4328 = vrot.slane %v4172, 4
      %v4329 = vsel %vm1044, %v4326, %v4328
      %v4330 = vrot.slane %v4173, 4
      %v4331 = vsel %vm1044, %v4328, %v4330
      %4332 = vrot.lane.b32.xlu0 %v4323, 64
      %v4333 = vpop.permute.xlu0 %4332
      %4334 = vrot.lane.b32.xlu0 %v4325, 64
      %v4335 = vpop.permute.xlu0 %4334
      %4336 = vrot.lane.b32.xlu0 %v4327, 64
      %v4337 = vpop.permute.xlu0 %4336
      %4338 = vrot.lane.b32.xlu0 %v4329, 64
      %v4339 = vpop.permute.xlu0 %4338
      %4340 = vrot.lane.b32.xlu0 %v4331, 64
      %v4341 = vpop.permute.xlu0 %4340
      %v4342 = vrot.slane %v4186, 4
      %v4343 = vrot.slane %v4182, 5
      %v4344 = vor.u32 %v4342, %v4343
      %v4345 = vrot.slane %v4194, 4
      %v4346 = vrot.slane %v4190, 5
      %v4347 = vor.u32 %v4345, %v4346
      %v4348 = vsel %vm1074, %v4344, %v4347
      %v4349 = vrot.slane %v4202, 4
      %v4350 = vrot.slane %v4198, 5
      %v4351 = vor.u32 %v4349, %v4350
      %v4352 = vsel %vm1074, %v4347, %v4351
      %v4353 = vrot.slane %v4210, 4
      %v4354 = vrot.slane %v4206, 5
      %v4355 = vor.u32 %v4353, %v4354
      %v4356 = vsel %vm1074, %v4351, %v4355
      %v4357 = vrot.slane %v4291, 4
      %v4358 = vrot.slane %v4294, 5
      %v4359 = vor.u32 %v4357, %v4358
      %v4360 = vsel %vm1074, %v4355, %v4359
      %v4362 = vshrl.u32 %v4173, 16
      %v4364 = vrot.slane %v4362, 4
      %v4365 = vshll.u32 %v4173, 16
      %v4367 = vrot.slane %v4365, 5
      %v4368 = vor.u32 %v4364, %v4367
      %v4369 = vsel %vm1074, %v4359, %v4368
      %4370 = vrot.lane.b32.xlu0 %v4348, 96
      %v4371 = vpop.permute.xlu0 %4370
      %4372 = vrot.lane.b32.xlu0 %v4352, 96
      %v4373 = vpop.permute.xlu0 %4372
      %4374 = vrot.lane.b32.xlu0 %v4356, 96
      %v4375 = vpop.permute.xlu0 %4374
      %4376 = vrot.lane.b32.xlu0 %v4360, 96
      %v4377 = vpop.permute.xlu0 %4376
      %4378 = vrot.lane.b32.xlu0 %v4369, 96
      %v4379 = vpop.permute.xlu0 %4378
      %v4380 = vrot.slane %v4168, 5
      %v4381 = vrot.slane %v4169, 5
      %v4382 = vsel %vm1125, %v4380, %v4381
      %v4383 = vrot.slane %v4170, 5
      %v4384 = vsel %vm1125, %v4381, %v4383
      %v4385 = vrot.slane %v4171, 5
      %v4386 = vsel %vm1125, %v4383, %v4385
      %v4387 = vrot.slane %v4172, 5
      %v4388 = vsel %vm1125, %v4385, %v4387
      %v4389 = vrot.slane %v4173, 5
      %v4390 = vsel %vm1125, %v4387, %v4389
      %v4392 = vsel %vm642, %v4167, %v4214
      %v4394 = vsel %vm642, %v4168, %v4216
      %v4396 = vsel %vm642, %v4169, %v4218
      %v4398 = vsel %vm642, %v4170, %v4220
      %v4400 = vsel %vm642, %v4171, %v4222
      %v4402 = vsel %vm1155, %v4392, %v4241
      %v4404 = vsel %vm1155, %v4394, %v4243
      %v4406 = vsel %vm1155, %v4396, %v4245
      %v4408 = vsel %vm1155, %v4398, %v4247
      %v4410 = vsel %vm1155, %v4400, %v4249
      %v4412 = vsel %vm1170, %v4402, %v4262
      %v4415 = vsel %vm1170, %v4404, %v4264
      %v4418 = vsel %vm1170, %v4406, %v4266
      %v4421 = vsel %vm1170, %v4408, %v4268
      %v4424 = vsel %vm1170, %v4410, %v4270
      %v4428 = vsel %vm642, %v4277, %v4311
      %v4431 = vsel %vm642, %v4281, %v4313
      %v4434 = vsel %vm642, %v4285, %v4315
      %v4437 = vsel %vm642, %v4289, %v4317
      %v4440 = vsel %vm642, %v4298, %v4319
      %v4442 = vsel %vm1155, %v4428, %v4333
      %v4444 = vsel %vm1155, %v4431, %v4335
      %v4446 = vsel %vm1155, %v4434, %v4337
      %v4448 = vsel %vm1155, %v4437, %v4339
      %v4450 = vsel %vm1155, %v4440, %v4341
      %v4452 = vsel %vm1170, %v4442, %v4371
      %v4455 = vsel %vm1170, %v4444, %v4373
      %v4458 = vsel %vm1170, %v4446, %v4375
      %v4461 = vsel %vm1170, %v4448, %v4377
      %v4464 = vsel %vm1170, %v4450, %v4379
      %v4466 = vld [vmem:[%s1912] sm:$0xf]
      %v4467 = vld [vmem:[%s1912 + $0x4] sm:$0xf]
      %v4468 = vld [vmem:[%s1912 + $0x8] sm:$0xf]
      %v4469 = vld [vmem:[%s1912 + $0xc] sm:$0xf]
      %v4470 = vld [vmem:[%s1912 + $0x10] sm:$0xf]
      %v4471 = vld [vmem:[%s1912 + $0x14] sm:$0xf]
      %v4472 = vld [vmem:[%s1912 + $0x18] sm:$0xf]
      %v4473 = vld [vmem:[%s1912 + $0x1c] sm:$0xf]
      %v4474 = vld [vmem:[%s1912 + $0x20] sm:$0xf]
      %v4475 = vld [vmem:[%s1912 + $0x24] sm:$0xf]
      %v4476 = vld [vmem:[%s1912 + $0x28] sm:$0xf]
      %v4477 = vld [vmem:[%s1912 + $0x2c] sm:$0xf]
      %v4478 = vld [vmem:[%s1912 + $0x30] sm:$0xf]
      %v4479 = vld [vmem:[%s1912 + $0x34] sm:$0xf]
      %v4480 = vld [vmem:[%s1912 + $0x38] sm:$0xf]
      %v4481 = vld [vmem:[%s1912 + $0x3c] sm:$0xf]
      %v4482 = vld [vmem:[%s1912 + $0x40] sm:$0xf]
      %v4483 = vld [vmem:[%s1912 + $0x44] sm:$0xf]
      %v4484 = vld [vmem:[%s1912 + $0x48] sm:$0xf]
      %v4485 = vld [vmem:[%s1912 + $0x4c] sm:$0xf]
      %v4486 = vld [vmem:[%s1912 + $0x50] sm:$0xf]
      %v4487 = vld [vmem:[%s1912 + $0x54] sm:$0xf]
      %v4488 = vld [vmem:[%s1912 + $0x58] sm:$0xf]
      %v4489 = vld [vmem:[%s1912 + $0x5c] sm:$0xf]
      %v4490 = vld [vmem:[%s1912 + $0x60] sm:$0xf]
      %v4491 = vld [vmem:[%s1912 + $0x64] sm:$0xf]
      %v4492 = vld [vmem:[%s1912 + $0x68] sm:$0xf]
      %v4493 = vld [vmem:[%s1912 + $0x6c] sm:$0xf]
      %v4494 = vld [vmem:[%s1912 + $0x70] sm:$0xf]
      %v4495 = vld [vmem:[%s1912 + $0x74] sm:$0xf]
      %v4496 = vld [vmem:[%s1912 + $0x78] sm:$0xf]
      %v4497 = vld [vmem:[%s1912 + $0x7c] sm:$0xf]
      %v4498 = vld [vmem:[%s1912 + $0x80] sm:$0xf]
      %v4499 = vld [vmem:[%s1912 + $0x84] sm:$0xf]
      %v4500 = vld [vmem:[%s1912 + $0x88] sm:$0xf]
      %v4501 = vld [vmem:[%s1912 + $0x8c] sm:$0xf]
      %v4502 = vld [vmem:[%s1949] sm:$0x1]
      %v4504 = vlaneseq
      %v4505 = vshrl.u32 %v4504, 7
      %v4506 = vsub.s32 0, %v4505
      %v4507 = vrot.slane %v4502, %v4506
      %v4545 = vunpack.c.l.b16 %v4466
      %v4546 = vunpack.c.l.b16 %v4467
      %v4547 = vunpack.c.l.b16 %v4468
      %v4548 = vunpack.c.l.b16 %v4469
      %v4549 = vunpack.c.l.b16 %v4470
      %v4550 = vunpack.c.l.b16 %v4471
      %v4551 = vunpack.c.l.b16 %v4472
      %v4552 = vunpack.c.l.b16 %v4473
      %v4553 = vunpack.c.l.b16 %v4474
      %v4554 = vunpack.c.l.b16 %v4475
      %v4555 = vunpack.c.l.b16 %v4476
      %v4556 = vunpack.c.l.b16 %v4477
      %v4557 = vunpack.c.l.b16 %v4478
      %v4558 = vunpack.c.l.b16 %v4479
      %v4559 = vunpack.c.l.b16 %v4480
      %v4560 = vunpack.c.l.b16 %v4481
      %v4561 = vunpack.c.l.b16 %v4482
      %v4562 = vunpack.c.l.b16 %v4483
      %v4563 = vunpack.c.l.b16 %v4484
      %v4564 = vunpack.c.l.b16 %v4485
      %v4565 = vunpack.c.l.b16 %v4486
      %v4566 = vunpack.c.l.b16 %v4487
      %v4567 = vunpack.c.l.b16 %v4488
      %v4568 = vunpack.c.l.b16 %v4489
      %v4569 = vunpack.c.l.b16 %v4490
      %v4570 = vunpack.c.l.b16 %v4491
      %v4571 = vunpack.c.l.b16 %v4492
      %v4572 = vunpack.c.l.b16 %v4493
      %v4573 = vunpack.c.l.b16 %v4494
      %v4574 = vunpack.c.l.b16 %v4495
      %v4575 = vunpack.c.l.b16 %v4496
      %v4576 = vunpack.c.l.b16 %v4497
      %v4577 = vunpack.c.l.b16 %v4498
      %v4578 = vunpack.c.l.b16 %v4499
      %v4579 = vunpack.c.l.b16 %v4500
      %v4580 = vunpack.c.l.b16 %v4501
      %v4581 = vpack.c.b16 %v4546, %v4545
      %v4582 = vpack.c.b16 %v4548, %v4547
      %v4583 = vpack.c.b16 %v4550, %v4549
      %v4584 = vpack.c.b16 %v4552, %v4551
      %v4585 = vpack.c.b16 %v4554, %v4553
      %v4586 = vpack.c.b16 %v4556, %v4555
      %v4587 = vpack.c.b16 %v4558, %v4557
      %v4588 = vpack.c.b16 %v4560, %v4559
      %v4589 = vpack.c.b16 %v4562, %v4561
      %v4590 = vpack.c.b16 %v4564, %v4563
      %v4591 = vpack.c.b16 %v4566, %v4565
      %v4592 = vpack.c.b16 %v4568, %v4567
      %v4593 = vpack.c.b16 %v4570, %v4569
      %v4594 = vpack.c.b16 %v4572, %v4571
      %v4595 = vpack.c.b16 %v4574, %v4573
      %v4596 = vpack.c.b16 %v4576, %v4575
      %v4597 = vpack.c.b16 %v4578, %v4577
      %v4598 = vpack.c.b16 %v4580, %v4579
      %v4618 = vsel %vm642, %v4382, 0
      %v4621 = vsel %vm642, %v4384, 0
      %v4624 = vsel %vm642, %v4386, 0
      %v4627 = vsel %vm642, %v4388, 0
      %v4630 = vsel %vm642, %v4390, 0
      %4632 = vmatprep.subr.bf16.mxu0 0
      %4633 = vmatpush1.bf16.msra.mxu0 %v4581
      %4634 = vmatprep.subr.bf16.mxu0 0
      %4635 = vmatpush1.bf16.msra.mxu0 %v4582
      %4636 = vmatprep.subr.bf16.mxu0 0
      %4637 = vmatpush1.bf16.msra.mxu0 %v4583
      %4638 = vmatprep.subr.bf16.mxu0 0
      %4639 = vmatpush1.bf16.msra.mxu0 %v4584
      %4640 = vmatprep.subr.bf16.mxu0 0
      %4641 = vmatpush1.bf16.msra.mxu0 %v4585
      %4642 = vmatprep.subr.bf16.mxu0 0
      %4643 = vmatpush1.bf16.msra.mxu0 %v4586
      %4644 = vmatprep.subr.bf16.mxu0 0
      %4645 = vmatpush1.bf16.msra.mxu0 %v4587
      %4646 = vmatprep.subr.bf16.mxu0 0
      %4647 = vmatpush1.bf16.msra.mxu0 %v4588
      %4648 = vmatprep.subr.bf16.mxu0 0
      %4649 = vmatpush1.bf16.msra.mxu0 %v4589
      %4650 = vmatprep.subr.bf16.mxu0 0
      %4651 = vmatpush1.bf16.msra.mxu0 %v4590
      %4652 = vmatprep.subr.bf16.mxu0 0
      %4653 = vmatpush1.bf16.msra.mxu0 %v4591
      %4654 = vmatprep.subr.bf16.mxu0 0
      %4655 = vmatpush1.bf16.msra.mxu0 %v4592
      %4656 = vmatprep.subr.bf16.mxu0 0
      %4657 = vmatpush1.bf16.msra.mxu0 %v4593
      %4658 = vmatprep.subr.bf16.mxu0 0
      %4659 = vmatpush1.bf16.msra.mxu0 %v4594
      %4660 = vmatprep.subr.bf16.mxu0 0
      %4661 = vmatpush1.bf16.msra.mxu0 %v4595
      %4662 = vmatprep.subr.bf16.mxu0 0
      %4663 = vmatpush1.bf16.msra.mxu0 %v4596
      %4664 = vmatprep.mubr.bf16.mxu0 %v4452
      %4665 = vmatmul.mubr.bf16.gmra.mrb[0].mxu0 %v4412
      %v4666 = vpop.f32.mrb[0].mxu0
      %v4667 = vadd.f32 %v4507, %v4666
      %v4668 = vpop.f32.mrb[0].mxu0
      %v4669 = vpop.f32.mrb[0].mxu0
      %v4670 = vadd.f32 %v4507, %v4669
      %v4671 = vpop.f32.mrb[0].mxu0
      %4672 = vmatprep.mubr.bf16.mxu0 %v4455
      %4673 = vmatmul.mubr.bf16.gmra.mrb[0].mxu0 %v4415
      %v4674 = vpop.f32.mrb[0].mxu0
      %v4675 = vadd.f32 %v4507, %v4674
      %v4676 = vpop.f32.mrb[0].mxu0
      %v4677 = vpop.f32.mrb[0].mxu0
      %v4678 = vadd.f32 %v4507, %v4677
      %v4679 = vpop.f32.mrb[0].mxu0
      %4680 = vmatprep.mubr.bf16.mxu0 %v4458
      %4681 = vmatmul.mubr.bf16.gmra.mrb[0].mxu0 %v4418
      %v4682 = vpop.f32.mrb[0].mxu0
      %v4683 = vadd.f32 %v4507, %v4682
      %v4684 = vpop.f32.mrb[0].mxu0
      %v4685 = vpop.f32.mrb[0].mxu0
      %v4686 = vadd.f32 %v4507, %v4685
      %v4687 = vpop.f32.mrb[0].mxu0
      %4688 = vmatprep.mubr.bf16.mxu0 %v4461
      %4689 = vmatmul.mubr.bf16.gmra.mrb[0].mxu0 %v4421
      %v4690 = vpop.f32.mrb[0].mxu0
      %v4691 = vadd.f32 %v4507, %v4690
      %v4692 = vpop.f32.mrb[0].mxu0
      %v4693 = vpop.f32.mrb[0].mxu0
      %v4694 = vadd.f32 %v4507, %v4693
      %v4695 = vpop.f32.mrb[0].mxu0
      %4696 = vmatprep.mubr.bf16.mxu0 %v4464
      %4697 = vmatmul.mubr.bf16.gmra.mrb[0].mxu0 %v4424
      %v4698 = vpop.f32.mrb[0].mxu0
      %v4699 = vadd.f32 %v4507, %v4698
      %v4700 = vpop.f32.mrb[0].mxu0
      %v4701 = vpop.f32.mrb[0].mxu0
      %v4702 = vadd.f32 %v4507, %v4701
      %v4703 = vpop.f32.mrb[0].mxu0
      %4704 = vdwg.mxu0
      %4705 = vmatprep.subr.bf16.mxu0 0
      %4706 = vmatpush1.bf16.msra.mxu0 %v4597
      %4707 = vmatprep.subr.bf16.mxu0 0
      %4708 = vmatpush1.bf16.msra.mxu0 %v4598
      %4709 = vmatprep.subr.bf16.mxu0 0
      %4710 = vmatpush1.bf16.msra.mxu0 0
      %4711 = vmatprep.subr.bf16.mxu0 0
      %4712 = vmatpush1.bf16.msra.mxu0 0
      %4713 = vmatprep.subr.bf16.mxu0 0
      %4714 = vmatpush1.bf16.msra.mxu0 0
      %4715 = vmatprep.subr.bf16.mxu0 0
      %4716 = vmatpush1.bf16.msra.mxu0 0
      %4717 = vmatprep.subr.bf16.mxu0 0
      %4718 = vmatpush1.bf16.msra.mxu0 0
      %4719 = vmatprep.subr.bf16.mxu0 0
      %4720 = vmatpush1.bf16.msra.mxu0 0
      %4721 = vmatprep.subr.bf16.mxu0 0
      %4722 = vmatpush1.bf16.msra.mxu0 0
      %4723 = vmatprep.subr.bf16.mxu0 0
      %4724 = vmatpush1.bf16.msra.mxu0 0
      %4725 = vmatprep.subr.bf16.mxu0 0
      %4726 = vmatpush1.bf16.msra.mxu0 0
      %4727 = vmatprep.subr.bf16.mxu0 0
      %4728 = vmatpush1.bf16.msra.mxu0 0
      %4729 = vmatprep.subr.bf16.mxu0 0
      %4730 = vmatpush1.bf16.msra.mxu0 0
      %4731 = vmatprep.subr.bf16.mxu0 0
      %4732 = vmatpush1.bf16.msra.mxu0 0
      %4733 = vmatprep.subr.bf16.mxu0 0
      %4734 = vmatpush1.bf16.msra.mxu0 0
      %4735 = vmatprep.subr.bf16.mxu0 0
      %4736 = vmatpush1.bf16.msra.mxu0 0
      %4737 = vmatprep.mubr.bf16.mxu0 0
      %4738 = vmatmul.mubr.bf16.gmra.mrb[0].mxu0 %v4618
      %v4739 = vpop.f32.mrb[0].mxu0
      %v4740 = vadd.f32 %v4667, %v4739
      %v4741 = vpop.f32.mrb[0].mxu0
      %v4742 = vpop.f32.mrb[0].mxu0
      %v4743 = vadd.f32 %v4670, %v4742
      %v4744 = vpop.f32.mrb[0].mxu0
      %4745 = vmatprep.mubr.bf16.mxu0 0
      %4746 = vmatmul.mubr.bf16.gmra.mrb[0].mxu0 %v4621
      %v4747 = vpop.f32.mrb[0].mxu0
      %v4748 = vadd.f32 %v4675, %v4747
      %v4749 = vpop.f32.mrb[0].mxu0
      %v4750 = vpop.f32.mrb[0].mxu0
      %v4751 = vadd.f32 %v4678, %v4750
      %v4752 = vpop.f32.mrb[0].mxu0
      %4753 = vmatprep.mubr.bf16.mxu0 0
      %4754 = vmatmul.mubr.bf16.gmra.mrb[0].mxu0 %v4624
      %v4755 = vpop.f32.mrb[0].mxu0
      %v4756 = vadd.f32 %v4683, %v4755
      %v4757 = vpop.f32.mrb[0].mxu0
      %v4758 = vpop.f32.mrb[0].mxu0
      %v4759 = vadd.f32 %v4686, %v4758
      %v4760 = vpop.f32.mrb[0].mxu0
      %4761 = vmatprep.mubr.bf16.mxu0 0
      %4762 = vmatmul.mubr.bf16.gmra.mrb[0].mxu0 %v4627
      %v4763 = vpop.f32.mrb[0].mxu0
      %v4764 = vadd.f32 %v4691, %v4763
      %v4765 = vpop.f32.mrb[0].mxu0
      %v4766 = vpop.f32.mrb[0].mxu0
      %v4767 = vadd.f32 %v4694, %v4766
      %v4768 = vpop.f32.mrb[0].mxu0
      %4769 = vmatprep.mubr.bf16.mxu0 0
      %4770 = vmatmul.mubr.bf16.gmra.mrb[0].mxu0 %v4630
      %v4771 = vpop.f32.mrb[0].mxu0
      %v4772 = vadd.f32 %v4699, %v4771
      %v4773 = vpop.f32.mrb[0].mxu0
      %v4774 = vpop.f32.mrb[0].mxu0
      %v4775 = vadd.f32 %v4702, %v4774
      %v4776 = vpop.f32.mrb[0].mxu0
      %4777 = vdwg.mxu0
      %v4778 = vmax.f32 %v4740, 0.0
      %v4779 = vmax.f32 %v4743, 0.0
      %v4780 = vmax.f32 %v4748, 0.0
      %v4781 = vmax.f32 %v4751, 0.0
      %v4782 = vmax.f32 %v4756, 0.0
      %v4783 = vmax.f32 %v4759, 0.0
      %v4784 = vmax.f32 %v4764, 0.0
      %v4785 = vmax.f32 %v4767, 0.0
      %v4786 = vmax.f32 %v4772, 0.0
      %v4787 = vmax.f32 %v4775, 0.0
      %v4788 = vpack.c.bf16 %v4779, %v4778
      %v4789 = vpack.c.bf16 %v4781, %v4780
      %v4790 = vpack.c.bf16 %v4783, %v4782
      %v4791 = vpack.c.bf16 %v4785, %v4784
      %v4792 = vpack.c.bf16 %v4787, %v4786
      %v4794 = vshrl.u32 %v4788, 16
      %v4796 = vshll.u32 %v4788, 16
      %v4798 = vrot.slane %v4796, 1
      %v4799 = vor.u32 %v4794, %v4798
      %v4801 = vshll.u32 %v4789, 16
      %v4803 = vrot.slane %v4801, 1
      %v4804 = vsel %vm270, %v4799, %v4803
      %v4805 = vshrl.u32 %v4789, 16
      %v4807 = vor.u32 %v4805, %v4803
      %v4809 = vshll.u32 %v4790, 16
      %v4811 = vrot.slane %v4809, 1
      %v4812 = vsel %vm270, %v4807, %v4811
      %v4813 = vshrl.u32 %v4790, 16
      %v4815 = vor.u32 %v4813, %v4811
      %v4817 = vshll.u32 %v4791, 16
      %v4819 = vrot.slane %v4817, 1
      %v4820 = vsel %vm270, %v4815, %v4819
      %v4821 = vshrl.u32 %v4791, 16
      %v4823 = vor.u32 %v4821, %v4819
      %4824 = vrot.lane.b32.xlu0 %v4804, 32
      %v4825 = vpop.permute.xlu0 %4824
      %4826 = vrot.lane.b32.xlu0 %v4812, 32
      %v4827 = vpop.permute.xlu0 %4826
      %4828 = vrot.lane.b32.xlu0 %v4820, 32
      %v4829 = vpop.permute.xlu0 %4828
      %4830 = vrot.lane.b32.xlu0 %v4823, 32
      %v4831 = vpop.permute.xlu0 %4830
      %v4836 = vrot.slane %v4788, 1
      %v4837 = vrot.slane %v4789, 1
      %v4838 = vsel %vm917, %v4836, %v4837
      %v4839 = vrot.slane %v4790, 1
      %v4840 = vsel %vm917, %v4837, %v4839
      %v4841 = vrot.slane %v4791, 1
      %v4842 = vsel %vm917, %v4839, %v4841
      %4843 = vrot.lane.b32.xlu0 %v4838, 64
      %v4844 = vpop.permute.xlu0 %4843
      %4845 = vrot.lane.b32.xlu0 %v4840, 64
      %v4846 = vpop.permute.xlu0 %4845
      %4847 = vrot.lane.b32.xlu0 %v4842, 64
      %v4848 = vpop.permute.xlu0 %4847
      %4849 = vrot.lane.b32.xlu0 %v4841, 64
      %v4850 = vpop.permute.xlu0 %4849
      %v4852 = vrot.slane %v4788, 6
      %v4853 = vrot.slane %v4789, 6
      %v4854 = vsel %vm946, %v4852, %v4853
      %v4855 = vrot.slane %v4790, 6
      %v4856 = vsel %vm946, %v4853, %v4855
      %v4857 = vrot.slane %v4791, 6
      %v4858 = vsel %vm946, %v4855, %v4857
      %v4859 = vrot.slane %v4792, 6
      %v4860 = vsel %vm946, %v4857, %v4859
      %4861 = vrot.lane.b32.xlu0 %v4854, 96
      %v4862 = vpop.permute.xlu0 %4861
      %4863 = vrot.lane.b32.xlu0 %v4856, 96
      %v4864 = vpop.permute.xlu0 %4863
      %4865 = vrot.lane.b32.xlu0 %v4858, 96
      %v4866 = vpop.permute.xlu0 %4865
      %4867 = vrot.lane.b32.xlu0 %v4860, 96
      %v4868 = vpop.permute.xlu0 %4867
      %v4869 = vrot.slane %v4794, 6
      %v4870 = vrot.slane %v4796, 7
      %v4871 = vor.u32 %v4869, %v4870
      %v4872 = vrot.slane %v4805, 6
      %v4873 = vrot.slane %v4801, 7
      %v4874 = vor.u32 %v4872, %v4873
      %v4875 = vsel %vm976, %v4871, %v4874
      %v4876 = vrot.slane %v4813, 6
      %v4877 = vrot.slane %v4809, 7
      %v4878 = vor.u32 %v4876, %v4877
      %v4879 = vsel %vm976, %v4874, %v4878
      %v4880 = vrot.slane %v4821, 6
      %v4881 = vrot.slane %v4817, 7
      %v4882 = vor.u32 %v4880, %v4881
      %v4883 = vsel %vm976, %v4878, %v4882
      %v4885 = vshrl.u32 %v4792, 16
      %v4887 = vrot.slane %v4885, 6
      %v4888 = vshll.u32 %v4792, 16
      %v4890 = vrot.slane %v4888, 7
      %v4891 = vor.u32 %v4887, %v4890
      %v4892 = vsel %vm976, %v4882, %v4891
      %v4893 = vrot.slane %v4788, 7
      %v4894 = vrot.slane %v4789, 7
      %v4895 = vsel %vm1013, %v4893, %v4894
      %v4896 = vrot.slane %v4790, 7
      %v4897 = vsel %vm1013, %v4894, %v4896
      %v4898 = vrot.slane %v4791, 7
      %v4899 = vsel %vm1013, %v4896, %v4898
      %v4900 = vrot.slane %v4792, 7
      %v4901 = vsel %vm1013, %v4898, %v4900
      %4902 = vrot.lane.b32.xlu0 %v4895, 32
      %v4903 = vpop.permute.xlu0 %4902
      %4904 = vrot.lane.b32.xlu0 %v4897, 32
      %v4905 = vpop.permute.xlu0 %4904
      %4906 = vrot.lane.b32.xlu0 %v4899, 32
      %v4907 = vpop.permute.xlu0 %4906
      %4908 = vrot.lane.b32.xlu0 %v4901, 32
      %v4909 = vpop.permute.xlu0 %4908
      %v4910 = vrot.slane %v4789, 4
      %v4911 = vrot.slane %v4790, 4
      %v4912 = vsel %vm1044, %v4910, %v4911
      %v4913 = vrot.slane %v4791, 4
      %v4914 = vsel %vm1044, %v4911, %v4913
      %v4915 = vrot.slane %v4792, 4
      %v4916 = vsel %vm1044, %v4913, %v4915
      %4917 = vrot.lane.b32.xlu0 %v4912, 64
      %v4918 = vpop.permute.xlu0 %4917
      %4919 = vrot.lane.b32.xlu0 %v4914, 64
      %v4920 = vpop.permute.xlu0 %4919
      %4921 = vrot.lane.b32.xlu0 %v4916, 64
      %v4922 = vpop.permute.xlu0 %4921
      %4923 = vrot.lane.b32.xlu0 %v4915, 64
      %v4924 = vpop.permute.xlu0 %4923
      %v4925 = vrot.slane %v4805, 4
      %v4926 = vrot.slane %v4801, 5
      %v4927 = vor.u32 %v4925, %v4926
      %v4928 = vrot.slane %v4813, 4
      %v4929 = vrot.slane %v4809, 5
      %v4930 = vor.u32 %v4928, %v4929
      %v4931 = vsel %vm1074, %v4927, %v4930
      %v4932 = vrot.slane %v4821, 4
      %v4933 = vrot.slane %v4817, 5
      %v4934 = vor.u32 %v4932, %v4933
      %v4935 = vsel %vm1074, %v4930, %v4934
      %v4936 = vrot.slane %v4885, 4
      %v4937 = vrot.slane %v4888, 5
      %v4938 = vor.u32 %v4936, %v4937
      %v4939 = vsel %vm1074, %v4934, %v4938
      %4940 = vrot.lane.b32.xlu0 %v4931, 96
      %v4941 = vpop.permute.xlu0 %4940
      %4942 = vrot.lane.b32.xlu0 %v4935, 96
      %v4943 = vpop.permute.xlu0 %4942
      %4944 = vrot.lane.b32.xlu0 %v4939, 96
      %v4945 = vpop.permute.xlu0 %4944
      %4946 = vrot.lane.b32.xlu0 %v4938, 96
      %v4947 = vpop.permute.xlu0 %4946
      %v4948 = vrot.slane %v4789, 5
      %v4949 = vrot.slane %v4790, 5
      %v4950 = vsel %vm1125, %v4948, %v4949
      %v4951 = vrot.slane %v4791, 5
      %v4952 = vsel %vm1125, %v4949, %v4951
      %v4953 = vrot.slane %v4792, 5
      %v4954 = vsel %vm1125, %v4951, %v4953
      %v4956 = vsel %vm642, %v4788, %v4825
      %v4958 = vsel %vm642, %v4789, %v4827
      %v4960 = vsel %vm642, %v4790, %v4829
      %v4962 = vsel %vm642, %v4791, %v4831
      %v4964 = vsel %vm1155, %v4956, %v4844
      %v4966 = vsel %vm1155, %v4958, %v4846
      %v4968 = vsel %vm1155, %v4960, %v4848
      %v4970 = vsel %vm1155, %v4962, %v4850
      %v4972 = vsel %vm1170, %v4964, %v4862
      %v4975 = vsel %vm1170, %v4966, %v4864
      %v4978 = vsel %vm1170, %v4968, %v4866
      %v4981 = vsel %vm1170, %v4970, %v4868
      %v4985 = vsel %vm642, %v4875, %v4903
      %v4988 = vsel %vm642, %v4879, %v4905
      %v4991 = vsel %vm642, %v4883, %v4907
      %v4994 = vsel %vm642, %v4892, %v4909
      %v4996 = vsel %vm1155, %v4985, %v4918
      %v4998 = vsel %vm1155, %v4988, %v4920
      %v5000 = vsel %vm1155, %v4991, %v4922
      %v5002 = vsel %vm1155, %v4994, %v4924
      %v5004 = vsel %vm1170, %v4996, %v4941
      %v5007 = vsel %vm1170, %v4998, %v4943
      %v5010 = vsel %vm1170, %v5000, %v4945
      %v5013 = vsel %vm1170, %v5002, %v4947
      %v5015 = vld [vmem:[%s2463] sm:$0xf]
      %v5016 = vld [vmem:[%s2463 + $0x4] sm:$0xf]
      %v5017 = vld [vmem:[%s2463 + $0x8] sm:$0xf]
      %v5018 = vld [vmem:[%s2463 + $0xc] sm:$0xf]
      %v5019 = vld [vmem:[%s2463 + $0x10] sm:$0xf]
      %v5020 = vld [vmem:[%s2463 + $0x14] sm:$0xf]
      %v5021 = vld [vmem:[%s2463 + $0x18] sm:$0xf]
      %v5022 = vld [vmem:[%s2463 + $0x1c] sm:$0xf]
      %v5023 = vld [vmem:[%s2463 + $0x20] sm:$0xf]
      %v5024 = vld [vmem:[%s2463 + $0x24] sm:$0xf]
      %v5025 = vld [vmem:[%s2463 + $0x28] sm:$0xf]
      %v5026 = vld [vmem:[%s2463 + $0x2c] sm:$0xf]
      %v5027 = vld [vmem:[%s2463 + $0x30] sm:$0xf]
      %v5028 = vld [vmem:[%s2463 + $0x34] sm:$0xf]
      %v5029 = vld [vmem:[%s2463 + $0x38] sm:$0xf]
      %v5030 = vld [vmem:[%s2463 + $0x3c] sm:$0xf]
      %v5031 = vld [vmem:[%s2463 + $0x40] sm:$0xf]
      %v5032 = vld [vmem:[%s2463 + $0x44] sm:$0xf]
      %v5033 = vld [vmem:[%s2463 + $0x48] sm:$0xf]
      %v5034 = vld [vmem:[%s2463 + $0x4c] sm:$0xf]
      %v5035 = vld [vmem:[%s2463 + $0x50] sm:$0xf]
      %v5036 = vld [vmem:[%s2463 + $0x54] sm:$0xf]
      %v5037 = vld [vmem:[%s2463 + $0x58] sm:$0xf]
      %v5038 = vld [vmem:[%s2463 + $0x5c] sm:$0xf]
      %v5039 = vld [vmem:[%s2463 + $0x60] sm:$0xf]
      %v5040 = vld [vmem:[%s2463 + $0x64] sm:$0xf]
      %v5041 = vld [vmem:[%s2463 + $0x68] sm:$0xf]
      %v5042 = vld [vmem:[%s2463 + $0x6c] sm:$0xf]
      %v5043 = vld [vmem:[%s2463 + $0x70] sm:$0xf]
      %v5044 = vld [vmem:[%s2463 + $0x74] sm:$0xf]
      %v5045 = vld [vmem:[%s2463 + $0x78] sm:$0xf]
      %v5046 = vld [vmem:[%s2463 + $0x7c] sm:$0xf]
      %v5047 = vld [vmem:[%s2463 + $0x80] sm:$0xf]
      %v5048 = vld [vmem:[%s2463 + $0x84] sm:$0xf]
      %v5049 = vld [vmem:[%s2463 + $0x88] sm:$0xf]
      %v5050 = vld [vmem:[%s2463 + $0x8c] sm:$0xf]
      %v5051 = vld [vmem:[%s2500] sm:$0x1]
      %v5053 = vlaneseq
      %v5054 = vshrl.u32 %v5053, 7
      %v5055 = vsub.s32 0, %v5054
      %v5056 = vrot.slane %v5051, %v5055
      %v5094 = vunpack.c.l.b16 %v5015
      %v5095 = vunpack.c.l.b16 %v5016
      %v5096 = vunpack.c.l.b16 %v5017
      %v5097 = vunpack.c.l.b16 %v5018
      %v5098 = vunpack.c.l.b16 %v5019
      %v5099 = vunpack.c.l.b16 %v5020
      %v5100 = vunpack.c.l.b16 %v5021
      %v5101 = vunpack.c.l.b16 %v5022
      %v5102 = vunpack.c.l.b16 %v5023
      %v5103 = vunpack.c.l.b16 %v5024
      %v5104 = vunpack.c.l.b16 %v5025
      %v5105 = vunpack.c.l.b16 %v5026
      %v5106 = vunpack.c.l.b16 %v5027
      %v5107 = vunpack.c.l.b16 %v5028
      %v5108 = vunpack.c.l.b16 %v5029
      %v5109 = vunpack.c.l.b16 %v5030
      %v5110 = vunpack.c.l.b16 %v5031
      %v5111 = vunpack.c.l.b16 %v5032
      %v5112 = vunpack.c.l.b16 %v5033
      %v5113 = vunpack.c.l.b16 %v5034
      %v5114 = vunpack.c.l.b16 %v5035
      %v5115 = vunpack.c.l.b16 %v5036
      %v5116 = vunpack.c.l.b16 %v5037
      %v5117 = vunpack.c.l.b16 %v5038
      %v5118 = vunpack.c.l.b16 %v5039
      %v5119 = vunpack.c.l.b16 %v5040
      %v5120 = vunpack.c.l.b16 %v5041
      %v5121 = vunpack.c.l.b16 %v5042
      %v5122 = vunpack.c.l.b16 %v5043
      %v5123 = vunpack.c.l.b16 %v5044
      %v5124 = vunpack.c.l.b16 %v5045
      %v5125 = vunpack.c.l.b16 %v5046
      %v5126 = vunpack.c.l.b16 %v5047
      %v5127 = vunpack.c.l.b16 %v5048
      %v5128 = vunpack.c.l.b16 %v5049
      %v5129 = vunpack.c.l.b16 %v5050
      %v5130 = vpack.c.b16 %v5095, %v5094
      %v5131 = vpack.c.b16 %v5097, %v5096
      %v5132 = vpack.c.b16 %v5099, %v5098
      %v5133 = vpack.c.b16 %v5101, %v5100
      %v5134 = vpack.c.b16 %v5103, %v5102
      %v5135 = vpack.c.b16 %v5105, %v5104
      %v5136 = vpack.c.b16 %v5107, %v5106
      %v5137 = vpack.c.b16 %v5109, %v5108
      %v5138 = vpack.c.b16 %v5111, %v5110
      %v5139 = vpack.c.b16 %v5113, %v5112
      %v5140 = vpack.c.b16 %v5115, %v5114
      %v5141 = vpack.c.b16 %v5117, %v5116
      %v5142 = vpack.c.b16 %v5119, %v5118
      %v5143 = vpack.c.b16 %v5121, %v5120
      %v5144 = vpack.c.b16 %v5123, %v5122
      %v5145 = vpack.c.b16 %v5125, %v5124
      %v5146 = vpack.c.b16 %v5127, %v5126
      %v5147 = vpack.c.b16 %v5129, %v5128
      %v5167 = vsel %vm642, %v4950, 0
      %v5170 = vsel %vm642, %v4952, 0
      %v5173 = vsel %vm642, %v4954, 0
      %v5176 = vsel %vm642, %v4953, 0
      %5178 = vmatprep.subr.bf16.mxu0 0
      %5179 = vmatpush1.bf16.msra.mxu0 %v5130
      %5180 = vmatprep.subr.bf16.mxu0 0
      %5181 = vmatpush1.bf16.msra.mxu0 %v5131
      %5182 = vmatprep.subr.bf16.mxu0 0
      %5183 = vmatpush1.bf16.msra.mxu0 %v5132
      %5184 = vmatprep.subr.bf16.mxu0 0
      %5185 = vmatpush1.bf16.msra.mxu0 %v5133
      %5186 = vmatprep.subr.bf16.mxu0 0
      %5187 = vmatpush1.bf16.msra.mxu0 %v5134
      %5188 = vmatprep.subr.bf16.mxu0 0
      %5189 = vmatpush1.bf16.msra.mxu0 %v5135
      %5190 = vmatprep.subr.bf16.mxu0 0
      %5191 = vmatpush1.bf16.msra.mxu0 %v5136
      %5192 = vmatprep.subr.bf16.mxu0 0
      %5193 = vmatpush1.bf16.msra.mxu0 %v5137
      %5194 = vmatprep.subr.bf16.mxu0 0
      %5195 = vmatpush1.bf16.msra.mxu0 %v5138
      %5196 = vmatprep.subr.bf16.mxu0 0
      %5197 = vmatpush1.bf16.msra.mxu0 %v5139
      %5198 = vmatprep.subr.bf16.mxu0 0
      %5199 = vmatpush1.bf16.msra.mxu0 %v5140
      %5200 = vmatprep.subr.bf16.mxu0 0
      %5201 = vmatpush1.bf16.msra.mxu0 %v5141
      %5202 = vmatprep.subr.bf16.mxu0 0
      %5203 = vmatpush1.bf16.msra.mxu0 %v5142
      %5204 = vmatprep.subr.bf16.mxu0 0
      %5205 = vmatpush1.bf16.msra.mxu0 %v5143
      %5206 = vmatprep.subr.bf16.mxu0 0
      %5207 = vmatpush1.bf16.msra.mxu0 %v5144
      %5208 = vmatprep.subr.bf16.mxu0 0
      %5209 = vmatpush1.bf16.msra.mxu0 %v5145
      %5210 = vmatprep.mubr.bf16.mxu0 %v5004
      %5211 = vmatmul.mubr.bf16.gmra.mrb[0].mxu0 %v4972
      %v5212 = vpop.f32.mrb[0].mxu0
      %v5213 = vadd.f32 %v5056, %v5212
      %v5214 = vpop.f32.mrb[0].mxu0
      %v5215 = vpop.f32.mrb[0].mxu0
      %v5216 = vadd.f32 %v5056, %v5215
      %v5217 = vpop.f32.mrb[0].mxu0
      %5218 = vmatprep.mubr.bf16.mxu0 %v5007
      %5219 = vmatmul.mubr.bf16.gmra.mrb[0].mxu0 %v4975
      %v5220 = vpop.f32.mrb[0].mxu0
      %v5221 = vadd.f32 %v5056, %v5220
      %v5222 = vpop.f32.mrb[0].mxu0
      %v5223 = vpop.f32.mrb[0].mxu0
      %v5224 = vadd.f32 %v5056, %v5223
      %v5225 = vpop.f32.mrb[0].mxu0
      %5226 = vmatprep.mubr.bf16.mxu0 %v5010
      %5227 = vmatmul.mubr.bf16.gmra.mrb[0].mxu0 %v4978
      %v5228 = vpop.f32.mrb[0].mxu0
      %v5229 = vadd.f32 %v5056, %v5228
      %v5230 = vpop.f32.mrb[0].mxu0
      %v5231 = vpop.f32.mrb[0].mxu0
      %v5232 = vadd.f32 %v5056, %v5231
      %v5233 = vpop.f32.mrb[0].mxu0
      %5234 = vmatprep.mubr.bf16.mxu0 %v5013
      %5235 = vmatmul.mubr.bf16.gmra.mrb[0].mxu0 %v4981
      %v5236 = vpop.f32.mrb[0].mxu0
      %v5237 = vadd.f32 %v5056, %v5236
      %v5238 = vpop.f32.mrb[0].mxu0
      %v5239 = vpop.f32.mrb[0].mxu0
      %v5240 = vpop.f32.mrb[0].mxu0
      %5241 = vdwg.mxu0
      %5242 = vmatprep.subr.bf16.mxu0 0
      %5243 = vmatpush1.bf16.msra.mxu0 %v5146
      %5244 = vmatprep.subr.bf16.mxu0 0
      %5245 = vmatpush1.bf16.msra.mxu0 %v5147
      %5246 = vmatprep.subr.bf16.mxu0 0
      %5247 = vmatpush1.bf16.msra.mxu0 0
      %5248 = vmatprep.subr.bf16.mxu0 0
      %5249 = vmatpush1.bf16.msra.mxu0 0
      %5250 = vmatprep.subr.bf16.mxu0 0
      %5251 = vmatpush1.bf16.msra.mxu0 0
      %5252 = vmatprep.subr.bf16.mxu0 0
      %5253 = vmatpush1.bf16.msra.mxu0 0
      %5254 = vmatprep.subr.bf16.mxu0 0
      %5255 = vmatpush1.bf16.msra.mxu0 0
      %5256 = vmatprep.subr.bf16.mxu0 0
      %5257 = vmatpush1.bf16.msra.mxu0 0
      %5258 = vmatprep.subr.bf16.mxu0 0
      %5259 = vmatpush1.bf16.msra.mxu0 0
      %5260 = vmatprep.subr.bf16.mxu0 0
      %5261 = vmatpush1.bf16.msra.mxu0 0
      %5262 = vmatprep.subr.bf16.mxu0 0
      %5263 = vmatpush1.bf16.msra.mxu0 0
      %5264 = vmatprep.subr.bf16.mxu0 0
      %5265 = vmatpush1.bf16.msra.mxu0 0
      %5266 = vmatprep.subr.bf16.mxu0 0
      %5267 = vmatpush1.bf16.msra.mxu0 0
      %5268 = vmatprep.subr.bf16.mxu0 0
      %5269 = vmatpush1.bf16.msra.mxu0 0
      %5270 = vmatprep.subr.bf16.mxu0 0
      %5271 = vmatpush1.bf16.msra.mxu0 0
      %5272 = vmatprep.subr.bf16.mxu0 0
      %5273 = vmatpush1.bf16.msra.mxu0 0
      %5274 = vmatprep.mubr.bf16.mxu0 0
      %5275 = vmatmul.mubr.bf16.gmra.mrb[0].mxu0 %v5167
      %v5276 = vpop.f32.mrb[0].mxu0
      %v5277 = vadd.f32 %v5213, %v5276
      %v5278 = vpop.f32.mrb[0].mxu0
      %v5279 = vpop.f32.mrb[0].mxu0
      %v5280 = vadd.f32 %v5216, %v5279
      %v5281 = vpop.f32.mrb[0].mxu0
      %5282 = vmatprep.mubr.bf16.mxu0 0
      %5283 = vmatmul.mubr.bf16.gmra.mrb[0].mxu0 %v5170
      %v5284 = vpop.f32.mrb[0].mxu0
      %v5285 = vadd.f32 %v5221, %v5284
      %v5286 = vpop.f32.mrb[0].mxu0
      %v5287 = vpop.f32.mrb[0].mxu0
      %v5288 = vadd.f32 %v5224, %v5287
      %v5289 = vpop.f32.mrb[0].mxu0
      %5290 = vmatprep.mubr.bf16.mxu0 0
      %5291 = vmatmul.mubr.bf16.gmra.mrb[0].mxu0 %v5173
      %v5292 = vpop.f32.mrb[0].mxu0
      %v5293 = vadd.f32 %v5229, %v5292
      %v5294 = vpop.f32.mrb[0].mxu0
      %v5295 = vpop.f32.mrb[0].mxu0
      %v5296 = vadd.f32 %v5232, %v5295
      %v5297 = vpop.f32.mrb[0].mxu0
      %5298 = vmatprep.mubr.bf16.mxu0 0
      %5299 = vmatmul.mubr.bf16.gmra.mrb[0].mxu0 %v5176
      %v5300 = vpop.f32.mrb[0].mxu0
      %v5301 = vadd.f32 %v5237, %v5300
      %v5302 = vpop.f32.mrb[0].mxu0
      %v5303 = vpop.f32.mrb[0].mxu0
      %v5304 = vpop.f32.mrb[0].mxu0
      %5305 = vdwg.mxu0
      %v5306 = vmax.f32 %v5277, 0.0
      %v5307 = vmax.f32 %v5280, 0.0
      %v5308 = vmax.f32 %v5285, 0.0
      %v5309 = vmax.f32 %v5288, 0.0
      %v5310 = vmax.f32 %v5293, 0.0
      %v5311 = vmax.f32 %v5296, 0.0
      %v5312 = vmax.f32 %v5301, 0.0
      %v5315 = vrot.slane %v5307, 4
      %v5316 = vrot.slane %v5308, 4
      %v5317 = vsel %vm2765, %v5315, %v5316
      %v5321 = vrot.slane %v5310, 4
      %v5322 = vrot.slane %v5311, 4
      %v5323 = vsel %vm2765, %v5321, %v5322
      %s5325 = scalar_lea.vmem %s204, 40
      %5326 = vst.msk [vmem:[%s5325] sm:$0x1f] %vm2776, %v5306
      %5327 = vst.msk [vmem:[%s5325 + $0x8] sm:$0x1f] %vm2776, %v5317
      %5328 = vst.msk [vmem:[%s5325 + $0x10] sm:$0x1f] %vm2776, %v5309
      %5329 = vst.msk [vmem:[%s5325 + $0x18] sm:$0x1f] %vm2776, %v5323
      %5330 = vst.msk [vmem:[%s5325 + $0x20] sm:$0x1f] %vm2776, %v5312
      %s5331 = smul.u32 2, %s15
      %p5332 = scmp.lt.s32.totalorder %s5331, 3
      %s5333 = scalar_select %p5332, %s5331, 3
      %s5334 = smul.addr %s5333, 5
      %s5335 = smul.addr %s5334, 8
      %s5336 = scalar_lea.vmem %s4, %s5335
      // Predicated region
      $region37: #{encoder_forward.1} parent=35 // pred_check
        %p5337 = pneg %p122
      $region38: #{encoder_forward.1} parent=35 // pred_check_branch
        %5339 = sbr.rel (%p5337) target = $region40
      $region39: #{encoder_forward.1} parent=35 // pred_region
        %s5340 = smul.u32 2, %s15
      $region40: #{encoder_forward.1} parent=35 // pred_fallthru
        _
    $region36: #{encoder_forward.1} parent=5 // pred_fallthru
      _
    %p5341 = scmp.le.s32.totalorder 2, %s10
    // Predicated region
    $region41: #{encoder_forward.1} parent=5 // pred_check
      %p5342 = pneg %p5341
    $region42: #{encoder_forward.1} parent=5 // pred_check_branch
      %5344 = sbr.rel (%p5342) target = $region44
    $region43: #{encoder_forward.1} parent=5 // pred_region
      %s5345 = ssub.s32 %s10, 2
      // Predicated region
      $region45: #{encoder_forward.1} parent=43 // pred_check
        %p5346 = pneg %p128
      $region46: #{encoder_forward.1} parent=43 // pred_check_branch
        %5348 = sbr.rel (%p5346) target = $region48
      $region47: #{encoder_forward.1} parent=43 // pred_region
        %s5349 = smul.u32 2, %s16
        %p5350 = scmp.lt.s32.totalorder %s5349, 3
        %s5351 = scalar_select %p5350, %s5349, 3
        %s5352 = smul.addr %s5351, 5
        %s5353 = smul.addr %s5352, 8
        %s5354 = scalar_lea.vmem %s4, %s5353
      $region48: #{encoder_forward.1} parent=43 // pred_fallthru
        _
    $region44: #{encoder_forward.1} parent=5 // pred_fallthru
      _
  $region6: #{encoder_forward.1} parent=0 // loop_footer
    %s14 = sadd.s32 1, %s10
  $region7: #{encoder_forward.1} parent=0 // loop_footer_branch
    %9 = sbr.rel target = $region3
  $region8: #{encoder_forward.1} parent=0 // loop_exit
    _

</llo_original>
